<compile_context>
chip_gen: v6e
topology: v6e:2x2x1
jax: 0.10.0
libtpu: 0.0.40
codegen_flags: <defaults>
</compile_context>

<pallas_src>
import functools

import jax
import jax.numpy as jnp
from jax import lax
from jax.experimental import pallas as pl
from jax.experimental.pallas import tpu as pltpu

NUM_DW_CONVS = 4

_SMEM = pl.BlockSpec(memory_space=pltpu.MemorySpace.SMEM)


# --------------------------------------------------------------------------------------
# Fused Dw denoiser + MoDL residual kernel
#   x, under : [branch, batch, 2, Pp] lane-dense (Pp = H*W padded to a 128 multiple)
#   weights  : [branch, L, C, 9C] bf16 (tap-stacked), biases [branch, L, C, 1] f32
#   output   : under + lam * Dw(x)   -> [branch, batch, 2, Pp]
# --------------------------------------------------------------------------------------
def _dw_fused_kernel(lam_ref, x_ref, u_ref, w_ref, b_ref, m_ref, o_ref,
                     xp_ref, xs_ref, *, W, marg, C):
    Pp = x_ref.shape[3]
    L = b_ref.shape[1]
    lam = lam_ref[pl.program_id(0)]          # per-branch lambda (scalar, SMEM)

    left_ok = m_ref[0]                       # (1, Pp): 0 where pixel col == 0
    right_ok = m_ref[1]                      # (1, Pp): 0 where pixel col == W-1
    valid = m_ref[2]                         # (1, Pp): 0 on the padded pixel tail

    # zero the haloed staging buffer once (margins + unused channel rows)
    xp_ref[...] = jnp.zeros_like(xp_ref)

    x = x_ref[0, 0]                          # (2, Pp) f32, resident in VMEM
    for l in range(L):
        cin = x.shape[0]
        # stage the current activation inside the zero halo (128-aligned lane offset)
        xp_ref[0:cin, marg:marg + Pp] = x
        # tap-stack the 9 shifted views into a [9C, Pp] bf16 buffer -> one MXU matmul
        for dh in (-1, 0, 1):
            for dw in (-1, 0, 1):
                t = (dh + 1) * 3 + (dw + 1)
                s = dh * W + dw
                xs = xp_ref[:, marg + s:marg + s + Pp]      # shifted (haloed) view
                if dw == -1:
                    xs = xs * left_ok                        # left image border
                elif dw == 1:
                    xs = xs * right_ok                       # right image border
                xs_ref[t * C:(t + 1) * C, :] = xs.astype(jnp.bfloat16)
        acc = jnp.dot(w_ref[0, l], xs_ref[...],              # (C,9C)@(9C,Pp), bf16 MXU
                      preferred_element_type=jnp.float32)
        acc = acc + b_ref[0, l]
        if l < L - 1:
            acc = jnp.maximum(acc, 0.0)
        x = acc * valid                       # keep the padded pixel tail at zero
    # fused MoDL residual: under_img + lam * Dw(x)   (only the 2 real/imag channels)
    o_ref[0, 0] = u_ref[0, 0] + lam * x[0:2, :]


def dw_residual(x_k, u_k, w_all, b_all, lam2, conv_masks, *, W, C, Pp):
    """x_k, u_k: [2, B, 2, Pp] lane-dense -> under + lam * Dw(x), same layout."""
    B = x_k.shape[1]
    L = b_all.shape[1]
    marg = ((W + 1 + 127) // 128) * 128       # aligned halo >= W+1
    return pl.pallas_call(
        functools.partial(_dw_fused_kernel, W=W, marg=marg, C=C),
        out_shape=jax.ShapeDtypeStruct((2, B, 2, Pp), jnp.float32),
        grid=(2, B),
        in_specs=[
            _SMEM,                                                     # lam (2,)
            pl.BlockSpec((1, 1, 2, Pp), lambda n, b: (n, b, 0, 0)),    # x
            pl.BlockSpec((1, 1, 2, Pp), lambda n, b: (n, b, 0, 0)),    # under
            pl.BlockSpec((1, L, C, 9 * C), lambda n, b: (n, 0, 0, 0)), # weights (resident)
            pl.BlockSpec((1, L, C, 1), lambda n, b: (n, 0, 0, 0)),     # biases (resident)
            pl.BlockSpec((3, 1, Pp), lambda n, b: (0, 0, 0)),          # border/valid masks
        ],
        out_specs=pl.BlockSpec((1, 1, 2, Pp), lambda n, b: (n, b, 0, 0)),
        scratch_shapes=[pltpu.VMEM((C, Pp + 2 * marg), jnp.float32),   # haloed activation
                        pltpu.VMEM((9 * C, Pp), jnp.bfloat16)],        # tap-stacked acts
        compiler_params=pltpu.CompilerParams(
            dimension_semantics=("parallel", "parallel"),
            vmem_limit_bytes=64 * 1024 * 1024),
    )(lam2, x_k, u_k, w_all, b_all, conv_masks)


# --------------------------------------------------------------------------------------
# SENSE coil combine fused with the FULL CG iteration epilogue.
#   grid = (batch, coil); coil is the innermost reduction axis ("arbitrary").
#   Per coil:   Ap += conj(csm_c) * y_c                    (VMEM accumulators)
#   Last coil:  Ap += lam * p; pAp; alpha = rTr/pAp; x += alpha p; r -= alpha Ap;
#               rTrNew; beta = rTrNew/rTr; p = r + beta p;  write new state + rTrNew.
# --------------------------------------------------------------------------------------
def _cg_step_kernel(lam_ref, rtr_ref, yr_ref, yi_ref, cr_ref, ci_ref,
                    pr_ref, pi_ref, xr_ref, xi_ref, rr_ref, ri_ref,
                    xro_ref, xio_ref, rro_ref, rio_ref, pro_ref, pio_ref, rtro_ref,
                    apr_ref, api_ref):
    b = pl.program_id(0)
    c = pl.program_id(1)

    yr = yr_ref[0, 0]
    yi = yi_ref[0, 0]
    cr = cr_ref[0, 0]
    ci = ci_ref[0, 0]
    contrib_r = cr * yr + ci * yi            # Re(conj(csm) * y)
    contrib_i = cr * yi - ci * yr            # Im(conj(csm) * y)

    @pl.when(c == 0)
    def _init():
        apr_ref[...] = jnp.zeros_like(apr_ref)
        api_ref[...] = jnp.zeros_like(api_ref)

    apr_ref[...] += contrib_r
    api_ref[...] += contrib_i

    @pl.when(c == pl.num_programs(1) - 1)
    def _epilogue():
        lam = lam_ref[b]
        rtr = jnp.zeros((1, 1), jnp.float32) + rtr_ref[b]
        pr = pr_ref[0]
        pi = pi_ref[0]
        ap_r = apr_ref[...] + lam * pr
        ap_i = api_ref[...] + lam * pi
        pap = jnp.sum(pr * ap_r + pi * ap_i, keepdims=True)           # (1,1)
        # Guards emulate the tolerance-based early exit of reference CG (avoid 0/0).
        alpha = rtr / jnp.where(pap == 0.0, 1.0, pap)
        r_r = rr_ref[0] - alpha * ap_r
        r_i = ri_ref[0] - alpha * ap_i
        rtr_new = jnp.sum(r_r * r_r + r_i * r_i, keepdims=True)       # (1,1)
        beta = rtr_new / jnp.where(rtr == 0.0, 1.0, rtr)
        xro_ref[0] = xr_ref[0] + alpha * pr
        xio_ref[0] = xi_ref[0] + alpha * pi
        rro_ref[0] = r_r
        rio_ref[0] = r_i
        pro_ref[0] = r_r + beta * pr
        pio_ref[0] = r_i + beta * pi
        rtro_ref[0] = jnp.zeros((1, 128), jnp.float32) + rtr_new      # lane-broadcast


def _cg_step_call(lam_vec, rtr, yr, yi, cr_f, ci_f,
                  p_r, p_i, x_r, x_i, r_r, r_i, *, Pp):
    NB, NC = yr.shape[0], yr.shape[1]
    vec = jax.ShapeDtypeStruct((NB, 1, Pp), jnp.float32)
    scl = jax.ShapeDtypeStruct((NB, 1, 128), jnp.float32)
    coil_spec = pl.BlockSpec((1, 1, 1, Pp), lambda b, c: (b, c, 0, 0))
    img_spec = pl.BlockSpec((1, 1, Pp), lambda b, c: (b, 0, 0))
    return pl.pallas_call(
        _cg_step_kernel,
        out_shape=(vec, vec, vec, vec, vec, vec, scl),
        grid=(NB, NC),
        in_specs=[_SMEM, _SMEM,                                   # lam_vec, rTr
                  coil_spec, coil_spec, coil_spec, coil_spec,     # yr, yi, csm_r, csm_i
                  img_spec, img_spec,                             # p_r, p_i
                  img_spec, img_spec,                             # x_r, x_i
                  img_spec, img_spec],                            # r_r, r_i
        out_specs=(img_spec, img_spec, img_spec, img_spec, img_spec, img_spec,
                   pl.BlockSpec((1, 1, 128), lambda b, c: (b, 0, 0))),
        scratch_shapes=[pltpu.VMEM((1, Pp), jnp.float32),         # Ap_r accumulator
                        pltpu.VMEM((1, Pp), jnp.float32)],        # Ap_i accumulator
        compiler_params=pltpu.CompilerParams(
            dimension_semantics=("parallel", "arbitrary")),
    )(lam_vec, rtr, yr, yi, cr_f, ci_f, p_r, p_i, x_r, x_i, r_r, r_i)


# --------------------------------------------------------------------------------------
# Conjugate-gradient solve of (E^H E + lam I) x = rhs, x0 = 0
# --------------------------------------------------------------------------------------
def conj_grad(rhs_r, rhs_i, csm_c, cr_f, ci_f, mask, lam_vec, num_iter,
              *, H, W, P, Pp):
    NB = rhs_r.shape[0]
    NC = csm_c.shape[1]
    x_r = jnp.zeros_like(rhs_r)
    x_i = jnp.zeros_like(rhs_i)
    rtr0 = jnp.sum(rhs_r * rhs_r + rhs_i * rhs_i, axis=(-2, -1))   # (NB,)

    def body(_, carry):
        x_r, x_i, r_r, r_i, p_r, p_i, rtr = carry
        # E p: SENSE forward/adjoint roundtrip, kept in XLA so the csm multiply,
        # complexification and k-space mask fuse with the FFT pre/post copies.
        # TODO(synk): FFT has no Pallas equivalent on TPU; XLA FFT, norm='ortho' assumed.
        pc = (p_r[:, 0, :P] + 1j * p_i[:, 0, :P]).reshape(NB, 1, H, W)
        k = jnp.fft.fft2(csm_c * pc, norm="ortho") * mask[:, None, :, :]
        y = jnp.fft.ifft2(k, norm="ortho").reshape(NB, NC, 1, P)
        yr = jnp.real(y).astype(jnp.float32)
        yi = jnp.imag(y).astype(jnp.float32)
        if Pp > P:
            pad = ((0, 0), (0, 0), (0, 0), (0, Pp - P))
            yr = jnp.pad(yr, pad)
            yi = jnp.pad(yi, pad)
        x_r, x_i, r_r, r_i, p_r, p_i, rtr_o = _cg_step_call(
            lam_vec, rtr, yr, yi, cr_f, ci_f, p_r, p_i, x_r, x_i, r_r, r_i, Pp=Pp)
        return x_r, x_i, r_r, r_i, p_r, p_i, rtr_o[:, 0, 0]

    carry = lax.fori_loop(0, num_iter, body,
                          (x_r, x_i, rhs_r, rhs_i, rhs_r, rhs_i, rtr0))
    return carry[0], carry[1]


# --------------------------------------------------------------------------------------
# Parameter packing + full ParallelNetwork forward (both branches stacked along batch)
# --------------------------------------------------------------------------------------
def _pack_dw_params(dw, C):
    """Pack per-layer conv weights into tap-stacked [L, C, 9C] bf16 + [L, C, 1] f32."""
    ws, bs = [], []
    for l in range(NUM_DW_CONVS):
        w = dw[f"w{l}"]                                    # (Cout, Cin, 3, 3)
        b = dw[f"b{l}"]                                    # (Cout,)
        co, ci = w.shape[0], w.shape[1]
        w9 = jnp.transpose(w, (0, 2, 3, 1)).reshape(co, 9, ci)     # [o, tap, i]
        w9 = jnp.pad(w9, ((0, C - co), (0, 0), (0, C - ci)))
        ws.append(w9.reshape(C, 9 * C))
        bs.append(jnp.pad(b, (0, C - co)).reshape(C, 1))
    w_all = jnp.stack(ws).astype(jnp.bfloat16)             # (L, C, 9C)
    b_all = jnp.stack(bs).astype(jnp.float32)              # (L, C, 1)
    return w_all, b_all


@functools.partial(jax.jit, static_argnames=("num_layers", "num_cg_iter"))
def parallel_network_forward(params_up, params_down, under_up, mask_up,
                             under_down, mask_down, csm, num_layers, num_cg_iter):
    B, _, H, W = under_up.shape
    NB = 2 * B
    NC = csm.shape[1]
    P = H * W
    Pp = ((P + 127) // 128) * 128

    chans = []
    for l in range(NUM_DW_CONVS):
        chans += [params_up["dw"][f"w{l}"].shape[0],
                  params_up["dw"][f"w{l}"].shape[1]]
    C = max(16, ((max(chans) + 15) // 16) * 16)            # padded channel count

    wu, bu = _pack_dw_params(params_up["dw"], C)
    wd, bd = _pack_dw_params(params_down["dw"], C)
    w_all = jnp.stack([wu, wd])                            # (2, L, C, 9C) bf16
    b_all = jnp.stack([bu, bd])                            # (2, L, C, 1)  f32
    lam2 = jnp.stack([jnp.reshape(params_up["lam"], ()),
                      jnp.reshape(params_down["lam"], ())]).astype(jnp.float32)
    lam_vec = jnp.repeat(lam2, B)                          # per stacked-batch element

    # conv border / pixel-tail masks in the lane-dense layout (loop-invariant)
    flat = jnp.arange(Pp, dtype=jnp.int32)
    col = flat % W
    conv_masks = jnp.stack([(col != 0).astype(jnp.float32),
                            (col != (W - 1)).astype(jnp.float32),
                            (flat < P).astype(jnp.float32)]).reshape(3, 1, Pp)

    def to_lane_layout(a):                                 # (NB, 2, H, W) -> (2, B, 2, Pp)
        a = a.reshape(NB, 2, P)
        if Pp > P:
            a = jnp.pad(a, ((0, 0), (0, 0), (0, Pp - P)))
        return a.reshape(2, B, 2, Pp)

    # stack the two independent MoDL branches along the batch axis
    under_nb = jnp.concatenate([under_up, under_down], 0).astype(jnp.float32)
    mask_nb = jnp.concatenate([mask_up, mask_down], 0).astype(jnp.float32)
    csm_c = jnp.concatenate([csm, csm], 0)                 # (NB, NC, H, W) complex64

    u_k = to_lane_layout(under_nb)                         # hoisted (loop invariant)
    cflat = csm_c.reshape(NB, NC, 1, P)
    cr_f = jnp.real(cflat).astype(jnp.float32)
    ci_f = jnp.imag(cflat).astype(jnp.float32)
    if Pp > P:
        cpad = ((0, 0), (0, 0), (0, 0), (0, Pp - P))
        cr_f = jnp.pad(cr_f, cpad)
        ci_f = jnp.pad(ci_f, cpad)

    x_k = u_k
    x_r = x_i = None
    for _ in range(num_layers):
        rhs = dw_residual(x_k, u_k, w_all, b_all, lam2, conv_masks,
                          W=W, C=C, Pp=Pp)                 # (2, B, 2, Pp)
        rhs = rhs.reshape(NB, 2, Pp)
        rhs_r = rhs[:, 0:1, :]                             # (NB, 1, Pp)
        rhs_i = rhs[:, 1:2, :]
        x_r, x_i = conj_grad(rhs_r, rhs_i, csm_c, cr_f, ci_f, mask_nb,
                             lam_vec, num_cg_iter, H=H, W=W, P=P, Pp=Pp)
        x_k = jnp.concatenate([x_r, x_i], axis=1).reshape(2, B, 2, Pp)

    out = jnp.concatenate([x_r, x_i], axis=1)[:, :, :P].reshape(NB, 2, H, W)
    return out[:B], out[B:]


# ------------------------------ params init ---------------------------------
def init_modl_params(key, in_ch, out_ch, hidden):
    ks = jax.random.split(key, 8)

    def conv_init(kw, kb, cout, cin):
        scale = 1.0 / jnp.sqrt(jnp.float32(cin * 9))
        w = jax.random.normal(kw, (cout, cin, 3, 3), jnp.float32) * scale
        b = jax.random.normal(kb, (cout,), jnp.float32) * 0.01
        return w, b

    w0, b0 = conv_init(ks[0], ks[1], hidden, in_ch)
    w1, b1 = conv_init(ks[2], ks[3], hidden, hidden)
    w2, b2 = conv_init(ks[4], ks[5], hidden, hidden)
    w3, b3 = conv_init(ks[6], ks[7], out_ch, hidden)
    return {
        "dw": {"w0": w0, "b0": b0, "w1": w1, "b1": b1,
               "w2": w2, "b2": b2, "w3": w3, "b3": b3},
        "lam": jnp.float32(0.05),   # nn.Parameter([0.05])
    }


# --------------------------------- main --------------------------------------
if __name__ == "__main__":
    B, NCOIL, H, W = 2, 4, 16, 16
    in_channels = out_channels = 2
    num_layers = 2
    num_cg_iter = 6
    hidden = 16

    key = jax.random.PRNGKey(0)
    k = jax.random.split(key, 6)
    under_image_up = jax.random.normal(k[0], (B, 2, H, W), jnp.float32)
    under_image_down = jax.random.normal(k[1], (B, 2, H, W), jnp.float32)
    mask_up = (jax.random.uniform(k[2], (B, H, W)) > 0.5).astype(jnp.float32)
    mask_down = (jax.random.uniform(k[3], (B, H, W)) > 0.5).astype(jnp.float32)
    csm = (jax.random.normal(k[4], (B, NCOIL, H, W), jnp.float32)
           + 1j * jax.random.normal(k[5], (B, NCOIL, H, W), jnp.float32)
           ).astype(jnp.complex64)
    csm = csm / (jnp.sqrt(jnp.sum(jnp.abs(csm) ** 2, axis=1, keepdims=True)) + 1e-6)

    params_up = init_modl_params(jax.random.PRNGKey(1), in_channels, out_channels, hidden)
    params_down = init_modl_params(jax.random.PRNGKey(2), in_channels, out_channels, hidden)

    out_up, out_down = parallel_network_forward(
        params_up, params_down, under_image_up, mask_up,
        under_image_down, mask_down, csm,
        num_layers=num_layers, num_cg_iter=num_cg_iter)
    jax.block_until_ready((out_up, out_down))

    assert out_up.shape == (B, 2, H, W) and out_down.shape == (B, 2, H, W)
    assert bool(jnp.all(jnp.isfinite(out_up))) and bool(jnp.all(jnp.isfinite(out_down)))
    print("KERNEL_OK")
</pallas_src>

<mosaic_0001>
module attributes {stable_mosaic.version = 11 : i64} {
  func.func @_dw_fused_kernel(%arg0: i32, %arg1: i32, %arg2: memref<2xf32, #tpu.memory_space<smem>>, %arg3: memref<1x1x2x256xf32, #tpu.memory_space<vmem>>, %arg4: memref<1x1x2x256xf32, #tpu.memory_space<vmem>>, %arg5: memref<1x4x16x144xbf16, #tpu.memory_space<vmem>>, %arg6: memref<1x4x16x1xf32, #tpu.memory_space<vmem>>, %arg7: memref<3x1x256xf32, #tpu.memory_space<vmem>>, %arg8: memref<1x1x2x256xf32, #tpu.memory_space<vmem>>, %arg9: memref<16x512xf32, #tpu.memory_space<vmem>>, %arg10: memref<144x256xbf16, #tpu.memory_space<vmem>>) attributes {dimension_semantics = [#tpu.dimension_semantics<parallel>, #tpu.dimension_semantics<parallel>], iteration_bounds = array<i64: 2, 2>, scalar_prefetch = 0 : i64, scratch_operands = 2 : i64, tpu.core_type = #tpu.core_type<tc>, window_params = [{transform_indices = @transform_0, window_bounds = array<i64: 2>}, {transform_indices = @transform_1, window_bounds = array<i64: 1, 1, 2, 256>}, {transform_indices = @transform_2, window_bounds = array<i64: 1, 1, 2, 256>}, {transform_indices = @transform_3, window_bounds = array<i64: 1, 4, 16, 144>}, {transform_indices = @transform_4, window_bounds = array<i64: 1, 4, 16, 1>}, {pipeline_mode = #tpu.pipeline_mode<synchronous>, transform_indices = @transform_5, window_bounds = array<i64: 3, 1, 256>}, {transform_indices = @transform_6, window_bounds = array<i64: 1, 1, 2, 256>}]} {
    %0 = arith.index_cast %arg0 : i32 to index
    %1 = memref.load %arg2[%0] : memref<2xf32, #tpu.memory_space<smem>>
    %c0 = arith.constant 0 : index
    %c0_0 = arith.constant 0 : index
    %c0_1 = arith.constant 0 : index
    %2 = vector.load %arg7[%c0, %c0_0, %c0_1] : memref<3x1x256xf32, #tpu.memory_space<vmem>>, vector<1x1x256xf32>
    %3 = vector.shape_cast %2 : vector<1x1x256xf32> to vector<1x256xf32>
    %c1 = arith.constant 1 : index
    %c0_2 = arith.constant 0 : index
    %c0_3 = arith.constant 0 : index
    %4 = vector.load %arg7[%c1, %c0_2, %c0_3] : memref<3x1x256xf32, #tpu.memory_space<vmem>>, vector<1x1x256xf32>
    %5 = vector.shape_cast %4 : vector<1x1x256xf32> to vector<1x256xf32>
    %c2 = arith.constant 2 : index
    %c0_4 = arith.constant 0 : index
    %c0_5 = arith.constant 0 : index
    %6 = vector.load %arg7[%c2, %c0_4, %c0_5] : memref<3x1x256xf32, #tpu.memory_space<vmem>>, vector<1x1x256xf32>
    %7 = vector.shape_cast %6 : vector<1x1x256xf32> to vector<1x256xf32>
    %cst = arith.constant 0.000000e+00 : f32
    %8 = vector.broadcast %cst : f32 to vector<16x512xf32>
    %c0_6 = arith.constant 0 : index
    %c0_7 = arith.constant 0 : index
    %9 = vector.load %arg9[%c0_6, %c0_7] : memref<16x512xf32, #tpu.memory_space<vmem>>, vector<16x512xf32>
    tpu.vector_store %arg9[%c0_6, %c0_7], %8 {strides = array<i32>} : memref<16x512xf32, #tpu.memory_space<vmem>>, vector<16x512xf32>,
    %c0_8 = arith.constant 0 : index
    %c0_9 = arith.constant 0 : index
    %c0_10 = arith.constant 0 : index
    %c0_11 = arith.constant 0 : index
    %10 = vector.load %arg3[%c0_8, %c0_9, %c0_10, %c0_11] : memref<1x1x2x256xf32, #tpu.memory_space<vmem>>, vector<1x1x2x256xf32>
    %11 = vector.shape_cast %10 : vector<1x1x2x256xf32> to vector<2x256xf32>
    %c0_12 = arith.constant 0 : index
    %c128 = arith.constant 128 : index
    %12 = vector.load %arg9[%c0_12, %c128] : memref<16x512xf32, #tpu.memory_space<vmem>>, vector<2x256xf32>
    tpu.vector_store %arg9[%c0_12, %c128], %11 {strides = array<i32>} : memref<16x512xf32, #tpu.memory_space<vmem>>, vector<2x256xf32>,
    %c0_13 = arith.constant 0 : index
    %c111 = arith.constant 111 : index
    %13 = vector.load %arg9[%c0_13, %c111] : memref<16x512xf32, #tpu.memory_space<vmem>>, vector<16x256xf32>
    %14 = vector.broadcast %3 : vector<1x256xf32> to vector<16x256xf32>
    %15 = arith.mulf %13, %14 : vector<16x256xf32>
    %16 = arith.truncf %15 : vector<16x256xf32> to vector<16x256xbf16>
    %c0_14 = arith.constant 0 : index
    %c0_15 = arith.constant 0 : index
    %17 = vector.load %arg10[%c0_14, %c0_15] : memref<144x256xbf16, #tpu.memory_space<vmem>>, vector<16x256xbf16>
    tpu.vector_store %arg10[%c0_14, %c0_15], %16 {strides = array<i32>} : memref<144x256xbf16, #tpu.memory_space<vmem>>, vector<16x256xbf16>,
    %c0_16 = arith.constant 0 : index
    %c112 = arith.constant 112 : index
    %18 = vector.load %arg9[%c0_16, %c112] : memref<16x512xf32, #tpu.memory_space<vmem>>, vector<16x256xf32>
    %19 = arith.truncf %18 : vector<16x256xf32> to vector<16x256xbf16>
    %c16 = arith.constant 16 : index
    %c0_17 = arith.constant 0 : index
    %20 = vector.load %arg10[%c16, %c0_17] : memref<144x256xbf16, #tpu.memory_space<vmem>>, vector<16x256xbf16>
    tpu.vector_store %arg10[%c16, %c0_17], %19 {strides = array<i32>} : memref<144x256xbf16, #tpu.memory_space<vmem>>, vector<16x256xbf16>,
    %c0_18 = arith.constant 0 : index
    %c113 = arith.constant 113 : index
    %21 = vector.load %arg9[%c0_18, %c113] : memref<16x512xf32, #tpu.memory_space<vmem>>, vector<16x256xf32>
    %22 = vector.broadcast %5 : vector<1x256xf32> to vector<16x256xf32>
    %23 = arith.mulf %21, %22 : vector<16x256xf32>
    %24 = arith.truncf %23 : vector<16x256xf32> to vector<16x256xbf16>
    %c32 = arith.constant 32 : index
    %c0_19 = arith.constant 0 : index
    %25 = vector.load %arg10[%c32, %c0_19] : memref<144x256xbf16, #tpu.memory_space<vmem>>, vector<16x256xbf16>
    tpu.vector_store %arg10[%c32, %c0_19], %24 {strides = array<i32>} : memref<144x256xbf16, #tpu.memory_space<vmem>>, vector<16x256xbf16>,
    %c0_20 = arith.constant 0 : index
    %c127 = arith.constant 127 : index
    %26 = vector.load %arg9[%c0_20, %c127] : memref<16x512xf32, #tpu.memory_space<vmem>>, vector<16x256xf32>
    %27 = vector.broadcast %3 : vector<1x256xf32> to vector<16x256xf32>
    %28 = arith.mulf %26, %27 : vector<16x256xf32>
    %29 = arith.truncf %28 : vector<16x256xf32> to vector<16x256xbf16>
    %c48 = arith.constant 48 : index
    %c0_21 = arith.constant 0 : index
    %30 = vector.load %arg10[%c48, %c0_21] : memref<144x256xbf16, #tpu.memory_space<vmem>>, vector<16x256xbf16>
    tpu.vector_store %arg10[%c48, %c0_21], %29 {strides = array<i32>} : memref<144x256xbf16, #tpu.memory_space<vmem>>, vector<16x256xbf16>,
    %c0_22 = arith.constant 0 : index
    %c128_23 = arith.constant 128 : index
    %31 = vector.load %arg9[%c0_22, %c128_23] : memref<16x512xf32, #tpu.memory_space<vmem>>, vector<16x256xf32>
    %32 = arith.truncf %31 : vector<16x256xf32> to vector<16x256xbf16>
    %c64 = arith.constant 64 : index
    %c0_24 = arith.constant 0 : index
    %33 = vector.load %arg10[%c64, %c0_24] : memref<144x256xbf16, #tpu.memory_space<vmem>>, vector<16x256xbf16>
    tpu.vector_store %arg10[%c64, %c0_24], %32 {strides = array<i32>} : memref<144x256xbf16, #tpu.memory_space<vmem>>, vector<16x256xbf16>,
    %c0_25 = arith.constant 0 : index
    %c129 = arith.constant 129 : index
    %34 = vector.load %arg9[%c0_25, %c129] : memref<16x512xf32, #tpu.memory_space<vmem>>, vector<16x256xf32>
    %35 = vector.broadcast %5 : vector<1x256xf32> to vector<16x256xf32>
    %36 = arith.mulf %34, %35 : vector<16x256xf32>
    %37 = arith.truncf %36 : vector<16x256xf32> to vector<16x256xbf16>
    %c80 = arith.constant 80 : index
    %c0_26 = arith.constant 0 : index
    %38 = vector.load %arg10[%c80, %c0_26] : memref<144x256xbf16, #tpu.memory_space<vmem>>, vector<16x256xbf16>
    tpu.vector_store %arg10[%c80, %c0_26], %37 {strides = array<i32>} : memref<144x256xbf16, #tpu.memory_space<vmem>>, vector<16x256xbf16>,
    %c0_27 = arith.constant 0 : index
    %c143 = arith.constant 143 : index
    %39 = vector.load %arg9[%c0_27, %c143] : memref<16x512xf32, #tpu.memory_space<vmem>>, vector<16x256xf32>
    %40 = vector.broadcast %3 : vector<1x256xf32> to vector<16x256xf32>
    %41 = arith.mulf %39, %40 : vector<16x256xf32>
    %42 = arith.truncf %41 : vector<16x256xf32> to vector<16x256xbf16>
    %c96 = arith.constant 96 : index
    %c0_28 = arith.constant 0 : index
    %43 = vector.load %arg10[%c96, %c0_28] : memref<144x256xbf16, #tpu.memory_space<vmem>>, vector<16x256xbf16>
    tpu.vector_store %arg10[%c96, %c0_28], %42 {strides = array<i32>} : memref<144x256xbf16, #tpu.memory_space<vmem>>, vector<16x256xbf16>,
    %c0_29 = arith.constant 0 : index
    %c144 = arith.constant 144 : index
    %44 = vector.load %arg9[%c0_29, %c144] : memref<16x512xf32, #tpu.memory_space<vmem>>, vector<16x256xf32>
    %45 = arith.truncf %44 : vector<16x256xf32> to vector<16x256xbf16>
    %c112_30 = arith.constant 112 : index
    %c0_31 = arith.constant 0 : index
    %46 = vector.load %arg10[%c112_30, %c0_31] : memref<144x256xbf16, #tpu.memory_space<vmem>>, vector<16x256xbf16>
    tpu.vector_store %arg10[%c112_30, %c0_31], %45 {strides = array<i32>} : memref<144x256xbf16, #tpu.memory_space<vmem>>, vector<16x256xbf16>,
    %c0_32 = arith.constant 0 : index
    %c145 = arith.constant 145 : index
    %47 = vector.load %arg9[%c0_32, %c145] : memref<16x512xf32, #tpu.memory_space<vmem>>, vector<16x256xf32>
    %48 = vector.broadcast %5 : vector<1x256xf32> to vector<16x256xf32>
    %49 = arith.mulf %47, %48 : vector<16x256xf32>
    %50 = arith.truncf %49 : vector<16x256xf32> to vector<16x256xbf16>
    %c128_33 = arith.constant 128 : index
    %c0_34 = arith.constant 0 : index
    %51 = vector.load %arg10[%c128_33, %c0_34] : memref<144x256xbf16, #tpu.memory_space<vmem>>, vector<16x256xbf16>
    tpu.vector_store %arg10[%c128_33, %c0_34], %50 {strides = array<i32>} : memref<144x256xbf16, #tpu.memory_space<vmem>>, vector<16x256xbf16>,
    %c0_35 = arith.constant 0 : index
    %c0_36 = arith.constant 0 : index
    %c0_37 = arith.constant 0 : index
    %c0_38 = arith.constant 0 : index
    %52 = vector.load %arg5[%c0_35, %c0_36, %c0_37, %c0_38] : memref<1x4x16x144xbf16, #tpu.memory_space<vmem>>, vector<1x1x16x144xbf16>
    %53 = vector.shape_cast %52 : vector<1x1x16x144xbf16> to vector<16x144xbf16>
    %c0_39 = arith.constant 0 : index
    %c0_40 = arith.constant 0 : index
    %54 = vector.load %arg10[%c0_39, %c0_40] : memref<144x256xbf16, #tpu.memory_space<vmem>>, vector<144x256xbf16>
    %cst_41 = arith.constant dense<0.000000e+00> : vector<16x256xf32>
    %55 = tpu.matmul %53, %54, %cst_41 {dimension_numbers = #tpu.dot_dimension_numbers<[1], [0], [0], [1], [0, 0, 1, 1], [], []>} : vector<16x144xbf16>, vector<144x256xbf16>, vector<16x256xf32> -> vector<16x256xf32>
    %c0_42 = arith.constant 0 : index
    %c0_43 = arith.constant 0 : index
    %c0_44 = arith.constant 0 : index
    %c0_45 = arith.constant 0 : index
    %56 = vector.load %arg6[%c0_42, %c0_43, %c0_44, %c0_45] : memref<1x4x16x1xf32, #tpu.memory_space<vmem>>, vector<1x1x16x1xf32>
    %57 = vector.shape_cast %56 : vector<1x1x16x1xf32> to vector<16x1xf32>
    %58 = vector.broadcast %57 : vector<16x1xf32> to vector<16x256xf32>
    %59 = arith.addf %55, %58 : vector<16x256xf32>
    %cst_46 = arith.constant 0.000000e+00 : f32
    %60 = vector.broadcast %cst_46 : f32 to vector<16x256xf32>
    %61 = arith.maximumf %59, %60 : vector<16x256xf32>
    %62 = vector.broadcast %7 : vector<1x256xf32> to vector<16x256xf32>
    %63 = arith.mulf %61, %62 : vector<16x256xf32>
    %c0_47 = arith.constant 0 : index
    %c128_48 = arith.constant 128 : index
    %64 = vector.load %arg9[%c0_47, %c128_48] : memref<16x512xf32, #tpu.memory_space<vmem>>, vector<16x256xf32>
    tpu.vector_store %arg9[%c0_47, %c128_48], %63 {strides = array<i32>} : memref<16x512xf32, #tpu.memory_space<vmem>>, vector<16x256xf32>,
    %c0_49 = arith.constant 0 : index
    %c111_50 = arith.constant 111 : index
    %65 = vector.load %arg9[%c0_49, %c111_50] : memref<16x512xf32, #tpu.memory_space<vmem>>, vector<16x256xf32>
    %66 = vector.broadcast %3 : vector<1x256xf32> to vector<16x256xf32>
    %67 = arith.mulf %65, %66 : vector<16x256xf32>
    %68 = arith.truncf %67 : vector<16x256xf32> to vector<16x256xbf16>
    %c0_51 = arith.constant 0 : index
    %c0_52 = arith.constant 0 : index
    %69 = vector.load %arg10[%c0_51, %c0_52] : memref<144x256xbf16, #tpu.memory_space<vmem>>, vector<16x256xbf16>
    tpu.vector_store %arg10[%c0_51, %c0_52], %68 {strides = array<i32>} : memref<144x256xbf16, #tpu.memory_space<vmem>>, vector<16x256xbf16>,
    %c0_53 = arith.constant 0 : index
    %c112_54 = arith.constant 112 : index
    %70 = vector.load %arg9[%c0_53, %c112_54] : memref<16x512xf32, #tpu.memory_space<vmem>>, vector<16x256xf32>
    %71 = arith.truncf %70 : vector<16x256xf32> to vector<16x256xbf16>
    %c16_55 = arith.constant 16 : index
    %c0_56 = arith.constant 0 : index
    %72 = vector.load %arg10[%c16_55, %c0_56] : memref<144x256xbf16, #tpu.memory_space<vmem>>, vector<16x256xbf16>
    tpu.vector_store %arg10[%c16_55, %c0_56], %71 {strides = array<i32>} : memref<144x256xbf16, #tpu.memory_space<vmem>>, vector<16x256xbf16>,
    %c0_57 = arith.constant 0 : index
    %c113_58 = arith.constant 113 : index
    %73 = vector.load %arg9[%c0_57, %c113_58] : memref<16x512xf32, #tpu.memory_space<vmem>>, vector<16x256xf32>
    %74 = vector.broadcast %5 : vector<1x256xf32> to vector<16x256xf32>
    %75 = arith.mulf %73, %74 : vector<16x256xf32>
    %76 = arith.truncf %75 : vector<16x256xf32> to vector<16x256xbf16>
    %c32_59 = arith.constant 32 : index
    %c0_60 = arith.constant 0 : index
    %77 = vector.load %arg10[%c32_59, %c0_60] : memref<144x256xbf16, #tpu.memory_space<vmem>>, vector<16x256xbf16>
    tpu.vector_store %arg10[%c32_59, %c0_60], %76 {strides = array<i32>} : memref<144x256xbf16, #tpu.memory_space<vmem>>, vector<16x256xbf16>,
    %c0_61 = arith.constant 0 : index
    %c127_62 = arith.constant 127 : index
    %78 = vector.load %arg9[%c0_61, %c127_62] : memref<16x512xf32, #tpu.memory_space<vmem>>, vector<16x256xf32>
    %79 = vector.broadcast %3 : vector<1x256xf32> to vector<16x256xf32>
    %80 = arith.mulf %78, %79 : vector<16x256xf32>
    %81 = arith.truncf %80 : vector<16x256xf32> to vector<16x256xbf16>
    %c48_63 = arith.constant 48 : index
    %c0_64 = arith.constant 0 : index
    %82 = vector.load %arg10[%c48_63, %c0_64] : memref<144x256xbf16, #tpu.memory_space<vmem>>, vector<16x256xbf16>
    tpu.vector_store %arg10[%c48_63, %c0_64], %81 {strides = array<i32>} : memref<144x256xbf16, #tpu.memory_space<vmem>>, vector<16x256xbf16>,
    %c0_65 = arith.constant 0 : index
    %c128_66 = arith.constant 128 : index
    %83 = vector.load %arg9[%c0_65, %c128_66] : memref<16x512xf32, #tpu.memory_space<vmem>>, vector<16x256xf32>
    %84 = arith.truncf %83 : vector<16x256xf32> to vector<16x256xbf16>
    %c64_67 = arith.constant 64 : index
    %c0_68 = arith.constant 0 : index
    %85 = vector.load %arg10[%c64_67, %c0_68] : memref<144x256xbf16, #tpu.memory_space<vmem>>, vector<16x256xbf16>
    tpu.vector_store %arg10[%c64_67, %c0_68], %84 {strides = array<i32>} : memref<144x256xbf16, #tpu.memory_space<vmem>>, vector<16x256xbf16>,
    %c0_69 = arith.constant 0 : index
    %c129_70 = arith.constant 129 : index
    %86 = vector.load %arg9[%c0_69, %c129_70] : memref<16x512xf32, #tpu.memory_space<vmem>>, vector<16x256xf32>
    %87 = vector.broadcast %5 : vector<1x256xf32> to vector<16x256xf32>
    %88 = arith.mulf %86, %87 : vector<16x256xf32>
    %89 = arith.truncf %88 : vector<16x256xf32> to vector<16x256xbf16>
    %c80_71 = arith.constant 80 : index
    %c0_72 = arith.constant 0 : index
    %90 = vector.load %arg10[%c80_71, %c0_72] : memref<144x256xbf16, #tpu.memory_space<vmem>>, vector<16x256xbf16>
    tpu.vector_store %arg10[%c80_71, %c0_72], %89 {strides = array<i32>} : memref<144x256xbf16, #tpu.memory_space<vmem>>, vector<16x256xbf16>,
    %c0_73 = arith.constant 0 : index
    %c143_74 = arith.constant 143 : index
    %91 = vector.load %arg9[%c0_73, %c143_74] : memref<16x512xf32, #tpu.memory_space<vmem>>, vector<16x256xf32>
    %92 = vector.broadcast %3 : vector<1x256xf32> to vector<16x256xf32>
    %93 = arith.mulf %91, %92 : vector<16x256xf32>
    %94 = arith.truncf %93 : vector<16x256xf32> to vector<16x256xbf16>
    %c96_75 = arith.constant 96 : index
    %c0_76 = arith.constant 0 : index
    %95 = vector.load %arg10[%c96_75, %c0_76] : memref<144x256xbf16, #tpu.memory_space<vmem>>, vector<16x256xbf16>
    tpu.vector_store %arg10[%c96_75, %c0_76], %94 {strides = array<i32>} : memref<144x256xbf16, #tpu.memory_space<vmem>>, vector<16x256xbf16>,
    %c0_77 = arith.constant 0 : index
    %c144_78 = arith.constant 144 : index
    %96 = vector.load %arg9[%c0_77, %c144_78] : memref<16x512xf32, #tpu.memory_space<vmem>>, vector<16x256xf32>
    %97 = arith.truncf %96 : vector<16x256xf32> to vector<16x256xbf16>
    %c112_79 = arith.constant 112 : index
    %c0_80 = arith.constant 0 : index
    %98 = vector.load %arg10[%c112_79, %c0_80] : memref<144x256xbf16, #tpu.memory_space<vmem>>, vector<16x256xbf16>
    tpu.vector_store %arg10[%c112_79, %c0_80], %97 {strides = array<i32>} : memref<144x256xbf16, #tpu.memory_space<vmem>>, vector<16x256xbf16>,
    %c0_81 = arith.constant 0 : index
    %c145_82 = arith.constant 145 : index
    %99 = vector.load %arg9[%c0_81, %c145_82] : memref<16x512xf32, #tpu.memory_space<vmem>>, vector<16x256xf32>
    %100 = vector.broadcast %5 : vector<1x256xf32> to vector<16x256xf32>
    %101 = arith.mulf %99, %100 : vector<16x256xf32>
    %102 = arith.truncf %101 : vector<16x256xf32> to vector<16x256xbf16>
    %c128_83 = arith.constant 128 : index
    %c0_84 = arith.constant 0 : index
    %103 = vector.load %arg10[%c128_83, %c0_84] : memref<144x256xbf16, #tpu.memory_space<vmem>>, vector<16x256xbf16>
    tpu.vector_store %arg10[%c128_83, %c0_84], %102 {strides = array<i32>} : memref<144x256xbf16, #tpu.memory_space<vmem>>, vector<16x256xbf16>,
    %c0_85 = arith.constant 0 : index
    %c1_86 = arith.constant 1 : index
    %c0_87 = arith.constant 0 : index
    %c0_88 = arith.constant 0 : index
    %104 = vector.load %arg5[%c0_85, %c1_86, %c0_87, %c0_88] : memref<1x4x16x144xbf16, #tpu.memory_space<vmem>>, vector<1x1x16x144xbf16>
    %105 = vector.shape_cast %104 : vector<1x1x16x144xbf16> to vector<16x144xbf16>
    %c0_89 = arith.constant 0 : index
    %c0_90 = arith.constant 0 : index
    %106 = vector.load %arg10[%c0_89, %c0_90] : memref<144x256xbf16, #tpu.memory_space<vmem>>, vector<144x256xbf16>
    %cst_91 = arith.constant dense<0.000000e+00> : vector<16x256xf32>
    %107 = tpu.matmul %105, %106, %cst_91 {dimension_numbers = #tpu.dot_dimension_numbers<[1], [0], [0], [1], [0, 0, 1, 1], [], []>} : vector<16x144xbf16>, vector<144x256xbf16>, vector<16x256xf32> -> vector<16x256xf32>
    %c0_92 = arith.constant 0 : index
    %c1_93 = arith.constant 1 : index
    %c0_94 = arith.constant 0 : index
    %c0_95 = arith.constant 0 : index
    %108 = vector.load %arg6[%c0_92, %c1_93, %c0_94, %c0_95] : memref<1x4x16x1xf32, #tpu.memory_space<vmem>>, vector<1x1x16x1xf32>
    %109 = vector.shape_cast %108 : vector<1x1x16x1xf32> to vector<16x1xf32>
    %110 = vector.broadcast %109 : vector<16x1xf32> to vector<16x256xf32>
    %111 = arith.addf %107, %110 : vector<16x256xf32>
    %cst_96 = arith.constant 0.000000e+00 : f32
    %112 = vector.broadcast %cst_96 : f32 to vector<16x256xf32>
    %113 = arith.maximumf %111, %112 : vector<16x256xf32>
    %114 = vector.broadcast %7 : vector<1x256xf32> to vector<16x256xf32>
    %115 = arith.mulf %113, %114 : vector<16x256xf32>
    %c0_97 = arith.constant 0 : index
    %c128_98 = arith.constant 128 : index
    %116 = vector.load %arg9[%c0_97, %c128_98] : memref<16x512xf32, #tpu.memory_space<vmem>>, vector<16x256xf32>
    tpu.vector_store %arg9[%c0_97, %c128_98], %115 {strides = array<i32>} : memref<16x512xf32, #tpu.memory_space<vmem>>, vector<16x256xf32>,
    %c0_99 = arith.constant 0 : index
    %c111_100 = arith.constant 111 : index
    %117 = vector.load %arg9[%c0_99, %c111_100] : memref<16x512xf32, #tpu.memory_space<vmem>>, vector<16x256xf32>
    %118 = vector.broadcast %3 : vector<1x256xf32> to vector<16x256xf32>
    %119 = arith.mulf %117, %118 : vector<16x256xf32>
    %120 = arith.truncf %119 : vector<16x256xf32> to vector<16x256xbf16>
    %c0_101 = arith.constant 0 : index
    %c0_102 = arith.constant 0 : index
    %121 = vector.load %arg10[%c0_101, %c0_102] : memref<144x256xbf16, #tpu.memory_space<vmem>>, vector<16x256xbf16>
    tpu.vector_store %arg10[%c0_101, %c0_102], %120 {strides = array<i32>} : memref<144x256xbf16, #tpu.memory_space<vmem>>, vector<16x256xbf16>,
    %c0_103 = arith.constant 0 : index
    %c112_104 = arith.constant 112 : index
    %122 = vector.load %arg9[%c0_103, %c112_104] : memref<16x512xf32, #tpu.memory_space<vmem>>, vector<16x256xf32>
    %123 = arith.truncf %122 : vector<16x256xf32> to vector<16x256xbf16>
    %c16_105 = arith.constant 16 : index
    %c0_106 = arith.constant 0 : index
    %124 = vector.load %arg10[%c16_105, %c0_106] : memref<144x256xbf16, #tpu.memory_space<vmem>>, vector<16x256xbf16>
    tpu.vector_store %arg10[%c16_105, %c0_106], %123 {strides = array<i32>} : memref<144x256xbf16, #tpu.memory_space<vmem>>, vector<16x256xbf16>,
    %c0_107 = arith.constant 0 : index
    %c113_108 = arith.constant 113 : index
    %125 = vector.load %arg9[%c0_107, %c113_108] : memref<16x512xf32, #tpu.memory_space<vmem>>, vector<16x256xf32>
    %126 = vector.broadcast %5 : vector<1x256xf32> to vector<16x256xf32>
    %127 = arith.mulf %125, %126 : vector<16x256xf32>
    %128 = arith.truncf %127 : vector<16x256xf32> to vector<16x256xbf16>
    %c32_109 = arith.constant 32 : index
    %c0_110 = arith.constant 0 : index
    %129 = vector.load %arg10[%c32_109, %c0_110] : memref<144x256xbf16, #tpu.memory_space<vmem>>, vector<16x256xbf16>
    tpu.vector_store %arg10[%c32_109, %c0_110], %128 {strides = array<i32>} : memref<144x256xbf16, #tpu.memory_space<vmem>>, vector<16x256xbf16>,
    %c0_111 = arith.constant 0 : index
    %c127_112 = arith.constant 127 : index
    %130 = vector.load %arg9[%c0_111, %c127_112] : memref<16x512xf32, #tpu.memory_space<vmem>>, vector<16x256xf32>
    %131 = vector.broadcast %3 : vector<1x256xf32> to vector<16x256xf32>
    %132 = arith.mulf %130, %131 : vector<16x256xf32>
    %133 = arith.truncf %132 : vector<16x256xf32> to vector<16x256xbf16>
    %c48_113 = arith.constant 48 : index
    %c0_114 = arith.constant 0 : index
    %134 = vector.load %arg10[%c48_113, %c0_114] : memref<144x256xbf16, #tpu.memory_space<vmem>>, vector<16x256xbf16>
    tpu.vector_store %arg10[%c48_113, %c0_114], %133 {strides = array<i32>} : memref<144x256xbf16, #tpu.memory_space<vmem>>, vector<16x256xbf16>,
    %c0_115 = arith.constant 0 : index
    %c128_116 = arith.constant 128 : index
    %135 = vector.load %arg9[%c0_115, %c128_116] : memref<16x512xf32, #tpu.memory_space<vmem>>, vector<16x256xf32>
    %136 = arith.truncf %135 : vector<16x256xf32> to vector<16x256xbf16>
    %c64_117 = arith.constant 64 : index
    %c0_118 = arith.constant 0 : index
    %137 = vector.load %arg10[%c64_117, %c0_118] : memref<144x256xbf16, #tpu.memory_space<vmem>>, vector<16x256xbf16>
    tpu.vector_store %arg10[%c64_117, %c0_118], %136 {strides = array<i32>} : memref<144x256xbf16, #tpu.memory_space<vmem>>, vector<16x256xbf16>,
    %c0_119 = arith.constant 0 : index
    %c129_120 = arith.constant 129 : index
    %138 = vector.load %arg9[%c0_119, %c129_120] : memref<16x512xf32, #tpu.memory_space<vmem>>, vector<16x256xf32>
    %139 = vector.broadcast %5 : vector<1x256xf32> to vector<16x256xf32>
    %140 = arith.mulf %138, %139 : vector<16x256xf32>
    %141 = arith.truncf %140 : vector<16x256xf32> to vector<16x256xbf16>
    %c80_121 = arith.constant 80 : index
    %c0_122 = arith.constant 0 : index
    %142 = vector.load %arg10[%c80_121, %c0_122] : memref<144x256xbf16, #tpu.memory_space<vmem>>, vector<16x256xbf16>
    tpu.vector_store %arg10[%c80_121, %c0_122], %141 {strides = array<i32>} : memref<144x256xbf16, #tpu.memory_space<vmem>>, vector<16x256xbf16>,
    %c0_123 = arith.constant 0 : index
    %c143_124 = arith.constant 143 : index
    %143 = vector.load %arg9[%c0_123, %c143_124] : memref<16x512xf32, #tpu.memory_space<vmem>>, vector<16x256xf32>
    %144 = vector.broadcast %3 : vector<1x256xf32> to vector<16x256xf32>
    %145 = arith.mulf %143, %144 : vector<16x256xf32>
    %146 = arith.truncf %145 : vector<16x256xf32> to vector<16x256xbf16>
    %c96_125 = arith.constant 96 : index
    %c0_126 = arith.constant 0 : index
    %147 = vector.load %arg10[%c96_125, %c0_126] : memref<144x256xbf16, #tpu.memory_space<vmem>>, vector<16x256xbf16>
    tpu.vector_store %arg10[%c96_125, %c0_126], %146 {strides = array<i32>} : memref<144x256xbf16, #tpu.memory_space<vmem>>, vector<16x256xbf16>,
    %c0_127 = arith.constant 0 : index
    %c144_128 = arith.constant 144 : index
    %148 = vector.load %arg9[%c0_127, %c144_128] : memref<16x512xf32, #tpu.memory_space<vmem>>, vector<16x256xf32>
    %149 = arith.truncf %148 : vector<16x256xf32> to vector<16x256xbf16>
    %c112_129 = arith.constant 112 : index
    %c0_130 = arith.constant 0 : index
    %150 = vector.load %arg10[%c112_129, %c0_130] : memref<144x256xbf16, #tpu.memory_space<vmem>>, vector<16x256xbf16>
    tpu.vector_store %arg10[%c112_129, %c0_130], %149 {strides = array<i32>} : memref<144x256xbf16, #tpu.memory_space<vmem>>, vector<16x256xbf16>,
    %c0_131 = arith.constant 0 : index
    %c145_132 = arith.constant 145 : index
    %151 = vector.load %arg9[%c0_131, %c145_132] : memref<16x512xf32, #tpu.memory_space<vmem>>, vector<16x256xf32>
    %152 = vector.broadcast %5 : vector<1x256xf32> to vector<16x256xf32>
    %153 = arith.mulf %151, %152 : vector<16x256xf32>
    %154 = arith.truncf %153 : vector<16x256xf32> to vector<16x256xbf16>
    %c128_133 = arith.constant 128 : index
    %c0_134 = arith.constant 0 : index
    %155 = vector.load %arg10[%c128_133, %c0_134] : memref<144x256xbf16, #tpu.memory_space<vmem>>, vector<16x256xbf16>
    tpu.vector_store %arg10[%c128_133, %c0_134], %154 {strides = array<i32>} : memref<144x256xbf16, #tpu.memory_space<vmem>>, vector<16x256xbf16>,
    %c0_135 = arith.constant 0 : index
    %c2_136 = arith.constant 2 : index
    %c0_137 = arith.constant 0 : index
    %c0_138 = arith.constant 0 : index
    %156 = vector.load %arg5[%c0_135, %c2_136, %c0_137, %c0_138] : memref<1x4x16x144xbf16, #tpu.memory_space<vmem>>, vector<1x1x16x144xbf16>
    %157 = vector.shape_cast %156 : vector<1x1x16x144xbf16> to vector<16x144xbf16>
    %c0_139 = arith.constant 0 : index
    %c0_140 = arith.constant 0 : index
    %158 = vector.load %arg10[%c0_139, %c0_140] : memref<144x256xbf16, #tpu.memory_space<vmem>>, vector<144x256xbf16>
    %cst_141 = arith.constant dense<0.000000e+00> : vector<16x256xf32>
    %159 = tpu.matmul %157, %158, %cst_141 {dimension_numbers = #tpu.dot_dimension_numbers<[1], [0], [0], [1], [0, 0, 1, 1], [], []>} : vector<16x144xbf16>, vector<144x256xbf16>, vector<16x256xf32> -> vector<16x256xf32>
    %c0_142 = arith.constant 0 : index
    %c2_143 = arith.constant 2 : index
    %c0_144 = arith.constant 0 : index
    %c0_145 = arith.constant 0 : index
    %160 = vector.load %arg6[%c0_142, %c2_143, %c0_144, %c0_145] : memref<1x4x16x1xf32, #tpu.memory_space<vmem>>, vector<1x1x16x1xf32>
    %161 = vector.shape_cast %160 : vector<1x1x16x1xf32> to vector<16x1xf32>
    %162 = vector.broadcast %161 : vector<16x1xf32> to vector<16x256xf32>
    %163 = arith.addf %159, %162 : vector<16x256xf32>
    %cst_146 = arith.constant 0.000000e+00 : f32
    %164 = vector.broadcast %cst_146 : f32 to vector<16x256xf32>
    %165 = arith.maximumf %163, %164 : vector<16x256xf32>
    %166 = vector.broadcast %7 : vector<1x256xf32> to vector<16x256xf32>
    %167 = arith.mulf %165, %166 : vector<16x256xf32>
    %c0_147 = arith.constant 0 : index
    %c128_148 = arith.constant 128 : index
    %168 = vector.load %arg9[%c0_147, %c128_148] : memref<16x512xf32, #tpu.memory_space<vmem>>, vector<16x256xf32>
    tpu.vector_store %arg9[%c0_147, %c128_148], %167 {strides = array<i32>} : memref<16x512xf32, #tpu.memory_space<vmem>>, vector<16x256xf32>,
    %c0_149 = arith.constant 0 : index
    %c111_150 = arith.constant 111 : index
    %169 = vector.load %arg9[%c0_149, %c111_150] : memref<16x512xf32, #tpu.memory_space<vmem>>, vector<16x256xf32>
    %170 = vector.broadcast %3 : vector<1x256xf32> to vector<16x256xf32>
    %171 = arith.mulf %169, %170 : vector<16x256xf32>
    %172 = arith.truncf %171 : vector<16x256xf32> to vector<16x256xbf16>
    %c0_151 = arith.constant 0 : index
    %c0_152 = arith.constant 0 : index
    %173 = vector.load %arg10[%c0_151, %c0_152] : memref<144x256xbf16, #tpu.memory_space<vmem>>, vector<16x256xbf16>
    tpu.vector_store %arg10[%c0_151, %c0_152], %172 {strides = array<i32>} : memref<144x256xbf16, #tpu.memory_space<vmem>>, vector<16x256xbf16>,
    %c0_153 = arith.constant 0 : index
    %c112_154 = arith.constant 112 : index
    %174 = vector.load %arg9[%c0_153, %c112_154] : memref<16x512xf32, #tpu.memory_space<vmem>>, vector<16x256xf32>
    %175 = arith.truncf %174 : vector<16x256xf32> to vector<16x256xbf16>
    %c16_155 = arith.constant 16 : index
    %c0_156 = arith.constant 0 : index
    %176 = vector.load %arg10[%c16_155, %c0_156] : memref<144x256xbf16, #tpu.memory_space<vmem>>, vector<16x256xbf16>
    tpu.vector_store %arg10[%c16_155, %c0_156], %175 {strides = array<i32>} : memref<144x256xbf16, #tpu.memory_space<vmem>>, vector<16x256xbf16>,
    %c0_157 = arith.constant 0 : index
    %c113_158 = arith.constant 113 : index
    %177 = vector.load %arg9[%c0_157, %c113_158] : memref<16x512xf32, #tpu.memory_space<vmem>>, vector<16x256xf32>
    %178 = vector.broadcast %5 : vector<1x256xf32> to vector<16x256xf32>
    %179 = arith.mulf %177, %178 : vector<16x256xf32>
    %180 = arith.truncf %179 : vector<16x256xf32> to vector<16x256xbf16>
    %c32_159 = arith.constant 32 : index
    %c0_160 = arith.constant 0 : index
    %181 = vector.load %arg10[%c32_159, %c0_160] : memref<144x256xbf16, #tpu.memory_space<vmem>>, vector<16x256xbf16>
    tpu.vector_store %arg10[%c32_159, %c0_160], %180 {strides = array<i32>} : memref<144x256xbf16, #tpu.memory_space<vmem>>, vector<16x256xbf16>,
    %c0_161 = arith.constant 0 : index
    %c127_162 = arith.constant 127 : index
    %182 = vector.load %arg9[%c0_161, %c127_162] : memref<16x512xf32, #tpu.memory_space<vmem>>, vector<16x256xf32>
    %183 = vector.broadcast %3 : vector<1x256xf32> to vector<16x256xf32>
    %184 = arith.mulf %182, %183 : vector<16x256xf32>
    %185 = arith.truncf %184 : vector<16x256xf32> to vector<16x256xbf16>
    %c48_163 = arith.constant 48 : index
    %c0_164 = arith.constant 0 : index
    %186 = vector.load %arg10[%c48_163, %c0_164] : memref<144x256xbf16, #tpu.memory_space<vmem>>, vector<16x256xbf16>
    tpu.vector_store %arg10[%c48_163, %c0_164], %185 {strides = array<i32>} : memref<144x256xbf16, #tpu.memory_space<vmem>>, vector<16x256xbf16>,
    %c0_165 = arith.constant 0 : index
    %c128_166 = arith.constant 128 : index
    %187 = vector.load %arg9[%c0_165, %c128_166] : memref<16x512xf32, #tpu.memory_space<vmem>>, vector<16x256xf32>
    %188 = arith.truncf %187 : vector<16x256xf32> to vector<16x256xbf16>
    %c64_167 = arith.constant 64 : index
    %c0_168 = arith.constant 0 : index
    %189 = vector.load %arg10[%c64_167, %c0_168] : memref<144x256xbf16, #tpu.memory_space<vmem>>, vector<16x256xbf16>
    tpu.vector_store %arg10[%c64_167, %c0_168], %188 {strides = array<i32>} : memref<144x256xbf16, #tpu.memory_space<vmem>>, vector<16x256xbf16>,
    %c0_169 = arith.constant 0 : index
    %c129_170 = arith.constant 129 : index
    %190 = vector.load %arg9[%c0_169, %c129_170] : memref<16x512xf32, #tpu.memory_space<vmem>>, vector<16x256xf32>
    %191 = vector.broadcast %5 : vector<1x256xf32> to vector<16x256xf32>
    %192 = arith.mulf %190, %191 : vector<16x256xf32>
    %193 = arith.truncf %192 : vector<16x256xf32> to vector<16x256xbf16>
    %c80_171 = arith.constant 80 : index
    %c0_172 = arith.constant 0 : index
    %194 = vector.load %arg10[%c80_171, %c0_172] : memref<144x256xbf16, #tpu.memory_space<vmem>>, vector<16x256xbf16>
    tpu.vector_store %arg10[%c80_171, %c0_172], %193 {strides = array<i32>} : memref<144x256xbf16, #tpu.memory_space<vmem>>, vector<16x256xbf16>,
    %c0_173 = arith.constant 0 : index
    %c143_174 = arith.constant 143 : index
    %195 = vector.load %arg9[%c0_173, %c143_174] : memref<16x512xf32, #tpu.memory_space<vmem>>, vector<16x256xf32>
    %196 = vector.broadcast %3 : vector<1x256xf32> to vector<16x256xf32>
    %197 = arith.mulf %195, %196 : vector<16x256xf32>
    %198 = arith.truncf %197 : vector<16x256xf32> to vector<16x256xbf16>
    %c96_175 = arith.constant 96 : index
    %c0_176 = arith.constant 0 : index
    %199 = vector.load %arg10[%c96_175, %c0_176] : memref<144x256xbf16, #tpu.memory_space<vmem>>, vector<16x256xbf16>
    tpu.vector_store %arg10[%c96_175, %c0_176], %198 {strides = array<i32>} : memref<144x256xbf16, #tpu.memory_space<vmem>>, vector<16x256xbf16>,
    %c0_177 = arith.constant 0 : index
    %c144_178 = arith.constant 144 : index
    %200 = vector.load %arg9[%c0_177, %c144_178] : memref<16x512xf32, #tpu.memory_space<vmem>>, vector<16x256xf32>
    %201 = arith.truncf %200 : vector<16x256xf32> to vector<16x256xbf16>
    %c112_179 = arith.constant 112 : index
    %c0_180 = arith.constant 0 : index
    %202 = vector.load %arg10[%c112_179, %c0_180] : memref<144x256xbf16, #tpu.memory_space<vmem>>, vector<16x256xbf16>
    tpu.vector_store %arg10[%c112_179, %c0_180], %201 {strides = array<i32>} : memref<144x256xbf16, #tpu.memory_space<vmem>>, vector<16x256xbf16>,
    %c0_181 = arith.constant 0 : index
    %c145_182 = arith.constant 145 : index
    %203 = vector.load %arg9[%c0_181, %c145_182] : memref<16x512xf32, #tpu.memory_space<vmem>>, vector<16x256xf32>
    %204 = vector.broadcast %5 : vector<1x256xf32> to vector<16x256xf32>
    %205 = arith.mulf %203, %204 : vector<16x256xf32>
    %206 = arith.truncf %205 : vector<16x256xf32> to vector<16x256xbf16>
    %c128_183 = arith.constant 128 : index
    %c0_184 = arith.constant 0 : index
    %207 = vector.load %arg10[%c128_183, %c0_184] : memref<144x256xbf16, #tpu.memory_space<vmem>>, vector<16x256xbf16>
    tpu.vector_store %arg10[%c128_183, %c0_184], %206 {strides = array<i32>} : memref<144x256xbf16, #tpu.memory_space<vmem>>, vector<16x256xbf16>,
    %c0_185 = arith.constant 0 : index
    %c3 = arith.constant 3 : index
    %c0_186 = arith.constant 0 : index
    %c0_187 = arith.constant 0 : index
    %208 = vector.load %arg5[%c0_185, %c3, %c0_186, %c0_187] : memref<1x4x16x144xbf16, #tpu.memory_space<vmem>>, vector<1x1x16x144xbf16>
    %209 = vector.shape_cast %208 : vector<1x1x16x144xbf16> to vector<16x144xbf16>
    %c0_188 = arith.constant 0 : index
    %c0_189 = arith.constant 0 : index
    %210 = vector.load %arg10[%c0_188, %c0_189] : memref<144x256xbf16, #tpu.memory_space<vmem>>, vector<144x256xbf16>
    %cst_190 = arith.constant dense<0.000000e+00> : vector<16x256xf32>
    %211 = tpu.matmul %209, %210, %cst_190 {dimension_numbers = #tpu.dot_dimension_numbers<[1], [0], [0], [1], [0, 0, 1, 1], [], []>} : vector<16x144xbf16>, vector<144x256xbf16>, vector<16x256xf32> -> vector<16x256xf32>
    %c0_191 = arith.constant 0 : index
    %c3_192 = arith.constant 3 : index
    %c0_193 = arith.constant 0 : index
    %c0_194 = arith.constant 0 : index
    %212 = vector.load %arg6[%c0_191, %c3_192, %c0_193, %c0_194] : memref<1x4x16x1xf32, #tpu.memory_space<vmem>>, vector<1x1x16x1xf32>
    %213 = vector.shape_cast %212 : vector<1x1x16x1xf32> to vector<16x1xf32>
    %214 = vector.broadcast %213 : vector<16x1xf32> to vector<16x256xf32>
    %215 = arith.addf %211, %214 : vector<16x256xf32>
    %216 = vector.broadcast %7 : vector<1x256xf32> to vector<16x256xf32>
    %217 = arith.mulf %215, %216 : vector<16x256xf32>
    %c0_195 = arith.constant 0 : index
    %c0_196 = arith.constant 0 : index
    %c0_197 = arith.constant 0 : index
    %c0_198 = arith.constant 0 : index
    %218 = vector.load %arg4[%c0_195, %c0_196, %c0_197, %c0_198] : memref<1x1x2x256xf32, #tpu.memory_space<vmem>>, vector<1x1x2x256xf32>
    %219 = vector.shape_cast %218 : vector<1x1x2x256xf32> to vector<2x256xf32>
    %220 = vector.extract_strided_slice %217 {offsets = [0, 0], sizes = [2, 256], strides = [1, 1]} : vector<16x256xf32> to vector<2x256xf32>
    %221 = vector.broadcast %1 : f32 to vector<2x256xf32>
    %222 = arith.mulf %221, %220 : vector<2x256xf32>
    %223 = arith.addf %219, %222 : vector<2x256xf32>
    %c0_199 = arith.constant 0 : index
    %c0_200 = arith.constant 0 : index
    %c0_201 = arith.constant 0 : index
    %c0_202 = arith.constant 0 : index
    %224 = vector.load %arg8[%c0_199, %c0_200, %c0_201, %c0_202] : memref<1x1x2x256xf32, #tpu.memory_space<vmem>>, vector<1x1x2x256xf32>
    %225 = vector.shape_cast %224 : vector<1x1x2x256xf32> to vector<2x256xf32>
    %226 = vector.shape_cast %223 : vector<2x256xf32> to vector<1x1x2x256xf32>
    tpu.vector_store %arg8[%c0_199, %c0_200, %c0_201, %c0_202], %226 {strides = array<i32>} : memref<1x1x2x256xf32, #tpu.memory_space<vmem>>, vector<1x1x2x256xf32>,
    return
  }
  func.func @transform_0(%arg0: i32, %arg1: i32) -> i32 {
    %c0_i32 = arith.constant 0 : i32
    %c0_i32_0 = arith.constant 0 : i32
    return %c0_i32 : i32
  }
  func.func @transform_1(%arg0: i32, %arg1: i32) -> (i32, i32, i32, i32) {
    %c0_i32 = arith.constant 0 : i32
    %c0_i32_0 = arith.constant 0 : i32
    %c0_i32_1 = arith.constant 0 : i32
    return %arg0, %arg1, %c0_i32, %c0_i32_0 : i32, i32, i32, i32
  }
  func.func @transform_2(%arg0: i32, %arg1: i32) -> (i32, i32, i32, i32) {
    %c0_i32 = arith.constant 0 : i32
    %c0_i32_0 = arith.constant 0 : i32
    %c0_i32_1 = arith.constant 0 : i32
    return %arg0, %arg1, %c0_i32, %c0_i32_0 : i32, i32, i32, i32
  }
  func.func @transform_3(%arg0: i32, %arg1: i32) -> (i32, i32, i32, i32) {
    %c0_i32 = arith.constant 0 : i32
    %c0_i32_0 = arith.constant 0 : i32
    %c0_i32_1 = arith.constant 0 : i32
    %c0_i32_2 = arith.constant 0 : i32
    return %arg0, %c0_i32, %c0_i32_0, %c0_i32_1 : i32, i32, i32, i32
  }
  func.func @transform_4(%arg0: i32, %arg1: i32) -> (i32, i32, i32, i32) {
    %c0_i32 = arith.constant 0 : i32
    %c0_i32_0 = arith.constant 0 : i32
    %c0_i32_1 = arith.constant 0 : i32
    %c0_i32_2 = arith.constant 0 : i32
    return %arg0, %c0_i32, %c0_i32_0, %c0_i32_1 : i32, i32, i32, i32
  }
  func.func @transform_5(%arg0: i32, %arg1: i32) -> (i32, i32, i32) {
    %c0_i32 = arith.constant 0 : i32
    %c0_i32_0 = arith.constant 0 : i32
    %c0_i32_1 = arith.constant 0 : i32
    %c0_i32_2 = arith.constant 0 : i32
    return %c0_i32, %c0_i32_0, %c0_i32_1 : i32, i32, i32
  }
  func.func @transform_6(%arg0: i32, %arg1: i32) -> (i32, i32, i32, i32) {
    %c0_i32 = arith.constant 0 : i32
    %c0_i32_0 = arith.constant 0 : i32
    %c0_i32_1 = arith.constant 0 : i32
    return %arg0, %arg1, %c0_i32, %c0_i32_0 : i32, i32, i32, i32
  }
}

module attributes {stable_mosaic.version = 11 : i64} {
  func.func @_cg_step_kernel(%arg0: i32, %arg1: i32, %arg2: memref<4xf32, #tpu.memory_space<smem>>, %arg3: memref<4xf32, #tpu.memory_space<smem>>, %arg4: memref<1x1x1x256xf32, #tpu.memory_space<vmem>>, %arg5: memref<1x1x1x256xf32, #tpu.memory_space<vmem>>, %arg6: memref<1x1x1x256xf32, #tpu.memory_space<vmem>>, %arg7: memref<1x1x1x256xf32, #tpu.memory_space<vmem>>, %arg8: memref<1x1x256xf32, #tpu.memory_space<vmem>>, %arg9: memref<1x1x256xf32, #tpu.memory_space<vmem>>, %arg10: memref<1x1x256xf32, #tpu.memory_space<vmem>>, %arg11: memref<1x1x256xf32, #tpu.memory_space<vmem>>, %arg12: memref<1x1x256xf32, #tpu.memory_space<vmem>>, %arg13: memref<1x1x256xf32, #tpu.memory_space<vmem>>, %arg14: memref<1x1x256xf32, #tpu.memory_space<vmem>>, %arg15: memref<1x1x256xf32, #tpu.memory_space<vmem>>, %arg16: memref<1x1x256xf32, #tpu.memory_space<vmem>>, %arg17: memref<1x1x256xf32, #tpu.memory_space<vmem>>, %arg18: memref<1x1x256xf32, #tpu.memory_space<vmem>>, %arg19: memref<1x1x256xf32, #tpu.memory_space<vmem>>, %arg20: memref<1x1x128xf32, #tpu.memory_space<vmem>>, %arg21: memref<1x256xf32, #tpu.memory_space<vmem>>, %arg22: memref<1x256xf32, #tpu.memory_space<vmem>>) attributes {dimension_semantics = [#tpu.dimension_semantics<parallel>, #tpu.dimension_semantics<arbitrary>], iteration_bounds = array<i64: 4, 4>, scalar_prefetch = 0 : i64, scratch_operands = 2 : i64, tpu.core_type = #tpu.core_type<tc>, window_params = [{transform_indices = @transform_0, window_bounds = array<i64: 4>}, {transform_indices = @transform_1, window_bounds = array<i64: 4>}, {transform_indices = @transform_2, window_bounds = array<i64: 1, 1, 1, 256>}, {transform_indices = @transform_3, window_bounds = array<i64: 1, 1, 1, 256>}, {transform_indices = @transform_4, window_bounds = array<i64: 1, 1, 1, 256>}, {transform_indices = @transform_5, window_bounds = array<i64: 1, 1, 1, 256>}, {transform_indices = @transform_6, window_bounds = array<i64: 1, 1, 256>}, {transform_indices = @transform_7, window_bounds = array<i64: 1, 1, 256>}, {transform_indices = @transform_8, window_bounds = array<i64: 1, 1, 256>}, {transform_indices = @transform_9, window_bounds = array<i64: 1, 1, 256>}, {transform_indices = @transform_10, window_bounds = array<i64: 1, 1, 256>}, {transform_indices = @transform_11, window_bounds = array<i64: 1, 1, 256>}, {transform_indices = @transform_12, window_bounds = array<i64: 1, 1, 256>}, {transform_indices = @transform_13, window_bounds = array<i64: 1, 1, 256>}, {transform_indices = @transform_14, window_bounds = array<i64: 1, 1, 256>}, {transform_indices = @transform_15, window_bounds = array<i64: 1, 1, 256>}, {transform_indices = @transform_16, window_bounds = array<i64: 1, 1, 256>}, {transform_indices = @transform_17, window_bounds = array<i64: 1, 1, 256>}, {transform_indices = @transform_18, window_bounds = array<i64: 1, 1, 128>}]} {
    %c0 = arith.constant 0 : index
    %c0_0 = arith.constant 0 : index
    %c0_1 = arith.constant 0 : index
    %c0_2 = arith.constant 0 : index
    %0 = vector.load %arg4[%c0, %c0_0, %c0_1, %c0_2] : memref<1x1x1x256xf32, #tpu.memory_space<vmem>>, vector<1x1x1x256xf32>
    %1 = vector.shape_cast %0 : vector<1x1x1x256xf32> to vector<1x256xf32>
    %c0_3 = arith.constant 0 : index
    %c0_4 = arith.constant 0 : index
    %c0_5 = arith.constant 0 : index
    %c0_6 = arith.constant 0 : index
    %2 = vector.load %arg5[%c0_3, %c0_4, %c0_5, %c0_6] : memref<1x1x1x256xf32, #tpu.memory_space<vmem>>, vector<1x1x1x256xf32>
    %3 = vector.shape_cast %2 : vector<1x1x1x256xf32> to vector<1x256xf32>
    %c0_7 = arith.constant 0 : index
    %c0_8 = arith.constant 0 : index
    %c0_9 = arith.constant 0 : index
    %c0_10 = arith.constant 0 : index
    %4 = vector.load %arg6[%c0_7, %c0_8, %c0_9, %c0_10] : memref<1x1x1x256xf32, #tpu.memory_space<vmem>>, vector<1x1x1x256xf32>
    %5 = vector.shape_cast %4 : vector<1x1x1x256xf32> to vector<1x256xf32>
    %c0_11 = arith.constant 0 : index
    %c0_12 = arith.constant 0 : index
    %c0_13 = arith.constant 0 : index
    %c0_14 = arith.constant 0 : index
    %6 = vector.load %arg7[%c0_11, %c0_12, %c0_13, %c0_14] : memref<1x1x1x256xf32, #tpu.memory_space<vmem>>, vector<1x1x1x256xf32>
    %7 = vector.shape_cast %6 : vector<1x1x1x256xf32> to vector<1x256xf32>
    %8 = arith.mulf %5, %1 : vector<1x256xf32>
    %9 = arith.mulf %7, %3 : vector<1x256xf32>
    %10 = arith.addf %8, %9 : vector<1x256xf32>
    %11 = arith.mulf %5, %3 : vector<1x256xf32>
    %12 = arith.mulf %7, %1 : vector<1x256xf32>
    %13 = arith.subf %11, %12 : vector<1x256xf32>
    %c0_i32 = arith.constant 0 : i32
    %14 = arith.cmpi eq, %arg1, %c0_i32 : i32
    %15 = arith.extui %14 : i1 to i32
    %c0_i32_15 = arith.constant 0 : i32
    %16 = arith.cmpi ne, %15, %c0_i32_15 : i32
    scf.if %16 {
      %cst = arith.constant 0.000000e+00 : f32
      %26 = vector.broadcast %cst : f32 to vector<1x256xf32>
      %c0_25 = arith.constant 0 : index
      %c0_26 = arith.constant 0 : index
      %27 = vector.load %arg21[%c0_25, %c0_26] : memref<1x256xf32, #tpu.memory_space<vmem>>, vector<1x256xf32>
      tpu.vector_store %arg21[%c0_25, %c0_26], %26 {strides = array<i32>} : memref<1x256xf32, #tpu.memory_space<vmem>>, vector<1x256xf32>,
      %cst_27 = arith.constant 0.000000e+00 : f32
      %28 = vector.broadcast %cst_27 : f32 to vector<1x256xf32>
      %c0_28 = arith.constant 0 : index
      %c0_29 = arith.constant 0 : index
      %29 = vector.load %arg22[%c0_28, %c0_29] : memref<1x256xf32, #tpu.memory_space<vmem>>, vector<1x256xf32>
      tpu.vector_store %arg22[%c0_28, %c0_29], %28 {strides = array<i32>} : memref<1x256xf32, #tpu.memory_space<vmem>>, vector<1x256xf32>,
    } else {
    }
    %c0_16 = arith.constant 0 : index
    %c0_17 = arith.constant 0 : index
    %17 = vector.load %arg21[%c0_16, %c0_17] : memref<1x256xf32, #tpu.memory_space<vmem>>, vector<1x256xf32>
    %18 = arith.addf %17, %10 : vector<1x256xf32>
    %c0_18 = arith.constant 0 : index
    %c0_19 = arith.constant 0 : index
    %19 = vector.load %arg21[%c0_18, %c0_19] : memref<1x256xf32, #tpu.memory_space<vmem>>, vector<1x256xf32>
    tpu.vector_store %arg21[%c0_18, %c0_19], %18 {strides = array<i32>} : memref<1x256xf32, #tpu.memory_space<vmem>>, vector<1x256xf32>,
    %c0_20 = arith.constant 0 : index
    %c0_21 = arith.constant 0 : index
    %20 = vector.load %arg22[%c0_20, %c0_21] : memref<1x256xf32, #tpu.memory_space<vmem>>, vector<1x256xf32>
    %21 = arith.addf %20, %13 : vector<1x256xf32>
    %c0_22 = arith.constant 0 : index
    %c0_23 = arith.constant 0 : index
    %22 = vector.load %arg22[%c0_22, %c0_23] : memref<1x256xf32, #tpu.memory_space<vmem>>, vector<1x256xf32>
    tpu.vector_store %arg22[%c0_22, %c0_23], %21 {strides = array<i32>} : memref<1x256xf32, #tpu.memory_space<vmem>>, vector<1x256xf32>,
    %c3_i32 = arith.constant 3 : i32
    %23 = arith.cmpi eq, %arg1, %c3_i32 : i32
    %24 = arith.extui %23 : i1 to i32
    %c0_i32_24 = arith.constant 0 : i32
    %25 = arith.cmpi ne, %24, %c0_i32_24 : i32
    scf.if %25 {
      %26 = arith.index_cast %arg0 : i32 to index
      %27 = memref.load %arg2[%26] : memref<4xf32, #tpu.memory_space<smem>>
      %cst = arith.constant 0.000000e+00 : f32
      %28 = vector.broadcast %cst : f32 to vector<1x1xf32>
      %29 = arith.index_cast %arg0 : i32 to index
      %30 = memref.load %arg3[%29] : memref<4xf32, #tpu.memory_space<smem>>
      %31 = vector.broadcast %30 : f32 to vector<1x1xf32>
      %32 = arith.addf %28, %31 : vector<1x1xf32>
      %c0_25 = arith.constant 0 : index
      %c0_26 = arith.constant 0 : index
      %c0_27 = arith.constant 0 : index
      %33 = vector.load %arg8[%c0_25, %c0_26, %c0_27] : memref<1x1x256xf32, #tpu.memory_space<vmem>>, vector<1x1x256xf32>
      %34 = vector.shape_cast %33 : vector<1x1x256xf32> to vector<1x256xf32>
      %c0_28 = arith.constant 0 : index
      %c0_29 = arith.constant 0 : index
      %c0_30 = arith.constant 0 : index
      %35 = vector.load %arg9[%c0_28, %c0_29, %c0_30] : memref<1x1x256xf32, #tpu.memory_space<vmem>>, vector<1x1x256xf32>
      %36 = vector.shape_cast %35 : vector<1x1x256xf32> to vector<1x256xf32>
      %c0_31 = arith.constant 0 : index
      %c0_32 = arith.constant 0 : index
      %37 = vector.load %arg21[%c0_31, %c0_32] : memref<1x256xf32, #tpu.memory_space<vmem>>, vector<1x256xf32>
      %38 = vector.broadcast %27 : f32 to vector<1x256xf32>
      %39 = arith.mulf %38, %34 : vector<1x256xf32>
      %40 = arith.addf %37, %39 : vector<1x256xf32>
      %c0_33 = arith.constant 0 : index
      %c0_34 = arith.constant 0 : index
      %41 = vector.load %arg22[%c0_33, %c0_34] : memref<1x256xf32, #tpu.memory_space<vmem>>, vector<1x256xf32>
      %42 = vector.broadcast %27 : f32 to vector<1x256xf32>
      %43 = arith.mulf %42, %36 : vector<1x256xf32>
      %44 = arith.addf %41, %43 : vector<1x256xf32>
      %45 = arith.mulf %34, %40 : vector<1x256xf32>
      %46 = arith.mulf %36, %44 : vector<1x256xf32>
      %47 = arith.addf %45, %46 : vector<1x256xf32>
      %48 = vector.shape_cast %47 : vector<1x256xf32> to vector<1x1x256xf32>
      %cst_35 = arith.constant dense<0.000000e+00> : vector<1xf32>
      %49 = vector.multi_reduction <add>, %48, %cst_35 [1, 2] : vector<1x1x256xf32> to vector<1xf32>
      %50 = vector.shape_cast %49 : vector<1xf32> to vector<1x1x1xf32>
      %51 = vector.extract %50[0, 0, 0] : f32 from vector<1x1x1xf32>
      %52 = vector.broadcast %51 : f32 to vector<1x1xf32>
      %cst_36 = arith.constant 0.000000e+00 : f32
      %53 = vector.broadcast %cst_36 : f32 to vector<1x1xf32>
      %54 = arith.cmpf oeq, %52, %53 : vector<1x1xf32>
      %cst_37 = arith.constant 1.000000e+00 : f32
      %55 = vector.broadcast %cst_37 : f32 to vector<1x1xf32>
      %56 = arith.select %54, %55, %52 : vector<1x1xi1>, vector<1x1xf32>
      %57 = arith.divf %32, %56 : vector<1x1xf32>
      %c0_38 = arith.constant 0 : index
      %c0_39 = arith.constant 0 : index
      %c0_40 = arith.constant 0 : index
      %58 = vector.load %arg12[%c0_38, %c0_39, %c0_40] : memref<1x1x256xf32, #tpu.memory_space<vmem>>, vector<1x1x256xf32>
      %59 = vector.shape_cast %58 : vector<1x1x256xf32> to vector<1x256xf32>
      %60 = vector.broadcast %57 : vector<1x1xf32> to vector<1x256xf32>
      %61 = arith.mulf %60, %40 : vector<1x256xf32>
      %62 = arith.subf %59, %61 : vector<1x256xf32>
      %c0_41 = arith.constant 0 : index
      %c0_42 = arith.constant 0 : index
      %c0_43 = arith.constant 0 : index
      %63 = vector.load %arg13[%c0_41, %c0_42, %c0_43] : memref<1x1x256xf32, #tpu.memory_space<vmem>>, vector<1x1x256xf32>
      %64 = vector.shape_cast %63 : vector<1x1x256xf32> to vector<1x256xf32>
      %65 = vector.broadcast %57 : vector<1x1xf32> to vector<1x256xf32>
      %66 = arith.mulf %65, %44 : vector<1x256xf32>
      %67 = arith.subf %64, %66 : vector<1x256xf32>
      %68 = arith.mulf %62, %62 : vector<1x256xf32>
      %69 = arith.mulf %67, %67 : vector<1x256xf32>
      %70 = arith.addf %68, %69 : vector<1x256xf32>
      %71 = vector.shape_cast %70 : vector<1x256xf32> to vector<1x1x256xf32>
      %cst_44 = arith.constant dense<0.000000e+00> : vector<1xf32>
      %72 = vector.multi_reduction <add>, %71, %cst_44 [1, 2] : vector<1x1x256xf32> to vector<1xf32>
      %73 = vector.shape_cast %72 : vector<1xf32> to vector<1x1x1xf32>
      %74 = vector.extract %73[0, 0, 0] : f32 from vector<1x1x1xf32>
      %75 = vector.broadcast %74 : f32 to vector<1x1xf32>
      %cst_45 = arith.constant 0.000000e+00 : f32
      %76 = vector.broadcast %cst_45 : f32 to vector<1x1xf32>
      %77 = arith.cmpf oeq, %32, %76 : vector<1x1xf32>
      %cst_46 = arith.constant 1.000000e+00 : f32
      %78 = vector.broadcast %cst_46 : f32 to vector<1x1xf32>
      %79 = arith.select %77, %78, %32 : vector<1x1xi1>, vector<1x1xf32>
      %80 = arith.divf %75, %79 : vector<1x1xf32>
      %c0_47 = arith.constant 0 : index
      %c0_48 = arith.constant 0 : index
      %c0_49 = arith.constant 0 : index
      %81 = vector.load %arg10[%c0_47, %c0_48, %c0_49] : memref<1x1x256xf32, #tpu.memory_space<vmem>>, vector<1x1x256xf32>
      %82 = vector.shape_cast %81 : vector<1x1x256xf32> to vector<1x256xf32>
      %83 = vector.broadcast %57 : vector<1x1xf32> to vector<1x256xf32>
      %84 = arith.mulf %83, %34 : vector<1x256xf32>
      %85 = arith.addf %82, %84 : vector<1x256xf32>
      %c0_50 = arith.constant 0 : index
      %c0_51 = arith.constant 0 : index
      %c0_52 = arith.constant 0 : index
      %86 = vector.load %arg14[%c0_50, %c0_51, %c0_52] : memref<1x1x256xf32, #tpu.memory_space<vmem>>, vector<1x1x256xf32>
      %87 = vector.shape_cast %86 : vector<1x1x256xf32> to vector<1x256xf32>
      %88 = vector.shape_cast %85 : vector<1x256xf32> to vector<1x1x256xf32>
      tpu.vector_store %arg14[%c0_50, %c0_51, %c0_52], %88 {strides = array<i32>} : memref<1x1x256xf32, #tpu.memory_space<vmem>>, vector<1x1x256xf32>,
      %c0_53 = arith.constant 0 : index
      %c0_54 = arith.constant 0 : index
      %c0_55 = arith.constant 0 : index
      %89 = vector.load %arg11[%c0_53, %c0_54, %c0_55] : memref<1x1x256xf32, #tpu.memory_space<vmem>>, vector<1x1x256xf32>
      %90 = vector.shape_cast %89 : vector<1x1x256xf32> to vector<1x256xf32>
      %91 = vector.broadcast %57 : vector<1x1xf32> to vector<1x256xf32>
      %92 = arith.mulf %91, %36 : vector<1x256xf32>
      %93 = arith.addf %90, %92 : vector<1x256xf32>
      %c0_56 = arith.constant 0 : index
      %c0_57 = arith.constant 0 : index
      %c0_58 = arith.constant 0 : index
      %94 = vector.load %arg15[%c0_56, %c0_57, %c0_58] : memref<1x1x256xf32, #tpu.memory_space<vmem>>, vector<1x1x256xf32>
      %95 = vector.shape_cast %94 : vector<1x1x256xf32> to vector<1x256xf32>
      %96 = vector.shape_cast %93 : vector<1x256xf32> to vector<1x1x256xf32>
      tpu.vector_store %arg15[%c0_56, %c0_57, %c0_58], %96 {strides = array<i32>} : memref<1x1x256xf32, #tpu.memory_space<vmem>>, vector<1x1x256xf32>,
      %c0_59 = arith.constant 0 : index
      %c0_60 = arith.constant 0 : index
      %c0_61 = arith.constant 0 : index
      %97 = vector.load %arg16[%c0_59, %c0_60, %c0_61] : memref<1x1x256xf32, #tpu.memory_space<vmem>>, vector<1x1x256xf32>
      %98 = vector.shape_cast %97 : vector<1x1x256xf32> to vector<1x256xf32>
      %99 = vector.shape_cast %62 : vector<1x256xf32> to vector<1x1x256xf32>
      tpu.vector_store %arg16[%c0_59, %c0_60, %c0_61], %99 {strides = array<i32>} : memref<1x1x256xf32, #tpu.memory_space<vmem>>, vector<1x1x256xf32>,
      %c0_62 = arith.constant 0 : index
      %c0_63 = arith.constant 0 : index
      %c0_64 = arith.constant 0 : index
      %100 = vector.load %arg17[%c0_62, %c0_63, %c0_64] : memref<1x1x256xf32, #tpu.memory_space<vmem>>, vector<1x1x256xf32>
      %101 = vector.shape_cast %100 : vector<1x1x256xf32> to vector<1x256xf32>
      %102 = vector.shape_cast %67 : vector<1x256xf32> to vector<1x1x256xf32>
      tpu.vector_store %arg17[%c0_62, %c0_63, %c0_64], %102 {strides = array<i32>} : memref<1x1x256xf32, #tpu.memory_space<vmem>>, vector<1x1x256xf32>,
      %103 = vector.broadcast %80 : vector<1x1xf32> to vector<1x256xf32>
      %104 = arith.mulf %103, %34 : vector<1x256xf32>
      %105 = arith.addf %62, %104 : vector<1x256xf32>
      %c0_65 = arith.constant 0 : index
      %c0_66 = arith.constant 0 : index
      %c0_67 = arith.constant 0 : index
      %106 = vector.load %arg18[%c0_65, %c0_66, %c0_67] : memref<1x1x256xf32, #tpu.memory_space<vmem>>, vector<1x1x256xf32>
      %107 = vector.shape_cast %106 : vector<1x1x256xf32> to vector<1x256xf32>
      %108 = vector.shape_cast %105 : vector<1x256xf32> to vector<1x1x256xf32>
      tpu.vector_store %arg18[%c0_65, %c0_66, %c0_67], %108 {strides = array<i32>} : memref<1x1x256xf32, #tpu.memory_space<vmem>>, vector<1x1x256xf32>,
      %109 = vector.broadcast %80 : vector<1x1xf32> to vector<1x256xf32>
      %110 = arith.mulf %109, %36 : vector<1x256xf32>
      %111 = arith.addf %67, %110 : vector<1x256xf32>
      %c0_68 = arith.constant 0 : index
      %c0_69 = arith.constant 0 : index
      %c0_70 = arith.constant 0 : index
      %112 = vector.load %arg19[%c0_68, %c0_69, %c0_70] : memref<1x1x256xf32, #tpu.memory_space<vmem>>, vector<1x1x256xf32>
      %113 = vector.shape_cast %112 : vector<1x1x256xf32> to vector<1x256xf32>
      %114 = vector.shape_cast %111 : vector<1x256xf32> to vector<1x1x256xf32>
      tpu.vector_store %arg19[%c0_68, %c0_69, %c0_70], %114 {strides = array<i32>} : memref<1x1x256xf32, #tpu.memory_space<vmem>>, vector<1x1x256xf32>,
      %cst_71 = arith.constant 0.000000e+00 : f32
      %115 = vector.broadcast %cst_71 : f32 to vector<1x128xf32>
      %116 = vector.broadcast %75 : vector<1x1xf32> to vector<1x128xf32>
      %117 = arith.addf %115, %116 : vector<1x128xf32>
      %c0_72 = arith.constant 0 : index
      %c0_73 = arith.constant 0 : index
      %c0_74 = arith.constant 0 : index
      %118 = vector.load %arg20[%c0_72, %c0_73, %c0_74] : memref<1x1x128xf32, #tpu.memory_space<vmem>>, vector<1x1x128xf32>
      %119 = vector.shape_cast %118 : vector<1x1x128xf32> to vector<1x128xf32>
      %120 = vector.shape_cast %117 : vector<1x128xf32> to vector<1x1x128xf32>
      tpu.vector_store %arg20[%c0_72, %c0_73, %c0_74], %120 {strides = array<i32>} : memref<1x1x128xf32, #tpu.memory_space<vmem>>, vector<1x1x128xf32>,
    } else {
    }
    return
  }
  func.func @transform_0(%arg0: i32, %arg1: i32) -> i32 {
    %c0_i32 = arith.constant 0 : i32
    %c0_i32_0 = arith.constant 0 : i32
    return %c0_i32 : i32
  }
  func.func @transform_1(%arg0: i32, %arg1: i32) -> i32 {
    %c0_i32 = arith.constant 0 : i32
    %c0_i32_0 = arith.constant 0 : i32
    return %c0_i32 : i32
  }
  func.func @transform_2(%arg0: i32, %arg1: i32) -> (i32, i32, i32, i32) {
    %c0_i32 = arith.constant 0 : i32
    %c0_i32_0 = arith.constant 0 : i32
    %c0_i32_1 = arith.constant 0 : i32
    return %arg0, %arg1, %c0_i32, %c0_i32_0 : i32, i32, i32, i32
  }
  func.func @transform_3(%arg0: i32, %arg1: i32) -> (i32, i32, i32, i32) {
    %c0_i32 = arith.constant 0 : i32
    %c0_i32_0 = arith.constant 0 : i32
    %c0_i32_1 = arith.constant 0 : i32
    return %arg0, %arg1, %c0_i32, %c0_i32_0 : i32, i32, i32, i32
  }
  func.func @transform_4(%arg0: i32, %arg1: i32) -> (i32, i32, i32, i32) {
    %c0_i32 = arith.constant 0 : i32
    %c0_i32_0 = arith.constant 0 : i32
    %c0_i32_1 = arith.constant 0 : i32
    return %arg0, %arg1, %c0_i32, %c0_i32_0 : i32, i32, i32, i32
  }
  func.func @transform_5(%arg0: i32, %arg1: i32) -> (i32, i32, i32, i32) {
    %c0_i32 = arith.constant 0 : i32
    %c0_i32_0 = arith.constant 0 : i32
    %c0_i32_1 = arith.constant 0 : i32
    return %arg0, %arg1, %c0_i32, %c0_i32_0 : i32, i32, i32, i32
  }
  func.func @transform_6(%arg0: i32, %arg1: i32) -> (i32, i32, i32) {
    %c0_i32 = arith.constant 0 : i32
    %c0_i32_0 = arith.constant 0 : i32
    %c0_i32_1 = arith.constant 0 : i32
    return %arg0, %c0_i32, %c0_i32_0 : i32, i32, i32
  }
  func.func @transform_7(%arg0: i32, %arg1: i32) -> (i32, i32, i32) {
    %c0_i32 = arith.constant 0 : i32
    %c0_i32_0 = arith.constant 0 : i32
    %c0_i32_1 = arith.constant 0 : i32
    return %arg0, %c0_i32, %c0_i32_0 : i32, i32, i32
  }
  func.func @transform_8(%arg0: i32, %arg1: i32) -> (i32, i32, i32) {
    %c0_i32 = arith.constant 0 : i32
    %c0_i32_0 = arith.constant 0 : i32
    %c0_i32_1 = arith.constant 0 : i32
    return %arg0, %c0_i32, %c0_i32_0 : i32, i32, i32
  }
  func.func @transform_9(%arg0: i32, %arg1: i32) -> (i32, i32, i32) {
    %c0_i32 = arith.constant 0 : i32
    %c0_i32_0 = arith.constant 0 : i32
    %c0_i32_1 = arith.constant 0 : i32
    return %arg0, %c0_i32, %c0_i32_0 : i32, i32, i32
  }
  func.func @transform_10(%arg0: i32, %arg1: i32) -> (i32, i32, i32) {
    %c0_i32 = arith.constant 0 : i32
    %c0_i32_0 = arith.constant 0 : i32
    %c0_i32_1 = arith.constant 0 : i32
    return %arg0, %c0_i32, %c0_i32_0 : i32, i32, i32
  }
  func.func @transform_11(%arg0: i32, %arg1: i32) -> (i32, i32, i32) {
    %c0_i32 = arith.constant 0 : i32
    %c0_i32_0 = arith.constant 0 : i32
    %c0_i32_1 = arith.constant 0 : i32
    return %arg0, %c0_i32, %c0_i32_0 : i32, i32, i32
  }
  func.func @transform_12(%arg0: i32, %arg1: i32) -> (i32, i32, i32) {
    %c0_i32 = arith.constant 0 : i32
    %c0_i32_0 = arith.constant 0 : i32
    %c0_i32_1 = arith.constant 0 : i32
    return %arg0, %c0_i32, %c0_i32_0 : i32, i32, i32
  }
  func.func @transform_13(%arg0: i32, %arg1: i32) -> (i32, i32, i32) {
    %c0_i32 = arith.constant 0 : i32
    %c0_i32_0 = arith.constant 0 : i32
    %c0_i32_1 = arith.constant 0 : i32
    return %arg0, %c0_i32, %c0_i32_0 : i32, i32, i32
  }
  func.func @transform_14(%arg0: i32, %arg1: i32) -> (i32, i32, i32) {
    %c0_i32 = arith.constant 0 : i32
    %c0_i32_0 = arith.constant 0 : i32
    %c0_i32_1 = arith.constant 0 : i32
    return %arg0, %c0_i32, %c0_i32_0 : i32, i32, i32
  }
  func.func @transform_15(%arg0: i32, %arg1: i32) -> (i32, i32, i32) {
    %c0_i32 = arith.constant 0 : i32
    %c0_i32_0 = arith.constant 0 : i32
    %c0_i32_1 = arith.constant 0 : i32
    return %arg0, %c0_i32, %c0_i32_0 : i32, i32, i32
  }
  func.func @transform_16(%arg0: i32, %arg1: i32) -> (i32, i32, i32) {
    %c0_i32 = arith.constant 0 : i32
    %c0_i32_0 = arith.constant 0 : i32
    %c0_i32_1 = arith.constant 0 : i32
    return %arg0, %c0_i32, %c0_i32_0 : i32, i32, i32
  }
  func.func @transform_17(%arg0: i32, %arg1: i32) -> (i32, i32, i32) {
    %c0_i32 = arith.constant 0 : i32
    %c0_i32_0 = arith.constant 0 : i32
    %c0_i32_1 = arith.constant 0 : i32
    return %arg0, %c0_i32, %c0_i32_0 : i32, i32, i32
  }
  func.func @transform_18(%arg0: i32, %arg1: i32) -> (i32, i32, i32) {
    %c0_i32 = arith.constant 0 : i32
    %c0_i32_0 = arith.constant 0 : i32
    %c0_i32_1 = arith.constant 0 : i32
    return %arg0, %c0_i32, %c0_i32_0 : i32, i32, i32
  }
}

</mosaic_0001>

<llo_original>
// kernel: custom-call
$region0: #{custom-call}
  %s0 = inlined_call_operand.vmem [shape: c64[2,4,16,16], index: 0, kind: input, shape index: {}]
  %s1 = inlined_call_operand.vmem [shape: f32[2,4,16,16], index: 1, kind: output, shape index: {}]
  %v2 = vld [vmem:[%s0] sm:$0xff]
  %3 = vst [vmem:[%s1] sm:$0xff] %v2
  %s4 = scalar_lea.vmem %s1, 8
  %s5 = scalar_lea.vmem %s0, 8
  %v6 = vld [vmem:[%s5] sm:$0xff]
  %7 = vst [vmem:[%s4] sm:$0xff] %v6
  %s8 = scalar_lea.vmem %s1, 16
  %s9 = scalar_lea.vmem %s0, 16
  %v10 = vld [vmem:[%s9] sm:$0xff]
  %11 = vst [vmem:[%s8] sm:$0xff] %v10
  %s12 = scalar_lea.vmem %s1, 24
  %s13 = scalar_lea.vmem %s0, 24
  %v14 = vld [vmem:[%s13] sm:$0xff]
  %15 = vst [vmem:[%s12] sm:$0xff] %v14
  %s16 = scalar_lea.vmem %s1, 32
  %s17 = scalar_lea.vmem %s0, 32
  %v18 = vld [vmem:[%s17] sm:$0xff]
  %19 = vst [vmem:[%s16] sm:$0xff] %v18
  %s20 = scalar_lea.vmem %s1, 40
  %s21 = scalar_lea.vmem %s0, 40
  %v22 = vld [vmem:[%s21] sm:$0xff]
  %23 = vst [vmem:[%s20] sm:$0xff] %v22
  %s24 = scalar_lea.vmem %s1, 48
  %s25 = scalar_lea.vmem %s0, 48
  %v26 = vld [vmem:[%s25] sm:$0xff]
  %27 = vst [vmem:[%s24] sm:$0xff] %v26
  %s28 = scalar_lea.vmem %s1, 56
  %s29 = scalar_lea.vmem %s0, 56
  %v30 = vld [vmem:[%s29] sm:$0xff]
  %31 = vst [vmem:[%s28] sm:$0xff] %v30
  %s32 = scalar_lea.vmem %s1, 64
  %s33 = scalar_lea.vmem %s0, 64
  %v34 = vld [vmem:[%s33] sm:$0xff]
  %35 = vst [vmem:[%s32] sm:$0xff] %v34
  %s36 = scalar_lea.vmem %s1, 72
  %s37 = scalar_lea.vmem %s0, 72
  %v38 = vld [vmem:[%s37] sm:$0xff]
  %39 = vst [vmem:[%s36] sm:$0xff] %v38
  %s40 = scalar_lea.vmem %s1, 80
  %s41 = scalar_lea.vmem %s0, 80
  %v42 = vld [vmem:[%s41] sm:$0xff]
  %43 = vst [vmem:[%s40] sm:$0xff] %v42
  %s44 = scalar_lea.vmem %s1, 88
  %s45 = scalar_lea.vmem %s0, 88
  %v46 = vld [vmem:[%s45] sm:$0xff]
  %47 = vst [vmem:[%s44] sm:$0xff] %v46
  %s48 = scalar_lea.vmem %s1, 96
  %s49 = scalar_lea.vmem %s0, 96
  %v50 = vld [vmem:[%s49] sm:$0xff]
  %51 = vst [vmem:[%s48] sm:$0xff] %v50
  %s52 = scalar_lea.vmem %s1, 104
  %s53 = scalar_lea.vmem %s0, 104
  %v54 = vld [vmem:[%s53] sm:$0xff]
  %55 = vst [vmem:[%s52] sm:$0xff] %v54
  %s56 = scalar_lea.vmem %s1, 112
  %s57 = scalar_lea.vmem %s0, 112
  %v58 = vld [vmem:[%s57] sm:$0xff]
  %59 = vst [vmem:[%s56] sm:$0xff] %v58
  %s60 = scalar_lea.vmem %s1, 120
  %s61 = scalar_lea.vmem %s0, 120
  %v62 = vld [vmem:[%s61] sm:$0xff]
  %63 = vst [vmem:[%s60] sm:$0xff] %v62

// kernel: custom-call.1
$region0: #{custom-call.1}
  %s0 = inlined_call_operand.vmem [shape: c64[2,4,16,16], index: 0, kind: input, shape index: {}]
  %s1 = inlined_call_operand.vmem [shape: f32[2,4,16,16], index: 1, kind: output, shape index: {}]
  %s2 = scalar_lea.vmem %s0, 128
  %v3 = vld [vmem:[%s2] sm:$0xff]
  %4 = vst [vmem:[%s1] sm:$0xff] %v3
  %s5 = scalar_lea.vmem %s1, 8
  %s6 = scalar_lea.vmem %s2, 8
  %v7 = vld [vmem:[%s6] sm:$0xff]
  %8 = vst [vmem:[%s5] sm:$0xff] %v7
  %s9 = scalar_lea.vmem %s1, 16
  %s10 = scalar_lea.vmem %s2, 16
  %v11 = vld [vmem:[%s10] sm:$0xff]
  %12 = vst [vmem:[%s9] sm:$0xff] %v11
  %s13 = scalar_lea.vmem %s1, 24
  %s14 = scalar_lea.vmem %s2, 24
  %v15 = vld [vmem:[%s14] sm:$0xff]
  %16 = vst [vmem:[%s13] sm:$0xff] %v15
  %s17 = scalar_lea.vmem %s1, 32
  %s18 = scalar_lea.vmem %s2, 32
  %v19 = vld [vmem:[%s18] sm:$0xff]
  %20 = vst [vmem:[%s17] sm:$0xff] %v19
  %s21 = scalar_lea.vmem %s1, 40
  %s22 = scalar_lea.vmem %s2, 40
  %v23 = vld [vmem:[%s22] sm:$0xff]
  %24 = vst [vmem:[%s21] sm:$0xff] %v23
  %s25 = scalar_lea.vmem %s1, 48
  %s26 = scalar_lea.vmem %s2, 48
  %v27 = vld [vmem:[%s26] sm:$0xff]
  %28 = vst [vmem:[%s25] sm:$0xff] %v27
  %s29 = scalar_lea.vmem %s1, 56
  %s30 = scalar_lea.vmem %s2, 56
  %v31 = vld [vmem:[%s30] sm:$0xff]
  %32 = vst [vmem:[%s29] sm:$0xff] %v31
  %s33 = scalar_lea.vmem %s1, 64
  %s34 = scalar_lea.vmem %s2, 64
  %v35 = vld [vmem:[%s34] sm:$0xff]
  %36 = vst [vmem:[%s33] sm:$0xff] %v35
  %s37 = scalar_lea.vmem %s1, 72
  %s38 = scalar_lea.vmem %s2, 72
  %v39 = vld [vmem:[%s38] sm:$0xff]
  %40 = vst [vmem:[%s37] sm:$0xff] %v39
  %s41 = scalar_lea.vmem %s1, 80
  %s42 = scalar_lea.vmem %s2, 80
  %v43 = vld [vmem:[%s42] sm:$0xff]
  %44 = vst [vmem:[%s41] sm:$0xff] %v43
  %s45 = scalar_lea.vmem %s1, 88
  %s46 = scalar_lea.vmem %s2, 88
  %v47 = vld [vmem:[%s46] sm:$0xff]
  %48 = vst [vmem:[%s45] sm:$0xff] %v47
  %s49 = scalar_lea.vmem %s1, 96
  %s50 = scalar_lea.vmem %s2, 96
  %v51 = vld [vmem:[%s50] sm:$0xff]
  %52 = vst [vmem:[%s49] sm:$0xff] %v51
  %s53 = scalar_lea.vmem %s1, 104
  %s54 = scalar_lea.vmem %s2, 104
  %v55 = vld [vmem:[%s54] sm:$0xff]
  %56 = vst [vmem:[%s53] sm:$0xff] %v55
  %s57 = scalar_lea.vmem %s1, 112
  %s58 = scalar_lea.vmem %s2, 112
  %v59 = vld [vmem:[%s58] sm:$0xff]
  %60 = vst [vmem:[%s57] sm:$0xff] %v59
  %s61 = scalar_lea.vmem %s1, 120
  %s62 = scalar_lea.vmem %s2, 120
  %v63 = vld [vmem:[%s62] sm:$0xff]
  %64 = vst [vmem:[%s61] sm:$0xff] %v63

// kernel: parallel_network_forward.2
$region0: #{parallel_network_forward.2}
  #allocation0 [shape = 'u32[]', space=smem, size = 0x4, offset = 0x4, fixed_abs, tag = 'smem constant byte address 0x4 - core index']
  #allocation1 [shape = 'u32[144,128]{1,0:T(1,128)}', space=vmem, size = 0x12000, scoped, tag = 'internal scratch']
  #allocation2 [shape = 'f32[16,512]{1,0:T(8,128)}', space=vmem, size = 0x8000, scoped, tag = 'scratch operand']
  #allocation3 [shape = 'bf16[144,256]{1,0:T(8,128)(2,1)}', space=vmem, size = 0x12000, scoped, tag = 'scratch operand']
  %s0 = inlined_call_operand.vmem [shape: f32[2], index: 0, kind: input, shape index: {}]
  %s1 = inlined_call_operand.vmem [shape: f32[2,2,2,256], index: 1, kind: input, shape index: {}, may-alias: {1,2}]
  %s2 = inlined_call_operand.vmem [shape: f32[2,2,2,256], index: 2, kind: input, shape index: {}, may-alias: {1,2}]
  %s3 = inlined_call_operand.vmem [shape: bf16[2,4,16,144], index: 3, kind: input, shape index: {}]
  %s4 = inlined_call_operand.vmem [shape: f32[2,4,16,1], index: 4, kind: input, shape index: {}]
  %s5 = inlined_call_operand.vmem [shape: f32[3,1,256], index: 5, kind: input, shape index: {}]
  %s6 = inlined_call_operand.vmem [shape: f32[2,2,2,256], index: 6, kind: output, shape index: {}]
  %s7 = sld [smem:[#allocation0]]
  $region61: #{parallel_network_forward.2} parent=0
    _
  %s9 = ssub.s32 1, %s7
  %s10 = scalar_select 0, %s9, %s7
  $region1: #{parallel_network_forward.2} parent=0
    #allocation4 [shape = 'u8[512]{0}', space=smem, size = 0x200, scoped, tag = 'input window, operand 0, single buffered']
    #allocation5 [shape = 's32[2]{0}', space=sflag, size = 0x8, scoped, tag = 'scoped memory for parallel_network_forward.2']
    %11 = vsyncpa [#allocation5], 0
    loop: start=0, step=1, limit=6
    $region2: #{parallel_network_forward.2} parent=1 // loop_pre_header
      _
    $region3: #{parallel_network_forward.2} parent=1 // loop_header
      %s13 = sphi 0, %s17
      %p14 = scmp.ge.s32.totalorder %s13, 6
      %s20 = sphi 0, %s32
      %s21 = sphi 0, %s28
      %s22 = sphi 0, %s20
      %s23 = sphi 0, %s21
      %s24 = sphi 0, %s22
      %s25 = sphi 0, %s23
      %s33 = sphi 0, %s33
      %s35 = sphi 0, %s33
      %s36 = sphi 0, %s35
      %s50 = sphi 0, %s36
      %s58 = sphi 0, %s60
      %s61 = sphi 0, %s58
      %s62 = sphi 0, %s61
      %s78 = sphi 0, %s62
      %s86 = sphi 0, %s88
      %s89 = sphi 0, %s86
      %s90 = sphi 0, %s89
      %s106 = sphi 0, %s90
      %s112 = sphi 0, %s114
      %s115 = sphi 0, %s112
      %s116 = sphi 0, %s115
      %s132 = sphi 0, %s116
      %s138 = sphi 0, %s140
      %s141 = sphi 0, %s138
      %s142 = sphi 0, %s141
      %s158 = sphi 0, %s142
      %s162 = sphi 0, %s162
      %s164 = sphi 0, %s162
      %s165 = sphi 0, %s164
      %s179 = sphi 0, %s165
      %s187 = sphi 0, %s189
      %s190 = sphi 0, %s187
      %s191 = sphi 0, %s190
      %s207 = sphi 0, %s191
    $region4: #{parallel_network_forward.2} parent=1 // loop_header_branch
      %16 = sbr.rel (%p14) target = $region8
    $region5: #{parallel_network_forward.2} parent=1 // loop_body
      %s18 = ssub.s32 %s13, 1
      %s19 = ssub.s32 %s13, 2
      %s26 = sadd.s32 1, %s21
      %p27 = scmp.ge.s32.totalorder %s26, 2
      %s28 = scalar_select %p27, 0, %s26
      %s29 = sadd.s32 1, %s20
      %s30 = scalar_select %p27, %s29, %s20
      %p31 = scmp.ge.s32.totalorder %s30, 2
      %s32 = scalar_select %p31, 0, %s30
      %s34 = sadd.s32 %s33, 1
      %p37 = scmp.eq.s32.totalorder %s13, 3
      %p38 = scmp.ne.s32.totalorder %s33, %s35
      %p39 = scmp.eq.s32.totalorder %s13, 0
      %p40 = por %p38, %p39
      %p41 = scmp.ne.s32.totalorder %s33, %s35
      %p42 = scmp.eq.s32.totalorder %s18, 3
      %p43 = por %p41, %p42
      %p44 = scmp.ne.s32.totalorder %s35, %s36
      %p45 = scmp.eq.s32.totalorder %s18, 0
      %p46 = por %p44, %p45
      %p47 = scmp.ne.s32.totalorder %s35, %s36
      %p48 = scmp.eq.s32.totalorder %s19, 3
      %p49 = por %p47, %p48
      %p51 = scmp.ne.s32.totalorder %s36, %s50
      %p52 = scmp.eq.s32.totalorder %s19, 0
      %p53 = por %p51, %p52
      %s54 = ssub.s32 %s20, %s32
      %s55 = ssub.s32 %s21, %s28
      %s56 = sor.u32 %s54, %s55
      %p57 = scmp.eq.s32.totalorder %s56, 0
      %s59 = sadd.s32 %s58, 1
      %s60 = scalar_select %p57, %s58, %s59
      %p63 = pneg %p57
      %p64 = scmp.eq.s32.totalorder %s13, 3
      %p65 = por %p63, %p64
      %p66 = scmp.ne.s32.totalorder %s58, %s61
      %p67 = scmp.eq.s32.totalorder %s13, 0
      %p68 = por %p66, %p67
      %p69 = scmp.ne.s32.totalorder %s58, %s61
      %p70 = scmp.eq.s32.totalorder %s18, 3
      %p71 = por %p69, %p70
      %p72 = scmp.ne.s32.totalorder %s61, %s62
      %p73 = scmp.eq.s32.totalorder %s18, 0
      %p74 = por %p72, %p73
      %p75 = scmp.ne.s32.totalorder %s61, %s62
      %p76 = scmp.eq.s32.totalorder %s19, 3
      %p77 = por %p75, %p76
      %p79 = scmp.ne.s32.totalorder %s62, %s78
      %p80 = scmp.eq.s32.totalorder %s19, 0
      %p81 = por %p79, %p80
      %s82 = ssub.s32 %s20, %s32
      %s83 = ssub.s32 %s21, %s28
      %s84 = sor.u32 %s82, %s83
      %p85 = scmp.eq.s32.totalorder %s84, 0
      %s87 = sadd.s32 %s86, 1
      %s88 = scalar_select %p85, %s86, %s87
      %p91 = pneg %p85
      %p92 = scmp.eq.s32.totalorder %s13, 3
      %p93 = por %p91, %p92
      %p94 = scmp.ne.s32.totalorder %s86, %s89
      %p95 = scmp.eq.s32.totalorder %s13, 0
      %p96 = por %p94, %p95
      %p97 = scmp.ne.s32.totalorder %s86, %s89
      %p98 = scmp.eq.s32.totalorder %s18, 3
      %p99 = por %p97, %p98
      %p100 = scmp.ne.s32.totalorder %s89, %s90
      %p101 = scmp.eq.s32.totalorder %s18, 0
      %p102 = por %p100, %p101
      %p103 = scmp.ne.s32.totalorder %s89, %s90
      %p104 = scmp.eq.s32.totalorder %s19, 3
      %p105 = por %p103, %p104
      %p107 = scmp.ne.s32.totalorder %s90, %s106
      %p108 = scmp.eq.s32.totalorder %s19, 0
      %p109 = por %p107, %p108
      %s110 = ssub.s32 %s20, %s32
      %p111 = scmp.eq.s32.totalorder %s110, 0
      %s113 = sadd.s32 %s112, 1
      %s114 = scalar_select %p111, %s112, %s113
      %p117 = pneg %p111
      %p118 = scmp.eq.s32.totalorder %s13, 3
      %p119 = por %p117, %p118
      %p120 = scmp.ne.s32.totalorder %s112, %s115
      %p121 = scmp.eq.s32.totalorder %s13, 0
      %p122 = por %p120, %p121
      %p123 = scmp.ne.s32.totalorder %s112, %s115
      %p124 = scmp.eq.s32.totalorder %s18, 3
      %p125 = por %p123, %p124
      %p126 = scmp.ne.s32.totalorder %s115, %s116
      %p127 = scmp.eq.s32.totalorder %s18, 0
      %p128 = por %p126, %p127
      %p129 = scmp.ne.s32.totalorder %s115, %s116
      %p130 = scmp.eq.s32.totalorder %s19, 3
      %p131 = por %p129, %p130
      %p133 = scmp.ne.s32.totalorder %s116, %s132
      %p134 = scmp.eq.s32.totalorder %s19, 0
      %p135 = por %p133, %p134
      %s136 = ssub.s32 %s20, %s32
      %p137 = scmp.eq.s32.totalorder %s136, 0
      %s139 = sadd.s32 %s138, 1
      %s140 = scalar_select %p137, %s138, %s139
      %p143 = pneg %p137
      %p144 = scmp.eq.s32.totalorder %s13, 3
      %p145 = por %p143, %p144
      %p146 = scmp.ne.s32.totalorder %s138, %s141
      %p147 = scmp.eq.s32.totalorder %s13, 0
      %p148 = por %p146, %p147
      %p149 = scmp.ne.s32.totalorder %s138, %s141
      %p150 = scmp.eq.s32.totalorder %s18, 3
      %p151 = por %p149, %p150
      %p152 = scmp.ne.s32.totalorder %s141, %s142
      %p153 = scmp.eq.s32.totalorder %s18, 0
      %p154 = por %p152, %p153
      %p155 = scmp.ne.s32.totalorder %s141, %s142
      %p156 = scmp.eq.s32.totalorder %s19, 3
      %p157 = por %p155, %p156
      %p159 = scmp.ne.s32.totalorder %s142, %s158
      %p160 = scmp.eq.s32.totalorder %s19, 0
      %p161 = por %p159, %p160
      %s163 = sadd.s32 %s162, 1
      %p166 = scmp.eq.s32.totalorder %s13, 3
      %p167 = scmp.ne.s32.totalorder %s162, %s164
      %p168 = scmp.eq.s32.totalorder %s13, 0
      %p169 = por %p167, %p168
      %p170 = scmp.ne.s32.totalorder %s162, %s164
      %p171 = scmp.eq.s32.totalorder %s18, 3
      %p172 = por %p170, %p171
      %p173 = scmp.ne.s32.totalorder %s164, %s165
      %p174 = scmp.eq.s32.totalorder %s18, 0
      %p175 = por %p173, %p174
      %p176 = scmp.ne.s32.totalorder %s164, %s165
      %p177 = scmp.eq.s32.totalorder %s19, 3
      %p178 = por %p176, %p177
      %p180 = scmp.ne.s32.totalorder %s165, %s179
      %p181 = scmp.eq.s32.totalorder %s19, 0
      %p182 = por %p180, %p181
      %s183 = ssub.s32 %s20, %s32
      %s184 = ssub.s32 %s21, %s28
      %s185 = sor.u32 %s183, %s184
      %p186 = scmp.eq.s32.totalorder %s185, 0
      %s188 = sadd.s32 %s187, 1
      %s189 = scalar_select %p186, %s187, %s188
      %p192 = pneg %p186
      %p193 = scmp.eq.s32.totalorder %s13, 3
      %p194 = por %p192, %p193
      %p195 = scmp.ne.s32.totalorder %s187, %s190
      %p196 = scmp.eq.s32.totalorder %s13, 0
      %p197 = por %p195, %p196
      %p198 = scmp.ne.s32.totalorder %s187, %s190
      %p199 = scmp.eq.s32.totalorder %s18, 3
      %p200 = por %p198, %p199
      %p201 = scmp.ne.s32.totalorder %s190, %s191
      %p202 = scmp.eq.s32.totalorder %s18, 0
      %p203 = por %p201, %p202
      %p204 = scmp.ne.s32.totalorder %s190, %s191
      %p205 = scmp.eq.s32.totalorder %s19, 3
      %p206 = por %p204, %p205
      %p208 = scmp.ne.s32.totalorder %s191, %s207
      %p209 = scmp.eq.s32.totalorder %s19, 0
      %p210 = por %p208, %p209
      %p211 = scmp.le.s32.totalorder 1, %s13
      %p212 = scmp.lt.s32.totalorder %s13, 5
      %p213 = pnand %p211, %p212
      %p214 = pneg %p213
      // Predicated region
      $region9: #{parallel_network_forward.2} parent=5 // pred_check
        _
      $region10: #{parallel_network_forward.2} parent=5 // pred_check_branch
        %216 = sbr.rel (%p213) target = $region12
      $region11: #{parallel_network_forward.2} parent=5 // pred_region
        %s217 = ssub.s32 %s13, 1
        // Predicated region
        $region13: #{parallel_network_forward.2} parent=11 // pred_check
          %p218 = pneg %p46
        $region14: #{parallel_network_forward.2} parent=11 // pred_check_branch
          %220 = sbr.rel (%p218) target = $region16
        $region15: #{parallel_network_forward.2} parent=11 // pred_region
          %s222 = ssub.s32 16, 16
          %223 = vsyncadd [#allocation5], %s222
          %s225 = sshll.u32 %s0, 4
          %s226 = int_to_ptr.vmem [resolvable:$true] %s225
          %228 = dma.vmem_to_smem %s226, 16, [#allocation4], [#allocation5]
        $region16: #{parallel_network_forward.2} parent=11 // pred_fallthru
          _
        // Predicated region
        $region17: #{parallel_network_forward.2} parent=11 // pred_check
          %p229 = pneg %p175
        $region18: #{parallel_network_forward.2} parent=11 // pred_check_branch
          %231 = sbr.rel (%p229) target = $region20
        $region19: #{parallel_network_forward.2} parent=11 // pred_region
          _
        $region20: #{parallel_network_forward.2} parent=11 // pred_fallthru
          _
      $region12: #{parallel_network_forward.2} parent=5 // pred_fallthru
        _
      %p232 = scmp.lt.s32.totalorder %s13, 4
      // Predicated region
      $region21: #{parallel_network_forward.2} parent=5 // pred_check
        %p233 = pneg %p232
      $region22: #{parallel_network_forward.2} parent=5 // pred_check_branch
        %235 = sbr.rel (%p233) target = $region24
      $region23: #{parallel_network_forward.2} parent=5 // pred_region
        // Predicated region
        $region25: #{parallel_network_forward.2} parent=23 // pred_check
          %p236 = pneg %p68
        $region26: #{parallel_network_forward.2} parent=23 // pred_check_branch
          %238 = sbr.rel (%p236) target = $region28
        $region27: #{parallel_network_forward.2} parent=23 // pred_region
          %p239 = scmp.lt.s32.totalorder %s20, 1
          %s240 = scalar_select %p239, %s20, 1
          %p241 = scmp.lt.s32.totalorder %s21, 1
          %s242 = scalar_select %p241, %s21, 1
          %s243 = smul.addr %s242, 2
          %s244 = smul.addr %s240, 4
          %s245 = sadd.s32 %s243, %s244
          %s246 = smul.addr %s245, 2
          %s247 = scalar_lea.vmem %s1, %s246
        $region28: #{parallel_network_forward.2} parent=23 // pred_fallthru
          _
        // Predicated region
        $region29: #{parallel_network_forward.2} parent=23 // pred_check
          %p248 = pneg %p96
        $region30: #{parallel_network_forward.2} parent=23 // pred_check_branch
          %250 = sbr.rel (%p248) target = $region32
        $region31: #{parallel_network_forward.2} parent=23 // pred_region
          %p251 = scmp.lt.s32.totalorder %s20, 1
          %s252 = scalar_select %p251, %s20, 1
          %p253 = scmp.lt.s32.totalorder %s21, 1
          %s254 = scalar_select %p253, %s21, 1
          %s255 = smul.addr %s254, 2
          %s256 = smul.addr %s252, 4
          %s257 = sadd.s32 %s255, %s256
          %s258 = smul.addr %s257, 2
          %s259 = scalar_lea.vmem %s2, %s258
        $region32: #{parallel_network_forward.2} parent=23 // pred_fallthru
          _
        // Predicated region
        $region33: #{parallel_network_forward.2} parent=23 // pred_check
          %p260 = pneg %p122
        $region34: #{parallel_network_forward.2} parent=23 // pred_check_branch
          %262 = sbr.rel (%p260) target = $region36
        $region35: #{parallel_network_forward.2} parent=23 // pred_region
          %p263 = scmp.lt.s32.totalorder %s20, 1
          %s264 = scalar_select %p263, %s20, 1
          %s265 = smul.addr %s264, 16
          %s266 = smul.addr %s265, 4
          %s267 = scalar_lea.vmem %s3, %s266
        $region36: #{parallel_network_forward.2} parent=23 // pred_fallthru
          _
        // Predicated region
        $region37: #{parallel_network_forward.2} parent=23 // pred_check
          %p268 = pneg %p148
        $region38: #{parallel_network_forward.2} parent=23 // pred_check_branch
          %270 = sbr.rel (%p268) target = $region40
        $region39: #{parallel_network_forward.2} parent=23 // pred_region
          %p271 = scmp.lt.s32.totalorder %s20, 1
          %s272 = scalar_select %p271, %s20, 1
          %s273 = smul.addr %s272, 8
          %s274 = smul.addr %s273, 8
          %s275 = scalar_lea.vmem %s4, %s274
        $region40: #{parallel_network_forward.2} parent=23 // pred_fallthru
          _
      $region24: #{parallel_network_forward.2} parent=5 // pred_fallthru
        _
      %p276 = scmp.le.s32.totalorder 1, %s13
      %p277 = scmp.lt.s32.totalorder %s13, 5
      %p278 = pnand %p276, %p277
      %p279 = pneg %p278
      // Predicated region
      $region41: #{parallel_network_forward.2} parent=5 // pred_check
        _
      $region42: #{parallel_network_forward.2} parent=5 // pred_check_branch
        %281 = sbr.rel (%p278) target = $region44
      $region43: #{parallel_network_forward.2} parent=5 // pred_region
        %s282 = ssub.s32 %s13, 1
        // Predicated region
        $region45: #{parallel_network_forward.2} parent=43 // pred_check
          %p283 = pneg %p46
        $region46: #{parallel_network_forward.2} parent=43 // pred_check_branch
          %285 = sbr.rel (%p283) target = $region48
        $region47: #{parallel_network_forward.2} parent=43 // pred_region
          %286 = dma.done [#allocation5], 16
        $region48: #{parallel_network_forward.2} parent=43 // pred_fallthru
          _
        %287 = sfence
        %p288 = pneg %p46
        %p289 = pneg %p43
        %p290 = scmp.lt.s32.totalorder %s22, 1
        %s291 = scalar_select %p290, %s22, 1
        %p292 = scmp.lt.s32.totalorder %s23, 1
        %s293 = scalar_select %p292, %s23, 1
        %s294 = smul.addr %s293, 2
        %s295 = smul.addr %s291, 4
        %s296 = sadd.s32 %s294, %s295
        %s297 = smul.addr %s296, 2
        %s298 = scalar_lea.vmem %s1, %s297
        %p299 = pneg %p74
        %p300 = pneg %p71
        %p301 = scmp.lt.s32.totalorder %s22, 1
        %s302 = scalar_select %p301, %s22, 1
        %p303 = scmp.lt.s32.totalorder %s23, 1
        %s304 = scalar_select %p303, %s23, 1
        %s305 = smul.addr %s304, 2
        %s306 = smul.addr %s302, 4
        %s307 = sadd.s32 %s305, %s306
        %s308 = smul.addr %s307, 2
        %s309 = scalar_lea.vmem %s2, %s308
        %p310 = pneg %p102
        %p311 = pneg %p99
        %p312 = scmp.lt.s32.totalorder %s22, 1
        %s313 = scalar_select %p312, %s22, 1
        %s314 = smul.addr %s313, 16
        %s315 = smul.addr %s314, 4
        %s316 = scalar_lea.vmem %s3, %s315
        %p317 = pneg %p128
        %p318 = pneg %p125
        %p319 = scmp.lt.s32.totalorder %s22, 1
        %s320 = scalar_select %p319, %s22, 1
        %s321 = smul.addr %s320, 8
        %s322 = smul.addr %s321, 8
        %s323 = scalar_lea.vmem %s4, %s322
        %p324 = pneg %p154
        %p325 = pneg %p151
        %p326 = pneg %p175
        %p327 = pneg %p172
        %p328 = pneg %p203
        %p329 = pneg %p200
        %p330 = scmp.lt.s32.totalorder %s22, 1
        %s331 = scalar_select %p330, %s22, 1
        %p332 = scmp.lt.s32.totalorder %s23, 1
        %s333 = scalar_select %p332, %s23, 1
        %s334 = smul.addr %s333, 2
        %s335 = smul.addr %s331, 4
        %s336 = sadd.s32 %s334, %s335
        %s337 = smul.addr %s336, 2
        %s338 = scalar_lea.vmem %s6, %s337
        %p339 = scmp.lt.s32.totalorder %s22, 1
        %s340 = scalar_select %p339, %s22, 1
        %p341 = scmp.lt.s32.totalorder %s23, 1
        %s342 = scalar_select %p341, %s23, 1
        %s343 = smul.addr %s342, 2
        %s344 = smul.addr %s340, 4
        %s345 = sadd.s32 %s343, %s344
        %s346 = smul.addr %s345, 2
        %s347 = scalar_lea.vmem %s1, %s346
        %p348 = scmp.lt.s32.totalorder %s22, 1
        %s349 = scalar_select %p348, %s22, 1
        %p350 = scmp.lt.s32.totalorder %s23, 1
        %s351 = scalar_select %p350, %s23, 1
        %s352 = smul.addr %s351, 2
        %s353 = smul.addr %s349, 4
        %s354 = sadd.s32 %s352, %s353
        %s355 = smul.addr %s354, 2
        %s356 = scalar_lea.vmem %s2, %s355
        %p357 = scmp.lt.s32.totalorder %s22, 1
        %s358 = scalar_select %p357, %s22, 1
        %s359 = smul.addr %s358, 16
        %s360 = smul.addr %s359, 4
        %s361 = scalar_lea.vmem %s3, %s360
        %p362 = scmp.lt.s32.totalorder %s22, 1
        %s363 = scalar_select %p362, %s22, 1
        %s364 = smul.addr %s363, 8
        %s365 = smul.addr %s364, 8
        %s366 = scalar_lea.vmem %s4, %s365
        %p367 = scmp.lt.s32.totalorder %s22, 1
        %s368 = scalar_select %p367, %s22, 1
        %p369 = scmp.lt.s32.totalorder %s23, 1
        %s370 = scalar_select %p369, %s23, 1
        %s371 = smul.addr %s370, 2
        %s372 = smul.addr %s368, 4
        %s373 = sadd.s32 %s371, %s372
        %s374 = smul.addr %s373, 2
        %s375 = scalar_lea.vmem %s6, %s374
        %s377 = sld [smem:[#allocation4 + %s22]]
        %v378 = vld [vmem:[%s5] sm:$0x3]
        %s379 = scalar_lea.vmem %s5, 2
        %v380 = vld [vmem:[%s379] sm:$0x3]
        %s381 = scalar_lea.vmem %s5, 4
        %v382 = vld [vmem:[%s381] sm:$0x3]
        %383 = vst [vmem:[#allocation2] sm:$0xff] 0.0
        %384 = vst [vmem:[#allocation2 + $0x8] sm:$0xff] 0.0
        %385 = vst [vmem:[#allocation2 + $0x10] sm:$0xff] 0.0
        %386 = vst [vmem:[#allocation2 + $0x18] sm:$0xff] 0.0
        %387 = vst [vmem:[#allocation2 + $0x20] sm:$0xff] 0.0
        %388 = vst [vmem:[#allocation2 + $0x28] sm:$0xff] 0.0
        %389 = vst [vmem:[#allocation2 + $0x30] sm:$0xff] 0.0
        %390 = vst [vmem:[#allocation2 + $0x38] sm:$0xff] 0.0
        %v391 = vld [vmem:[%s347] sm:$0xf]
        %v394 = vunpack.c.l.s4 1983009808
        %v395 = vunpack.c.0.s8 %v394
        %v396 = vlaneseq
        %v397 = vshrl.u32 %v396, 7
        %v398 = vsub.s32 %v395, %v397
        %v399 = vrot.slane %v391, %v398
        %v400 = vcombine.high %v399, %v399
        %403 = vst [vmem:[#allocation2 + $0x8] sm:$0x3] %v399
        %404 = vst [vmem:[#allocation2 + $0x10] sm:$0x3] %v400
        %v405 = vld [vmem:[#allocation2] sm:$0xff]
        %v406 = vld [vmem:[#allocation2 + $0x8] sm:$0xff]
        %v407 = vld [vmem:[#allocation2 + $0x10] sm:$0xff]
        %v408 = vld [vmem:[#allocation2 + $0x20] sm:$0xff]
        %v409 = vld [vmem:[#allocation2 + $0x28] sm:$0xff]
        %v410 = vld [vmem:[#allocation2 + $0x30] sm:$0xff]
        %v412 = vlaneseq
        %v413 = vshrl.u32 %v412, 7
        %v414 = vsub.s32 0, %v413
        %v415 = vrot.slane %v378, %v414
        %v416 = vlaneseq
        %v417 = vshrl.u32 %v416, 7
        %v418 = vsub.s32 1, %v417
        %v419 = vrot.slane %v378, %v418
        %420 = vrot.lane.b32.xlu0 %v415, 111
        %v421 = vpop.permute.xlu0 %420
        %422 = vrot.lane.b32.xlu0 %v419, 111
        %v423 = vpop.permute.xlu0 %422
        %vm424 = vcmask 908288
        %v425 = vsel %vm424, %v421, %v423
        %v429 = vmul.f32 %v405, %v421
        %v430 = vmul.f32 %v406, %v425
        %v431 = vmul.f32 %v407, %v423
        %v432 = vmul.f32 %v408, %v421
        %v433 = vmul.f32 %v409, %v425
        %v434 = vmul.f32 %v410, %v423
        %v435 = vpack.c.bf16 %v432, %v429
        %v436 = vpack.c.bf16 %v433, %v430
        %v437 = vpack.c.bf16 %v434, %v431
        %v441 = vunpack.c.l.b16 %v435
        %v442 = vunpack.c.l.b16 %v436
        %v443 = vunpack.c.l.b16 %v437
        %v444 = vunpack.c.h.b16 %v435
        %v445 = vunpack.c.h.b16 %v436
        %v446 = vunpack.c.h.b16 %v437
        %v447 = vpack.c.b16 %v442, %v441
        %v448 = vpack.c.b16 %v443, %v443
        %v449 = vpack.c.b16 %v445, %v444
        %v450 = vpack.c.b16 %v446, %v446
        %451 = vrot.lane.b32.xlu0 %v447, 17
        %v452 = vpop.permute.xlu0 %451
        %453 = vrot.lane.b32.xlu0 %v448, 17
        %v454 = vpop.permute.xlu0 %453
        %455 = vrot.lane.b32.xlu0 %v449, 17
        %v456 = vpop.permute.xlu0 %455
        %457 = vrot.lane.b32.xlu0 %v450, 17
        %v458 = vpop.permute.xlu0 %457
        %v459 = vrot.slane %v452, 4
        %v460 = vrot.slane %v454, 4
        %v461 = vrot.slane %v456, 4
        %v462 = vrot.slane %v458, 4
        %vm463 = vcmask 1043456
        %v464 = vsel %vm463, %v459, %v460
        %vm465 = vcmask 138240
        %v466 = vsel %vm465, %v452, %v464
        %v467 = vsel %vm463, %v461, %v462
        %v468 = vsel %vm465, %v456, %v467
        %471 = vst [vmem:[#allocation3] sm:$0xff] %v466
        %472 = vst [vmem:[#allocation3 + $0x8] sm:$0xff] %v468
        %v473 = vld [vmem:[#allocation2] sm:$0xff]
        %v474 = vld [vmem:[#allocation2 + $0x8] sm:$0xff]
        %v475 = vld [vmem:[#allocation2 + $0x10] sm:$0xff]
        %v476 = vld [vmem:[#allocation2 + $0x20] sm:$0xff]
        %v477 = vld [vmem:[#allocation2 + $0x28] sm:$0xff]
        %v478 = vld [vmem:[#allocation2 + $0x30] sm:$0xff]
        %v479 = vpack.c.bf16 %v476, %v473
        %v480 = vpack.c.bf16 %v477, %v474
        %v481 = vpack.c.bf16 %v478, %v475
        %v485 = vunpack.c.l.b16 %v479
        %v486 = vunpack.c.l.b16 %v480
        %v487 = vunpack.c.l.b16 %v481
        %v488 = vunpack.c.h.b16 %v479
        %v489 = vunpack.c.h.b16 %v480
        %v490 = vunpack.c.h.b16 %v481
        %v491 = vpack.c.b16 %v486, %v485
        %v492 = vpack.c.b16 %v487, %v487
        %v493 = vpack.c.b16 %v489, %v488
        %v494 = vpack.c.b16 %v490, %v490
        %495 = vrot.lane.b32.xlu0 %v491, 16
        %v496 = vpop.permute.xlu0 %495
        %497 = vrot.lane.b32.xlu0 %v492, 16
        %v498 = vpop.permute.xlu0 %497
        %499 = vrot.lane.b32.xlu0 %v493, 16
        %v500 = vpop.permute.xlu0 %499
        %501 = vrot.lane.b32.xlu0 %v494, 16
        %v502 = vpop.permute.xlu0 %501
        %v503 = vrot.slane %v496, 4
        %v504 = vrot.slane %v498, 4
        %v505 = vrot.slane %v500, 4
        %v506 = vrot.slane %v502, 4
        %v507 = vsel %vm463, %v503, %v504
        %vm508 = vcmask 130048
        %v509 = vsel %vm508, %v496, %v507
        %v510 = vsel %vm463, %v505, %v506
        %v511 = vsel %vm508, %v500, %v510
        %514 = vst [vmem:[#allocation3 + $0x10] sm:$0xff] %v509
        %515 = vst [vmem:[#allocation3 + $0x18] sm:$0xff] %v511
        %v516 = vld [vmem:[#allocation2] sm:$0xff]
        %v517 = vld [vmem:[#allocation2 + $0x8] sm:$0xff]
        %v518 = vld [vmem:[#allocation2 + $0x10] sm:$0xff]
        %v519 = vld [vmem:[#allocation2 + $0x20] sm:$0xff]
        %v520 = vld [vmem:[#allocation2 + $0x28] sm:$0xff]
        %v521 = vld [vmem:[#allocation2 + $0x30] sm:$0xff]
        %v523 = vlaneseq
        %v524 = vshrl.u32 %v523, 7
        %v525 = vsub.s32 0, %v524
        %v526 = vrot.slane %v380, %v525
        %v527 = vlaneseq
        %v528 = vshrl.u32 %v527, 7
        %v529 = vsub.s32 1, %v528
        %v530 = vrot.slane %v380, %v529
        %531 = vrot.lane.b32.xlu0 %v526, 113
        %v532 = vpop.permute.xlu0 %531
        %533 = vrot.lane.b32.xlu0 %v530, 113
        %v534 = vpop.permute.xlu0 %533
        %vm535 = vcmask 924672
        %v536 = vsel %vm535, %v532, %v534
        %v540 = vmul.f32 %v516, %v532
        %v541 = vmul.f32 %v517, %v536
        %v542 = vmul.f32 %v518, %v534
        %v543 = vmul.f32 %v519, %v532
        %v544 = vmul.f32 %v520, %v536
        %v545 = vmul.f32 %v521, %v534
        %v546 = vpack.c.bf16 %v543, %v540
        %v547 = vpack.c.bf16 %v544, %v541
        %v548 = vpack.c.bf16 %v545, %v542
        %v552 = vunpack.c.l.b16 %v546
        %v553 = vunpack.c.l.b16 %v547
        %v554 = vunpack.c.l.b16 %v548
        %v555 = vunpack.c.h.b16 %v546
        %v556 = vunpack.c.h.b16 %v547
        %v557 = vunpack.c.h.b16 %v548
        %v558 = vpack.c.b16 %v553, %v552
        %v559 = vpack.c.b16 %v554, %v554
        %v560 = vpack.c.b16 %v556, %v555
        %v561 = vpack.c.b16 %v557, %v557
        %562 = vrot.lane.b32.xlu0 %v558, 15
        %v563 = vpop.permute.xlu0 %562
        %564 = vrot.lane.b32.xlu0 %v559, 15
        %v565 = vpop.permute.xlu0 %564
        %566 = vrot.lane.b32.xlu0 %v560, 15
        %v567 = vpop.permute.xlu0 %566
        %568 = vrot.lane.b32.xlu0 %v561, 15
        %v569 = vpop.permute.xlu0 %568
        %v570 = vrot.slane %v563, 4
        %v571 = vrot.slane %v565, 4
        %v572 = vrot.slane %v567, 4
        %v573 = vrot.slane %v569, 4
        %v574 = vsel %vm463, %v570, %v571
        %vm575 = vcmask 121856
        %v576 = vsel %vm575, %v563, %v574
        %v577 = vsel %vm463, %v572, %v573
        %v578 = vsel %vm575, %v567, %v577
        %581 = vst [vmem:[#allocation3 + $0x20] sm:$0xff] %v576
        %582 = vst [vmem:[#allocation3 + $0x28] sm:$0xff] %v578
        %v583 = vld [vmem:[#allocation2] sm:$0xff]
        %v584 = vld [vmem:[#allocation2 + $0x8] sm:$0xff]
        %v585 = vld [vmem:[#allocation2 + $0x10] sm:$0xff]
        %v586 = vld [vmem:[#allocation2 + $0x20] sm:$0xff]
        %v587 = vld [vmem:[#allocation2 + $0x28] sm:$0xff]
        %v588 = vld [vmem:[#allocation2 + $0x30] sm:$0xff]
        %589 = vrot.lane.b32.xlu0 %v415, 127
        %v590 = vpop.permute.xlu0 %589
        %591 = vrot.lane.b32.xlu0 %v419, 127
        %v592 = vpop.permute.xlu0 %591
        %vm593 = vcmask 1039360
        %v594 = vsel %vm593, %v590, %v592
        %v598 = vmul.f32 %v583, %v590
        %v599 = vmul.f32 %v584, %v594
        %v600 = vmul.f32 %v585, %v592
        %v601 = vmul.f32 %v586, %v590
        %v602 = vmul.f32 %v587, %v594
        %v603 = vmul.f32 %v588, %v592
        %v604 = vpack.c.bf16 %v601, %v598
        %v605 = vpack.c.bf16 %v602, %v599
        %v606 = vpack.c.bf16 %v603, %v600
        %v610 = vunpack.c.l.b16 %v604
        %v611 = vunpack.c.l.b16 %v605
        %v612 = vunpack.c.l.b16 %v606
        %v613 = vunpack.c.h.b16 %v604
        %v614 = vunpack.c.h.b16 %v605
        %v615 = vunpack.c.h.b16 %v606
        %v616 = vpack.c.b16 %v611, %v610
        %v617 = vpack.c.b16 %v612, %v612
        %v618 = vpack.c.b16 %v614, %v613
        %v619 = vpack.c.b16 %v615, %v615
        %620 = vrot.lane.b32.xlu0 %v616, 1
        %v621 = vpop.permute.xlu0 %620
        %622 = vrot.lane.b32.xlu0 %v617, 1
        %v623 = vpop.permute.xlu0 %622
        %624 = vrot.lane.b32.xlu0 %v618, 1
        %v625 = vpop.permute.xlu0 %624
        %626 = vrot.lane.b32.xlu0 %v619, 1
        %v627 = vpop.permute.xlu0 %626
        %v628 = vrot.slane %v621, 4
        %v629 = vrot.slane %v623, 4
        %v630 = vrot.slane %v625, 4
        %v631 = vrot.slane %v627, 4
        %v632 = vsel %vm463, %v628, %v629
        %vm633 = vcmask 7168
        %v634 = vsel %vm633, %v621, %v632
        %v635 = vsel %vm463, %v630, %v631
        %v636 = vsel %vm633, %v625, %v635
        %639 = vst [vmem:[#allocation3 + $0x30] sm:$0xff] %v634
        %640 = vst [vmem:[#allocation3 + $0x38] sm:$0xff] %v636
        %v641 = vld [vmem:[#allocation2 + $0x8] sm:$0xff]
        %v642 = vld [vmem:[#allocation2 + $0x10] sm:$0xff]
        %v643 = vld [vmem:[#allocation2 + $0x28] sm:$0xff]
        %v644 = vld [vmem:[#allocation2 + $0x30] sm:$0xff]
        %v645 = vpack.c.bf16 %v643, %v641
        %v646 = vpack.c.bf16 %v644, %v642
        %v649 = vunpack.c.l.b16 %v645
        %v650 = vunpack.c.l.b16 %v646
        %v651 = vunpack.c.h.b16 %v645
        %v652 = vunpack.c.h.b16 %v646
        %v653 = vpack.c.b16 %v650, %v649
        %v654 = vpack.c.b16 %v652, %v651
        %657 = vst [vmem:[#allocation3 + $0x40] sm:$0xff] %v653
        %658 = vst [vmem:[#allocation3 + $0x48] sm:$0xff] %v654
        %v659 = vld [vmem:[#allocation2 + $0x8] sm:$0xff]
        %v660 = vld [vmem:[#allocation2 + $0x10] sm:$0xff]
        %v661 = vld [vmem:[#allocation2 + $0x18] sm:$0xff]
        %v662 = vld [vmem:[#allocation2 + $0x28] sm:$0xff]
        %v663 = vld [vmem:[#allocation2 + $0x30] sm:$0xff]
        %v664 = vld [vmem:[#allocation2 + $0x38] sm:$0xff]
        %665 = vrot.lane.b32.xlu0 %v526, 1
        %v666 = vpop.permute.xlu0 %665
        %667 = vrot.lane.b32.xlu0 %v530, 1
        %v668 = vpop.permute.xlu0 %667
        %vm669 = vcmask 7168
        %v670 = vsel %vm669, %v666, %v668
        %v674 = vmul.f32 %v659, %v666
        %v675 = vmul.f32 %v660, %v670
        %v676 = vmul.f32 %v661, %v668
        %v677 = vmul.f32 %v662, %v666
        %v678 = vmul.f32 %v663, %v670
        %v679 = vmul.f32 %v664, %v668
        %v680 = vpack.c.bf16 %v677, %v674
        %v681 = vpack.c.bf16 %v678, %v675
        %v682 = vpack.c.bf16 %v679, %v676
        %v686 = vunpack.c.l.b16 %v680
        %v687 = vunpack.c.l.b16 %v681
        %v688 = vunpack.c.l.b16 %v682
        %v689 = vunpack.c.h.b16 %v680
        %v690 = vunpack.c.h.b16 %v681
        %v691 = vunpack.c.h.b16 %v682
        %v692 = vpack.c.b16 %v687, %v686
        %v693 = vpack.c.b16 %v688, %v688
        %v694 = vpack.c.b16 %v690, %v689
        %v695 = vpack.c.b16 %v691, %v691
        %696 = vrot.lane.b32.xlu0 %v692, 127
        %v697 = vpop.permute.xlu0 %696
        %698 = vrot.lane.b32.xlu0 %v693, 127
        %v699 = vpop.permute.xlu0 %698
        %700 = vrot.lane.b32.xlu0 %v694, 127
        %v701 = vpop.permute.xlu0 %700
        %702 = vrot.lane.b32.xlu0 %v695, 127
        %v703 = vpop.permute.xlu0 %702
        %v704 = vrot.slane %v697, 4
        %v705 = vrot.slane %v699, 4
        %v706 = vrot.slane %v701, 4
        %v707 = vrot.slane %v703, 4
        %v708 = vsel %vm463, %v704, %v705
        %vm709 = vcmask 1039360
        %v710 = vsel %vm709, %v697, %v708
        %v711 = vsel %vm463, %v706, %v707
        %v712 = vsel %vm709, %v701, %v711
        %715 = vst [vmem:[#allocation3 + $0x50] sm:$0xff] %v710
        %716 = vst [vmem:[#allocation3 + $0x58] sm:$0xff] %v712
        %v717 = vld [vmem:[#allocation2 + $0x8] sm:$0xff]
        %v718 = vld [vmem:[#allocation2 + $0x10] sm:$0xff]
        %v719 = vld [vmem:[#allocation2 + $0x18] sm:$0xff]
        %v720 = vld [vmem:[#allocation2 + $0x28] sm:$0xff]
        %v721 = vld [vmem:[#allocation2 + $0x30] sm:$0xff]
        %v722 = vld [vmem:[#allocation2 + $0x38] sm:$0xff]
        %723 = vrot.lane.b32.xlu0 %v415, 15
        %v724 = vpop.permute.xlu0 %723
        %725 = vrot.lane.b32.xlu0 %v419, 15
        %v726 = vpop.permute.xlu0 %725
        %vm727 = vcmask 121856
        %v728 = vsel %vm727, %v724, %v726
        %v732 = vmul.f32 %v717, %v724
        %v733 = vmul.f32 %v718, %v728
        %v734 = vmul.f32 %v719, %v726
        %v735 = vmul.f32 %v720, %v724
        %v736 = vmul.f32 %v721, %v728
        %v737 = vmul.f32 %v722, %v726
        %v738 = vpack.c.bf16 %v735, %v732
        %v739 = vpack.c.bf16 %v736, %v733
        %v740 = vpack.c.bf16 %v737, %v734
        %v744 = vunpack.c.l.b16 %v738
        %v745 = vunpack.c.l.b16 %v739
        %v746 = vunpack.c.l.b16 %v740
        %v747 = vunpack.c.h.b16 %v738
        %v748 = vunpack.c.h.b16 %v739
        %v749 = vunpack.c.h.b16 %v740
        %v750 = vpack.c.b16 %v745, %v744
        %v751 = vpack.c.b16 %v746, %v746
        %v752 = vpack.c.b16 %v748, %v747
        %v753 = vpack.c.b16 %v749, %v749
        %754 = vrot.lane.b32.xlu0 %v750, 113
        %v755 = vpop.permute.xlu0 %754
        %756 = vrot.lane.b32.xlu0 %v751, 113
        %v757 = vpop.permute.xlu0 %756
        %758 = vrot.lane.b32.xlu0 %v752, 113
        %v759 = vpop.permute.xlu0 %758
        %760 = vrot.lane.b32.xlu0 %v753, 113
        %v761 = vpop.permute.xlu0 %760
        %v762 = vrot.slane %v755, 4
        %v763 = vrot.slane %v757, 4
        %v764 = vrot.slane %v759, 4
        %v765 = vrot.slane %v761, 4
        %v766 = vsel %vm463, %v762, %v763
        %vm767 = vcmask 924672
        %v768 = vsel %vm767, %v755, %v766
        %v769 = vsel %vm463, %v764, %v765
        %v770 = vsel %vm767, %v759, %v769
        %773 = vst [vmem:[#allocation3 + $0x60] sm:$0xff] %v768
        %774 = vst [vmem:[#allocation3 + $0x68] sm:$0xff] %v770
        %v775 = vld [vmem:[#allocation2 + $0x8] sm:$0xff]
        %v776 = vld [vmem:[#allocation2 + $0x10] sm:$0xff]
        %v777 = vld [vmem:[#allocation2 + $0x18] sm:$0xff]
        %v778 = vld [vmem:[#allocation2 + $0x28] sm:$0xff]
        %v779 = vld [vmem:[#allocation2 + $0x30] sm:$0xff]
        %v780 = vld [vmem:[#allocation2 + $0x38] sm:$0xff]
        %v781 = vpack.c.bf16 %v778, %v775
        %v782 = vpack.c.bf16 %v779, %v776
        %v783 = vpack.c.bf16 %v780, %v777
        %v787 = vunpack.c.l.b16 %v781
        %v788 = vunpack.c.l.b16 %v782
        %v789 = vunpack.c.l.b16 %v783
        %v790 = vunpack.c.h.b16 %v781
        %v791 = vunpack.c.h.b16 %v782
        %v792 = vunpack.c.h.b16 %v783
        %v793 = vpack.c.b16 %v788, %v787
        %v794 = vpack.c.b16 %v789, %v789
        %v795 = vpack.c.b16 %v791, %v790
        %v796 = vpack.c.b16 %v792, %v792
        %797 = vrot.lane.b32.xlu0 %v793, 112
        %v798 = vpop.permute.xlu0 %797
        %799 = vrot.lane.b32.xlu0 %v794, 112
        %v800 = vpop.permute.xlu0 %799
        %801 = vrot.lane.b32.xlu0 %v795, 112
        %v802 = vpop.permute.xlu0 %801
        %803 = vrot.lane.b32.xlu0 %v796, 112
        %v804 = vpop.permute.xlu0 %803
        %v805 = vrot.slane %v798, 4
        %v806 = vrot.slane %v800, 4
        %v807 = vrot.slane %v802, 4
        %v808 = vrot.slane %v804, 4
        %v809 = vsel %vm463, %v805, %v806
        %vm810 = vcmask 916480
        %v811 = vsel %vm810, %v798, %v809
        %v812 = vsel %vm463, %v807, %v808
        %v813 = vsel %vm810, %v802, %v812
        %816 = vst [vmem:[#allocation3 + $0x70] sm:$0xff] %v811
        %817 = vst [vmem:[#allocation3 + $0x78] sm:$0xff] %v813
        %v818 = vld [vmem:[#allocation2 + $0x8] sm:$0xff]
        %v819 = vld [vmem:[#allocation2 + $0x10] sm:$0xff]
        %v820 = vld [vmem:[#allocation2 + $0x18] sm:$0xff]
        %v821 = vld [vmem:[#allocation2 + $0x28] sm:$0xff]
        %v822 = vld [vmem:[#allocation2 + $0x30] sm:$0xff]
        %v823 = vld [vmem:[#allocation2 + $0x38] sm:$0xff]
        %824 = vrot.lane.b32.xlu0 %v526, 17
        %v825 = vpop.permute.xlu0 %824
        %826 = vrot.lane.b32.xlu0 %v530, 17
        %v827 = vpop.permute.xlu0 %826
        %vm828 = vcmask 138240
        %v829 = vsel %vm828, %v825, %v827
        %v833 = vmul.f32 %v818, %v825
        %v834 = vmul.f32 %v819, %v829
        %v835 = vmul.f32 %v820, %v827
        %v836 = vmul.f32 %v821, %v825
        %v837 = vmul.f32 %v822, %v829
        %v838 = vmul.f32 %v823, %v827
        %v839 = vpack.c.bf16 %v836, %v833
        %v840 = vpack.c.bf16 %v837, %v834
        %v841 = vpack.c.bf16 %v838, %v835
        %v845 = vunpack.c.l.b16 %v839
        %v846 = vunpack.c.l.b16 %v840
        %v847 = vunpack.c.l.b16 %v841
        %v848 = vunpack.c.h.b16 %v839
        %v849 = vunpack.c.h.b16 %v840
        %v850 = vunpack.c.h.b16 %v841
        %v851 = vpack.c.b16 %v846, %v845
        %v852 = vpack.c.b16 %v847, %v847
        %v853 = vpack.c.b16 %v849, %v848
        %v854 = vpack.c.b16 %v850, %v850
        %855 = vrot.lane.b32.xlu0 %v851, 111
        %v856 = vpop.permute.xlu0 %855
        %857 = vrot.lane.b32.xlu0 %v852, 111
        %v858 = vpop.permute.xlu0 %857
        %859 = vrot.lane.b32.xlu0 %v853, 111
        %v860 = vpop.permute.xlu0 %859
        %861 = vrot.lane.b32.xlu0 %v854, 111
        %v862 = vpop.permute.xlu0 %861
        %v863 = vrot.slane %v856, 4
        %v864 = vrot.slane %v858, 4
        %v865 = vrot.slane %v860, 4
        %v866 = vrot.slane %v862, 4
        %v867 = vsel %vm463, %v863, %v864
        %vm868 = vcmask 908288
        %v869 = vsel %vm868, %v856, %v867
        %v870 = vsel %vm463, %v865, %v866
        %v871 = vsel %vm868, %v860, %v870
        %874 = vst [vmem:[#allocation3 + $0x80] sm:$0xff] %v869
        %875 = vst [vmem:[#allocation3 + $0x88] sm:$0xff] %v871
        %v876 = vld [vmem:[%s361] sm:$0xff]
        %v877 = vld [vmem:[%s361 + $0x8] sm:$0xff]
        %v878 = vld [vmem:[#allocation3] sm:$0xff]
        %v879 = vld [vmem:[#allocation3 + $0x8] sm:$0xff]
        %v880 = vld [vmem:[#allocation3 + $0x10] sm:$0xff]
        %v881 = vld [vmem:[#allocation3 + $0x18] sm:$0xff]
        %v882 = vld [vmem:[#allocation3 + $0x20] sm:$0xff]
        %v883 = vld [vmem:[#allocation3 + $0x28] sm:$0xff]
        %v884 = vld [vmem:[#allocation3 + $0x30] sm:$0xff]
        %v885 = vld [vmem:[#allocation3 + $0x38] sm:$0xff]
        %v886 = vld [vmem:[#allocation3 + $0x40] sm:$0xff]
        %v887 = vld [vmem:[#allocation3 + $0x48] sm:$0xff]
        %v888 = vld [vmem:[#allocation3 + $0x50] sm:$0xff]
        %v889 = vld [vmem:[#allocation3 + $0x58] sm:$0xff]
        %v890 = vld [vmem:[#allocation3 + $0x60] sm:$0xff]
        %v891 = vld [vmem:[#allocation3 + $0x68] sm:$0xff]
        %v892 = vld [vmem:[#allocation3 + $0x70] sm:$0xff]
        %v893 = vld [vmem:[#allocation3 + $0x78] sm:$0xff]
        %v894 = vld [vmem:[#allocation3 + $0x80] sm:$0xff]
        %v895 = vld [vmem:[#allocation3 + $0x88] sm:$0xff]
        %v896 = vld [vmem:[%s366] sm:$0xff]
        %v897 = vld [vmem:[%s366 + $0x8] sm:$0xff]
        %899 = vset.pattern.permute.xlu0 0
        %900 = vperm.xlu0 %899, %v896
        %v901 = vpop.permute.xlu0 %900
        %904 = vset.pattern.permute.xlu0 0
        %905 = vperm.xlu0 %904, %v897
        %v906 = vpop.permute.xlu0 %905
        %v910 = vunpack.c.l.b16 %v876
        %v911 = vunpack.c.h.b16 %v876
        %v912 = vunpack.c.l.b16 %v877
        %v913 = vunpack.c.h.b16 %v877
        %v914 = vpack.c.b16 %v912, %v910
        %v915 = vpack.c.b16 %v913, %v911
        %v935 = vunpack.c.l.b16 %v878
        %v936 = vunpack.c.h.b16 %v878
        %v937 = vunpack.c.l.b16 %v879
        %v938 = vunpack.c.h.b16 %v879
        %v939 = vunpack.c.l.b16 %v880
        %v940 = vunpack.c.h.b16 %v880
        %v941 = vunpack.c.l.b16 %v881
        %v942 = vunpack.c.h.b16 %v881
        %v943 = vunpack.c.l.b16 %v882
        %v944 = vunpack.c.h.b16 %v882
        %v945 = vunpack.c.l.b16 %v883
        %v946 = vunpack.c.h.b16 %v883
        %v947 = vunpack.c.l.b16 %v884
        %v948 = vunpack.c.h.b16 %v884
        %v949 = vunpack.c.l.b16 %v885
        %v950 = vunpack.c.h.b16 %v885
        %v951 = vunpack.c.l.b16 %v886
        %v952 = vunpack.c.h.b16 %v886
        %v953 = vunpack.c.l.b16 %v887
        %v954 = vunpack.c.h.b16 %v887
        %v955 = vunpack.c.l.b16 %v888
        %v956 = vunpack.c.h.b16 %v888
        %v957 = vunpack.c.l.b16 %v889
        %v958 = vunpack.c.h.b16 %v889
        %v959 = vunpack.c.l.b16 %v890
        %v960 = vunpack.c.h.b16 %v890
        %v961 = vunpack.c.l.b16 %v891
        %v962 = vunpack.c.h.b16 %v891
        %v963 = vunpack.c.l.b16 %v892
        %v964 = vunpack.c.h.b16 %v892
        %v965 = vunpack.c.l.b16 %v893
        %v966 = vunpack.c.h.b16 %v893
        %v967 = vunpack.c.l.b16 %v894
        %v968 = vunpack.c.h.b16 %v894
        %v969 = vunpack.c.l.b16 %v895
        %v970 = vunpack.c.h.b16 %v895
        %v971 = vpack.c.b16 %v937, %v935
        %v972 = vpack.c.b16 %v938, %v936
        %v973 = vpack.c.b16 %v941, %v939
        %v974 = vpack.c.b16 %v942, %v940
        %v975 = vpack.c.b16 %v945, %v943
        %v976 = vpack.c.b16 %v946, %v944
        %v977 = vpack.c.b16 %v949, %v947
        %v978 = vpack.c.b16 %v950, %v948
        %v979 = vpack.c.b16 %v953, %v951
        %v980 = vpack.c.b16 %v954, %v952
        %v981 = vpack.c.b16 %v957, %v955
        %v982 = vpack.c.b16 %v958, %v956
        %v983 = vpack.c.b16 %v961, %v959
        %v984 = vpack.c.b16 %v962, %v960
        %v985 = vpack.c.b16 %v965, %v963
        %v986 = vpack.c.b16 %v966, %v964
        %v987 = vpack.c.b16 %v969, %v967
        %v988 = vpack.c.b16 %v970, %v968
        %vm1007 = vcmask 130048
        %v1009 = vsel %vm1007, %v915, 0
        %1011 = vmatprep.subr.bf16.mxu0 %v986
        %1012 = vmatpush1.bf16.msra.mxu0 %v985
        %1013 = vmatprep.subr.bf16.mxu0 %v984
        %1014 = vmatpush1.bf16.msra.mxu0 %v983
        %1015 = vmatprep.subr.bf16.mxu0 %v982
        %1016 = vmatpush1.bf16.msra.mxu0 %v981
        %1017 = vmatprep.subr.bf16.mxu0 %v980
        %1018 = vmatpush1.bf16.msra.mxu0 %v979
        %1019 = vmatprep.subr.bf16.mxu0 %v978
        %1020 = vmatpush1.bf16.msra.mxu0 %v977
        %1021 = vmatprep.subr.bf16.mxu0 %v976
        %1022 = vmatpush1.bf16.msra.mxu0 %v975
        %1023 = vmatprep.subr.bf16.mxu0 %v974
        %1024 = vmatpush1.bf16.msra.mxu0 %v973
        %1025 = vmatprep.subr.bf16.mxu0 %v972
        %1026 = vmatpush1.bf16.msra.mxu0 %v971
        %1027 = vmatprep.subr.bf16.mxu0 0
        %1028 = vmatpush2.bf16.msra.mxu0 0
        %1029 = vmatprep.subr.bf16.mxu0 0
        %1030 = vmatpush2.bf16.msra.mxu0 0
        %1031 = vmatprep.subr.bf16.mxu0 0
        %1032 = vmatpush2.bf16.msra.mxu0 0
        %1033 = vmatprep.subr.bf16.mxu0 0
        %1034 = vmatpush2.bf16.msra.mxu0 0
        %1035 = vmatprep.subr.bf16.mxu0 0
        %1036 = vmatpush2.bf16.msra.mxu0 0
        %1037 = vmatprep.subr.bf16.mxu0 0
        %1038 = vmatpush2.bf16.msra.mxu0 0
        %1039 = vmatprep.subr.bf16.mxu0 0
        %1040 = vmatpush2.bf16.msra.mxu0 0
        %1041 = vmatprep.subr.bf16.mxu0 %v988
        %1042 = vmatpush2.bf16.msra.mxu0 %v987
        %1043 = vmatprep.mubr.bf16.mxu0 %v1009
        %1044 = vmatmul.mubr.bf16.gmra.mxu0 %v914
        %v1045 = vpop.f32.mrf.mxu0
        %v1046 = vadd.f32 %v901, %v1045
        %v1047 = vpop.f32.mrf.mxu0
        %v1048 = vadd.f32 %v901, %v1047
        %v1049 = vpop.f32.mrf.mxu0
        %v1050 = vadd.f32 %v906, %v1049
        %v1051 = vpop.f32.mrf.mxu0
        %v1052 = vadd.f32 %v906, %v1051
        %1053 = vdwg.mxu0
        %v1054 = vmax.f32 %v1046, 0.0
        %v1055 = vmax.f32 %v1048, 0.0
        %v1056 = vmax.f32 %v1050, 0.0
        %v1057 = vmax.f32 %v1052, 0.0
        %v1059 = vlaneseq
        %v1060 = vshrl.u32 %v1059, 7
        %v1061 = vsub.s32 0, %v1060
        %v1062 = vrot.slane %v382, %v1061
        %v1063 = vlaneseq
        %v1064 = vshrl.u32 %v1063, 7
        %v1065 = vsub.s32 1, %v1064
        %v1066 = vrot.slane %v382, %v1065
        %v1069 = vmul.f32 %v1054, %v1062
        %v1070 = vmul.f32 %v1055, %v1066
        %v1071 = vmul.f32 %v1056, %v1062
        %v1072 = vmul.f32 %v1057, %v1066
        %1073 = vst [vmem:[#allocation2 + $0x8] sm:$0xff] %v1069
        %1074 = vst [vmem:[#allocation2 + $0x10] sm:$0xff] %v1070
        %1075 = vst [vmem:[#allocation2 + $0x28] sm:$0xff] %v1071
        %1076 = vst [vmem:[#allocation2 + $0x30] sm:$0xff] %v1072
        %v1077 = vld [vmem:[#allocation2] sm:$0xff]
        %v1078 = vld [vmem:[#allocation2 + $0x8] sm:$0xff]
        %v1079 = vld [vmem:[#allocation2 + $0x10] sm:$0xff]
        %v1080 = vld [vmem:[#allocation2 + $0x20] sm:$0xff]
        %v1081 = vld [vmem:[#allocation2 + $0x28] sm:$0xff]
        %v1082 = vld [vmem:[#allocation2 + $0x30] sm:$0xff]
        %v1083 = vmul.f32 %v1077, %v421
        %v1084 = vmul.f32 %v1078, %v425
        %v1085 = vmul.f32 %v1079, %v423
        %v1086 = vmul.f32 %v1080, %v421
        %v1087 = vmul.f32 %v1081, %v425
        %v1088 = vmul.f32 %v1082, %v423
        %v1089 = vpack.c.bf16 %v1086, %v1083
        %v1090 = vpack.c.bf16 %v1087, %v1084
        %v1091 = vpack.c.bf16 %v1088, %v1085
        %v1095 = vunpack.c.l.b16 %v1089
        %v1096 = vunpack.c.l.b16 %v1090
        %v1097 = vunpack.c.l.b16 %v1091
        %v1098 = vunpack.c.h.b16 %v1089
        %v1099 = vunpack.c.h.b16 %v1090
        %v1100 = vunpack.c.h.b16 %v1091
        %v1101 = vpack.c.b16 %v1096, %v1095
        %v1102 = vpack.c.b16 %v1097, %v1097
        %v1103 = vpack.c.b16 %v1099, %v1098
        %v1104 = vpack.c.b16 %v1100, %v1100
        %1105 = vrot.lane.b32.xlu0 %v1101, 17
        %v1106 = vpop.permute.xlu0 %1105
        %1107 = vrot.lane.b32.xlu0 %v1102, 17
        %v1108 = vpop.permute.xlu0 %1107
        %1109 = vrot.lane.b32.xlu0 %v1103, 17
        %v1110 = vpop.permute.xlu0 %1109
        %1111 = vrot.lane.b32.xlu0 %v1104, 17
        %v1112 = vpop.permute.xlu0 %1111
        %v1113 = vrot.slane %v1106, 4
        %v1114 = vrot.slane %v1108, 4
        %v1115 = vrot.slane %v1110, 4
        %v1116 = vrot.slane %v1112, 4
        %v1117 = vsel %vm463, %v1113, %v1114
        %v1118 = vsel %vm465, %v1106, %v1117
        %v1119 = vsel %vm463, %v1115, %v1116
        %v1120 = vsel %vm465, %v1110, %v1119
        %1123 = vst [vmem:[#allocation3] sm:$0xff] %v1118
        %1124 = vst [vmem:[#allocation3 + $0x8] sm:$0xff] %v1120
        %v1125 = vld [vmem:[#allocation2] sm:$0xff]
        %v1126 = vld [vmem:[#allocation2 + $0x8] sm:$0xff]
        %v1127 = vld [vmem:[#allocation2 + $0x10] sm:$0xff]
        %v1128 = vld [vmem:[#allocation2 + $0x20] sm:$0xff]
        %v1129 = vld [vmem:[#allocation2 + $0x28] sm:$0xff]
        %v1130 = vld [vmem:[#allocation2 + $0x30] sm:$0xff]
        %v1131 = vpack.c.bf16 %v1128, %v1125
        %v1132 = vpack.c.bf16 %v1129, %v1126
        %v1133 = vpack.c.bf16 %v1130, %v1127
        %v1137 = vunpack.c.l.b16 %v1131
        %v1138 = vunpack.c.l.b16 %v1132
        %v1139 = vunpack.c.l.b16 %v1133
        %v1140 = vunpack.c.h.b16 %v1131
        %v1141 = vunpack.c.h.b16 %v1132
        %v1142 = vunpack.c.h.b16 %v1133
        %v1143 = vpack.c.b16 %v1138, %v1137
        %v1144 = vpack.c.b16 %v1139, %v1139
        %v1145 = vpack.c.b16 %v1141, %v1140
        %v1146 = vpack.c.b16 %v1142, %v1142
        %1147 = vrot.lane.b32.xlu0 %v1143, 16
        %v1148 = vpop.permute.xlu0 %1147
        %1149 = vrot.lane.b32.xlu0 %v1144, 16
        %v1150 = vpop.permute.xlu0 %1149
        %1151 = vrot.lane.b32.xlu0 %v1145, 16
        %v1152 = vpop.permute.xlu0 %1151
        %1153 = vrot.lane.b32.xlu0 %v1146, 16
        %v1154 = vpop.permute.xlu0 %1153
        %v1155 = vrot.slane %v1148, 4
        %v1156 = vrot.slane %v1150, 4
        %v1157 = vrot.slane %v1152, 4
        %v1158 = vrot.slane %v1154, 4
        %v1159 = vsel %vm463, %v1155, %v1156
        %v1160 = vsel %vm508, %v1148, %v1159
        %v1161 = vsel %vm463, %v1157, %v1158
        %v1162 = vsel %vm508, %v1152, %v1161
        %1165 = vst [vmem:[#allocation3 + $0x10] sm:$0xff] %v1160
        %1166 = vst [vmem:[#allocation3 + $0x18] sm:$0xff] %v1162
        %v1167 = vld [vmem:[#allocation2] sm:$0xff]
        %v1168 = vld [vmem:[#allocation2 + $0x8] sm:$0xff]
        %v1169 = vld [vmem:[#allocation2 + $0x10] sm:$0xff]
        %v1170 = vld [vmem:[#allocation2 + $0x20] sm:$0xff]
        %v1171 = vld [vmem:[#allocation2 + $0x28] sm:$0xff]
        %v1172 = vld [vmem:[#allocation2 + $0x30] sm:$0xff]
        %v1173 = vmul.f32 %v1167, %v532
        %v1174 = vmul.f32 %v1168, %v536
        %v1175 = vmul.f32 %v1169, %v534
        %v1176 = vmul.f32 %v1170, %v532
        %v1177 = vmul.f32 %v1171, %v536
        %v1178 = vmul.f32 %v1172, %v534
        %v1179 = vpack.c.bf16 %v1176, %v1173
        %v1180 = vpack.c.bf16 %v1177, %v1174
        %v1181 = vpack.c.bf16 %v1178, %v1175
        %v1185 = vunpack.c.l.b16 %v1179
        %v1186 = vunpack.c.l.b16 %v1180
        %v1187 = vunpack.c.l.b16 %v1181
        %v1188 = vunpack.c.h.b16 %v1179
        %v1189 = vunpack.c.h.b16 %v1180
        %v1190 = vunpack.c.h.b16 %v1181
        %v1191 = vpack.c.b16 %v1186, %v1185
        %v1192 = vpack.c.b16 %v1187, %v1187
        %v1193 = vpack.c.b16 %v1189, %v1188
        %v1194 = vpack.c.b16 %v1190, %v1190
        %1195 = vrot.lane.b32.xlu0 %v1191, 15
        %v1196 = vpop.permute.xlu0 %1195
        %1197 = vrot.lane.b32.xlu0 %v1192, 15
        %v1198 = vpop.permute.xlu0 %1197
        %1199 = vrot.lane.b32.xlu0 %v1193, 15
        %v1200 = vpop.permute.xlu0 %1199
        %1201 = vrot.lane.b32.xlu0 %v1194, 15
        %v1202 = vpop.permute.xlu0 %1201
        %v1203 = vrot.slane %v1196, 4
        %v1204 = vrot.slane %v1198, 4
        %v1205 = vrot.slane %v1200, 4
        %v1206 = vrot.slane %v1202, 4
        %v1207 = vsel %vm463, %v1203, %v1204
        %v1208 = vsel %vm575, %v1196, %v1207
        %v1209 = vsel %vm463, %v1205, %v1206
        %v1210 = vsel %vm575, %v1200, %v1209
        %1213 = vst [vmem:[#allocation3 + $0x20] sm:$0xff] %v1208
        %1214 = vst [vmem:[#allocation3 + $0x28] sm:$0xff] %v1210
        %v1215 = vld [vmem:[#allocation2] sm:$0xff]
        %v1216 = vld [vmem:[#allocation2 + $0x8] sm:$0xff]
        %v1217 = vld [vmem:[#allocation2 + $0x10] sm:$0xff]
        %v1218 = vld [vmem:[#allocation2 + $0x20] sm:$0xff]
        %v1219 = vld [vmem:[#allocation2 + $0x28] sm:$0xff]
        %v1220 = vld [vmem:[#allocation2 + $0x30] sm:$0xff]
        %v1221 = vmul.f32 %v1215, %v590
        %v1222 = vmul.f32 %v1216, %v594
        %v1223 = vmul.f32 %v1217, %v592
        %v1224 = vmul.f32 %v1218, %v590
        %v1225 = vmul.f32 %v1219, %v594
        %v1226 = vmul.f32 %v1220, %v592
        %v1227 = vpack.c.bf16 %v1224, %v1221
        %v1228 = vpack.c.bf16 %v1225, %v1222
        %v1229 = vpack.c.bf16 %v1226, %v1223
        %v1233 = vunpack.c.l.b16 %v1227
        %v1234 = vunpack.c.l.b16 %v1228
        %v1235 = vunpack.c.l.b16 %v1229
        %v1236 = vunpack.c.h.b16 %v1227
        %v1237 = vunpack.c.h.b16 %v1228
        %v1238 = vunpack.c.h.b16 %v1229
        %v1239 = vpack.c.b16 %v1234, %v1233
        %v1240 = vpack.c.b16 %v1235, %v1235
        %v1241 = vpack.c.b16 %v1237, %v1236
        %v1242 = vpack.c.b16 %v1238, %v1238
        %1243 = vrot.lane.b32.xlu0 %v1239, 1
        %v1244 = vpop.permute.xlu0 %1243
        %1245 = vrot.lane.b32.xlu0 %v1240, 1
        %v1246 = vpop.permute.xlu0 %1245
        %1247 = vrot.lane.b32.xlu0 %v1241, 1
        %v1248 = vpop.permute.xlu0 %1247
        %1249 = vrot.lane.b32.xlu0 %v1242, 1
        %v1250 = vpop.permute.xlu0 %1249
        %v1251 = vrot.slane %v1244, 4
        %v1252 = vrot.slane %v1246, 4
        %v1253 = vrot.slane %v1248, 4
        %v1254 = vrot.slane %v1250, 4
        %v1255 = vsel %vm463, %v1251, %v1252
        %v1256 = vsel %vm633, %v1244, %v1255
        %v1257 = vsel %vm463, %v1253, %v1254
        %v1258 = vsel %vm633, %v1248, %v1257
        %1261 = vst [vmem:[#allocation3 + $0x30] sm:$0xff] %v1256
        %1262 = vst [vmem:[#allocation3 + $0x38] sm:$0xff] %v1258
        %v1263 = vld [vmem:[#allocation2 + $0x8] sm:$0xff]
        %v1264 = vld [vmem:[#allocation2 + $0x10] sm:$0xff]
        %v1265 = vld [vmem:[#allocation2 + $0x28] sm:$0xff]
        %v1266 = vld [vmem:[#allocation2 + $0x30] sm:$0xff]
        %v1267 = vpack.c.bf16 %v1265, %v1263
        %v1268 = vpack.c.bf16 %v1266, %v1264
        %v1271 = vunpack.c.l.b16 %v1267
        %v1272 = vunpack.c.l.b16 %v1268
        %v1273 = vunpack.c.h.b16 %v1267
        %v1274 = vunpack.c.h.b16 %v1268
        %v1275 = vpack.c.b16 %v1272, %v1271
        %v1276 = vpack.c.b16 %v1274, %v1273
        %1279 = vst [vmem:[#allocation3 + $0x40] sm:$0xff] %v1275
        %1280 = vst [vmem:[#allocation3 + $0x48] sm:$0xff] %v1276
        %v1281 = vld [vmem:[#allocation2 + $0x8] sm:$0xff]
        %v1282 = vld [vmem:[#allocation2 + $0x10] sm:$0xff]
        %v1283 = vld [vmem:[#allocation2 + $0x18] sm:$0xff]
        %v1284 = vld [vmem:[#allocation2 + $0x28] sm:$0xff]
        %v1285 = vld [vmem:[#allocation2 + $0x30] sm:$0xff]
        %v1286 = vld [vmem:[#allocation2 + $0x38] sm:$0xff]
        %v1287 = vmul.f32 %v1281, %v666
        %v1288 = vmul.f32 %v1282, %v670
        %v1289 = vmul.f32 %v1283, %v668
        %v1290 = vmul.f32 %v1284, %v666
        %v1291 = vmul.f32 %v1285, %v670
        %v1292 = vmul.f32 %v1286, %v668
        %v1293 = vpack.c.bf16 %v1290, %v1287
        %v1294 = vpack.c.bf16 %v1291, %v1288
        %v1295 = vpack.c.bf16 %v1292, %v1289
        %v1299 = vunpack.c.l.b16 %v1293
        %v1300 = vunpack.c.l.b16 %v1294
        %v1301 = vunpack.c.l.b16 %v1295
        %v1302 = vunpack.c.h.b16 %v1293
        %v1303 = vunpack.c.h.b16 %v1294
        %v1304 = vunpack.c.h.b16 %v1295
        %v1305 = vpack.c.b16 %v1300, %v1299
        %v1306 = vpack.c.b16 %v1301, %v1301
        %v1307 = vpack.c.b16 %v1303, %v1302
        %v1308 = vpack.c.b16 %v1304, %v1304
        %1309 = vrot.lane.b32.xlu0 %v1305, 127
        %v1310 = vpop.permute.xlu0 %1309
        %1311 = vrot.lane.b32.xlu0 %v1306, 127
        %v1312 = vpop.permute.xlu0 %1311
        %1313 = vrot.lane.b32.xlu0 %v1307, 127
        %v1314 = vpop.permute.xlu0 %1313
        %1315 = vrot.lane.b32.xlu0 %v1308, 127
        %v1316 = vpop.permute.xlu0 %1315
        %v1317 = vrot.slane %v1310, 4
        %v1318 = vrot.slane %v1312, 4
        %v1319 = vrot.slane %v1314, 4
        %v1320 = vrot.slane %v1316, 4
        %v1321 = vsel %vm463, %v1317, %v1318
        %v1322 = vsel %vm709, %v1310, %v1321
        %v1323 = vsel %vm463, %v1319, %v1320
        %v1324 = vsel %vm709, %v1314, %v1323
        %1327 = vst [vmem:[#allocation3 + $0x50] sm:$0xff] %v1322
        %1328 = vst [vmem:[#allocation3 + $0x58] sm:$0xff] %v1324
        %v1329 = vld [vmem:[#allocation2 + $0x8] sm:$0xff]
        %v1330 = vld [vmem:[#allocation2 + $0x10] sm:$0xff]
        %v1331 = vld [vmem:[#allocation2 + $0x18] sm:$0xff]
        %v1332 = vld [vmem:[#allocation2 + $0x28] sm:$0xff]
        %v1333 = vld [vmem:[#allocation2 + $0x30] sm:$0xff]
        %v1334 = vld [vmem:[#allocation2 + $0x38] sm:$0xff]
        %v1335 = vmul.f32 %v1329, %v724
        %v1336 = vmul.f32 %v1330, %v728
        %v1337 = vmul.f32 %v1331, %v726
        %v1338 = vmul.f32 %v1332, %v724
        %v1339 = vmul.f32 %v1333, %v728
        %v1340 = vmul.f32 %v1334, %v726
        %v1341 = vpack.c.bf16 %v1338, %v1335
        %v1342 = vpack.c.bf16 %v1339, %v1336
        %v1343 = vpack.c.bf16 %v1340, %v1337
        %v1347 = vunpack.c.l.b16 %v1341
        %v1348 = vunpack.c.l.b16 %v1342
        %v1349 = vunpack.c.l.b16 %v1343
        %v1350 = vunpack.c.h.b16 %v1341
        %v1351 = vunpack.c.h.b16 %v1342
        %v1352 = vunpack.c.h.b16 %v1343
        %v1353 = vpack.c.b16 %v1348, %v1347
        %v1354 = vpack.c.b16 %v1349, %v1349
        %v1355 = vpack.c.b16 %v1351, %v1350
        %v1356 = vpack.c.b16 %v1352, %v1352
        %1357 = vrot.lane.b32.xlu0 %v1353, 113
        %v1358 = vpop.permute.xlu0 %1357
        %1359 = vrot.lane.b32.xlu0 %v1354, 113
        %v1360 = vpop.permute.xlu0 %1359
        %1361 = vrot.lane.b32.xlu0 %v1355, 113
        %v1362 = vpop.permute.xlu0 %1361
        %1363 = vrot.lane.b32.xlu0 %v1356, 113
        %v1364 = vpop.permute.xlu0 %1363
        %v1365 = vrot.slane %v1358, 4
        %v1366 = vrot.slane %v1360, 4
        %v1367 = vrot.slane %v1362, 4
        %v1368 = vrot.slane %v1364, 4
        %v1369 = vsel %vm463, %v1365, %v1366
        %v1370 = vsel %vm767, %v1358, %v1369
        %v1371 = vsel %vm463, %v1367, %v1368
        %v1372 = vsel %vm767, %v1362, %v1371
        %1375 = vst [vmem:[#allocation3 + $0x60] sm:$0xff] %v1370
        %1376 = vst [vmem:[#allocation3 + $0x68] sm:$0xff] %v1372
        %v1377 = vld [vmem:[#allocation2 + $0x8] sm:$0xff]
        %v1378 = vld [vmem:[#allocation2 + $0x10] sm:$0xff]
        %v1379 = vld [vmem:[#allocation2 + $0x18] sm:$0xff]
        %v1380 = vld [vmem:[#allocation2 + $0x28] sm:$0xff]
        %v1381 = vld [vmem:[#allocation2 + $0x30] sm:$0xff]
        %v1382 = vld [vmem:[#allocation2 + $0x38] sm:$0xff]
        %v1383 = vpack.c.bf16 %v1380, %v1377
        %v1384 = vpack.c.bf16 %v1381, %v1378
        %v1385 = vpack.c.bf16 %v1382, %v1379
        %v1389 = vunpack.c.l.b16 %v1383
        %v1390 = vunpack.c.l.b16 %v1384
        %v1391 = vunpack.c.l.b16 %v1385
        %v1392 = vunpack.c.h.b16 %v1383
        %v1393 = vunpack.c.h.b16 %v1384
        %v1394 = vunpack.c.h.b16 %v1385
        %v1395 = vpack.c.b16 %v1390, %v1389
        %v1396 = vpack.c.b16 %v1391, %v1391
        %v1397 = vpack.c.b16 %v1393, %v1392
        %v1398 = vpack.c.b16 %v1394, %v1394
        %1399 = vrot.lane.b32.xlu0 %v1395, 112
        %v1400 = vpop.permute.xlu0 %1399
        %1401 = vrot.lane.b32.xlu0 %v1396, 112
        %v1402 = vpop.permute.xlu0 %1401
        %1403 = vrot.lane.b32.xlu0 %v1397, 112
        %v1404 = vpop.permute.xlu0 %1403
        %1405 = vrot.lane.b32.xlu0 %v1398, 112
        %v1406 = vpop.permute.xlu0 %1405
        %v1407 = vrot.slane %v1400, 4
        %v1408 = vrot.slane %v1402, 4
        %v1409 = vrot.slane %v1404, 4
        %v1410 = vrot.slane %v1406, 4
        %v1411 = vsel %vm463, %v1407, %v1408
        %v1412 = vsel %vm810, %v1400, %v1411
        %v1413 = vsel %vm463, %v1409, %v1410
        %v1414 = vsel %vm810, %v1404, %v1413
        %1417 = vst [vmem:[#allocation3 + $0x70] sm:$0xff] %v1412
        %1418 = vst [vmem:[#allocation3 + $0x78] sm:$0xff] %v1414
        %v1419 = vld [vmem:[#allocation2 + $0x8] sm:$0xff]
        %v1420 = vld [vmem:[#allocation2 + $0x10] sm:$0xff]
        %v1421 = vld [vmem:[#allocation2 + $0x18] sm:$0xff]
        %v1422 = vld [vmem:[#allocation2 + $0x28] sm:$0xff]
        %v1423 = vld [vmem:[#allocation2 + $0x30] sm:$0xff]
        %v1424 = vld [vmem:[#allocation2 + $0x38] sm:$0xff]
        %v1425 = vmul.f32 %v1419, %v825
        %v1426 = vmul.f32 %v1420, %v829
        %v1427 = vmul.f32 %v1421, %v827
        %v1428 = vmul.f32 %v1422, %v825
        %v1429 = vmul.f32 %v1423, %v829
        %v1430 = vmul.f32 %v1424, %v827
        %v1431 = vpack.c.bf16 %v1428, %v1425
        %v1432 = vpack.c.bf16 %v1429, %v1426
        %v1433 = vpack.c.bf16 %v1430, %v1427
        %v1437 = vunpack.c.l.b16 %v1431
        %v1438 = vunpack.c.l.b16 %v1432
        %v1439 = vunpack.c.l.b16 %v1433
        %v1440 = vunpack.c.h.b16 %v1431
        %v1441 = vunpack.c.h.b16 %v1432
        %v1442 = vunpack.c.h.b16 %v1433
        %v1443 = vpack.c.b16 %v1438, %v1437
        %v1444 = vpack.c.b16 %v1439, %v1439
        %v1445 = vpack.c.b16 %v1441, %v1440
        %v1446 = vpack.c.b16 %v1442, %v1442
        %1447 = vrot.lane.b32.xlu0 %v1443, 111
        %v1448 = vpop.permute.xlu0 %1447
        %1449 = vrot.lane.b32.xlu0 %v1444, 111
        %v1450 = vpop.permute.xlu0 %1449
        %1451 = vrot.lane.b32.xlu0 %v1445, 111
        %v1452 = vpop.permute.xlu0 %1451
        %1453 = vrot.lane.b32.xlu0 %v1446, 111
        %v1454 = vpop.permute.xlu0 %1453
        %v1455 = vrot.slane %v1448, 4
        %v1456 = vrot.slane %v1450, 4
        %v1457 = vrot.slane %v1452, 4
        %v1458 = vrot.slane %v1454, 4
        %v1459 = vsel %vm463, %v1455, %v1456
        %v1460 = vsel %vm868, %v1448, %v1459
        %v1461 = vsel %vm463, %v1457, %v1458
        %v1462 = vsel %vm868, %v1452, %v1461
        %1465 = vst [vmem:[#allocation3 + $0x80] sm:$0xff] %v1460
        %1466 = vst [vmem:[#allocation3 + $0x88] sm:$0xff] %v1462
        %s1467 = scalar_lea.vmem %s361, 16
        %v1468 = vld [vmem:[%s1467] sm:$0xff]
        %v1469 = vld [vmem:[%s1467 + $0x8] sm:$0xff]
        %v1470 = vld [vmem:[#allocation3] sm:$0xff]
        %v1471 = vld [vmem:[#allocation3 + $0x8] sm:$0xff]
        %v1472 = vld [vmem:[#allocation3 + $0x10] sm:$0xff]
        %v1473 = vld [vmem:[#allocation3 + $0x18] sm:$0xff]
        %v1474 = vld [vmem:[#allocation3 + $0x20] sm:$0xff]
        %v1475 = vld [vmem:[#allocation3 + $0x28] sm:$0xff]
        %v1476 = vld [vmem:[#allocation3 + $0x30] sm:$0xff]
        %v1477 = vld [vmem:[#allocation3 + $0x38] sm:$0xff]
        %v1478 = vld [vmem:[#allocation3 + $0x40] sm:$0xff]
        %v1479 = vld [vmem:[#allocation3 + $0x48] sm:$0xff]
        %v1480 = vld [vmem:[#allocation3 + $0x50] sm:$0xff]
        %v1481 = vld [vmem:[#allocation3 + $0x58] sm:$0xff]
        %v1482 = vld [vmem:[#allocation3 + $0x60] sm:$0xff]
        %v1483 = vld [vmem:[#allocation3 + $0x68] sm:$0xff]
        %v1484 = vld [vmem:[#allocation3 + $0x70] sm:$0xff]
        %v1485 = vld [vmem:[#allocation3 + $0x78] sm:$0xff]
        %v1486 = vld [vmem:[#allocation3 + $0x80] sm:$0xff]
        %v1487 = vld [vmem:[#allocation3 + $0x88] sm:$0xff]
        %s1488 = scalar_lea.vmem %s366, 16
        %v1489 = vld [vmem:[%s1488] sm:$0xff]
        %v1490 = vld [vmem:[%s1488 + $0x8] sm:$0xff]
        %1492 = vset.pattern.permute.xlu0 0
        %1493 = vperm.xlu0 %1492, %v1489
        %v1494 = vpop.permute.xlu0 %1493
        %1497 = vset.pattern.permute.xlu0 0
        %1498 = vperm.xlu0 %1497, %v1490
        %v1499 = vpop.permute.xlu0 %1498
        %v1503 = vunpack.c.l.b16 %v1468
        %v1504 = vunpack.c.h.b16 %v1468
        %v1505 = vunpack.c.l.b16 %v1469
        %v1506 = vunpack.c.h.b16 %v1469
        %v1507 = vpack.c.b16 %v1505, %v1503
        %v1508 = vpack.c.b16 %v1506, %v1504
        %v1528 = vunpack.c.l.b16 %v1470
        %v1529 = vunpack.c.h.b16 %v1470
        %v1530 = vunpack.c.l.b16 %v1471
        %v1531 = vunpack.c.h.b16 %v1471
        %v1532 = vunpack.c.l.b16 %v1472
        %v1533 = vunpack.c.h.b16 %v1472
        %v1534 = vunpack.c.l.b16 %v1473
        %v1535 = vunpack.c.h.b16 %v1473
        %v1536 = vunpack.c.l.b16 %v1474
        %v1537 = vunpack.c.h.b16 %v1474
        %v1538 = vunpack.c.l.b16 %v1475
        %v1539 = vunpack.c.h.b16 %v1475
        %v1540 = vunpack.c.l.b16 %v1476
        %v1541 = vunpack.c.h.b16 %v1476
        %v1542 = vunpack.c.l.b16 %v1477
        %v1543 = vunpack.c.h.b16 %v1477
        %v1544 = vunpack.c.l.b16 %v1478
        %v1545 = vunpack.c.h.b16 %v1478
        %v1546 = vunpack.c.l.b16 %v1479
        %v1547 = vunpack.c.h.b16 %v1479
        %v1548 = vunpack.c.l.b16 %v1480
        %v1549 = vunpack.c.h.b16 %v1480
        %v1550 = vunpack.c.l.b16 %v1481
        %v1551 = vunpack.c.h.b16 %v1481
        %v1552 = vunpack.c.l.b16 %v1482
        %v1553 = vunpack.c.h.b16 %v1482
        %v1554 = vunpack.c.l.b16 %v1483
        %v1555 = vunpack.c.h.b16 %v1483
        %v1556 = vunpack.c.l.b16 %v1484
        %v1557 = vunpack.c.h.b16 %v1484
        %v1558 = vunpack.c.l.b16 %v1485
        %v1559 = vunpack.c.h.b16 %v1485
        %v1560 = vunpack.c.l.b16 %v1486
        %v1561 = vunpack.c.h.b16 %v1486
        %v1562 = vunpack.c.l.b16 %v1487
        %v1563 = vunpack.c.h.b16 %v1487
        %v1564 = vpack.c.b16 %v1530, %v1528
        %v1565 = vpack.c.b16 %v1531, %v1529
        %v1566 = vpack.c.b16 %v1534, %v1532
        %v1567 = vpack.c.b16 %v1535, %v1533
        %v1568 = vpack.c.b16 %v1538, %v1536
        %v1569 = vpack.c.b16 %v1539, %v1537
        %v1570 = vpack.c.b16 %v1542, %v1540
        %v1571 = vpack.c.b16 %v1543, %v1541
        %v1572 = vpack.c.b16 %v1546, %v1544
        %v1573 = vpack.c.b16 %v1547, %v1545
        %v1574 = vpack.c.b16 %v1550, %v1548
        %v1575 = vpack.c.b16 %v1551, %v1549
        %v1576 = vpack.c.b16 %v1554, %v1552
        %v1577 = vpack.c.b16 %v1555, %v1553
        %v1578 = vpack.c.b16 %v1558, %v1556
        %v1579 = vpack.c.b16 %v1559, %v1557
        %v1580 = vpack.c.b16 %v1562, %v1560
        %v1581 = vpack.c.b16 %v1563, %v1561
        %v1601 = vsel %vm1007, %v1508, 0
        %1603 = vmatprep.subr.bf16.mxu0 %v1579
        %1604 = vmatpush1.bf16.msra.mxu0 %v1578
        %1605 = vmatprep.subr.bf16.mxu0 %v1577
        %1606 = vmatpush1.bf16.msra.mxu0 %v1576
        %1607 = vmatprep.subr.bf16.mxu0 %v1575
        %1608 = vmatpush1.bf16.msra.mxu0 %v1574
        %1609 = vmatprep.subr.bf16.mxu0 %v1573
        %1610 = vmatpush1.bf16.msra.mxu0 %v1572
        %1611 = vmatprep.subr.bf16.mxu0 %v1571
        %1612 = vmatpush1.bf16.msra.mxu0 %v1570
        %1613 = vmatprep.subr.bf16.mxu0 %v1569
        %1614 = vmatpush1.bf16.msra.mxu0 %v1568
        %1615 = vmatprep.subr.bf16.mxu0 %v1567
        %1616 = vmatpush1.bf16.msra.mxu0 %v1566
        %1617 = vmatprep.subr.bf16.mxu0 %v1565
        %1618 = vmatpush1.bf16.msra.mxu0 %v1564
        %1619 = vmatprep.subr.bf16.mxu0 0
        %1620 = vmatpush2.bf16.msra.mxu0 0
        %1621 = vmatprep.subr.bf16.mxu0 0
        %1622 = vmatpush2.bf16.msra.mxu0 0
        %1623 = vmatprep.subr.bf16.mxu0 0
        %1624 = vmatpush2.bf16.msra.mxu0 0
        %1625 = vmatprep.subr.bf16.mxu0 0
        %1626 = vmatpush2.bf16.msra.mxu0 0
        %1627 = vmatprep.subr.bf16.mxu0 0
        %1628 = vmatpush2.bf16.msra.mxu0 0
        %1629 = vmatprep.subr.bf16.mxu0 0
        %1630 = vmatpush2.bf16.msra.mxu0 0
        %1631 = vmatprep.subr.bf16.mxu0 0
        %1632 = vmatpush2.bf16.msra.mxu0 0
        %1633 = vmatprep.subr.bf16.mxu0 %v1581
        %1634 = vmatpush2.bf16.msra.mxu0 %v1580
        %1635 = vmatprep.mubr.bf16.mxu0 %v1601
        %1636 = vmatmul.mubr.bf16.gmra.mxu0 %v1507
        %v1637 = vpop.f32.mrf.mxu0
        %v1638 = vadd.f32 %v1494, %v1637
        %v1639 = vpop.f32.mrf.mxu0
        %v1640 = vadd.f32 %v1494, %v1639
        %v1641 = vpop.f32.mrf.mxu0
        %v1642 = vadd.f32 %v1499, %v1641
        %v1643 = vpop.f32.mrf.mxu0
        %v1644 = vadd.f32 %v1499, %v1643
        %1645 = vdwg.mxu0
        %v1646 = vmax.f32 %v1638, 0.0
        %v1647 = vmax.f32 %v1640, 0.0
        %v1648 = vmax.f32 %v1642, 0.0
        %v1649 = vmax.f32 %v1644, 0.0
        %v1650 = vmul.f32 %v1646, %v1062
        %v1651 = vmul.f32 %v1647, %v1066
        %v1652 = vmul.f32 %v1648, %v1062
        %v1653 = vmul.f32 %v1649, %v1066
        %1654 = vst [vmem:[#allocation2 + $0x8] sm:$0xff] %v1650
        %1655 = vst [vmem:[#allocation2 + $0x10] sm:$0xff] %v1651
        %1656 = vst [vmem:[#allocation2 + $0x28] sm:$0xff] %v1652
        %1657 = vst [vmem:[#allocation2 + $0x30] sm:$0xff] %v1653
        %v1658 = vld [vmem:[#allocation2] sm:$0xff]
        %v1659 = vld [vmem:[#allocation2 + $0x8] sm:$0xff]
        %v1660 = vld [vmem:[#allocation2 + $0x10] sm:$0xff]
        %v1661 = vld [vmem:[#allocation2 + $0x20] sm:$0xff]
        %v1662 = vld [vmem:[#allocation2 + $0x28] sm:$0xff]
        %v1663 = vld [vmem:[#allocation2 + $0x30] sm:$0xff]
        %v1664 = vmul.f32 %v1658, %v421
        %v1665 = vmul.f32 %v1659, %v425
        %v1666 = vmul.f32 %v1660, %v423
        %v1667 = vmul.f32 %v1661, %v421
        %v1668 = vmul.f32 %v1662, %v425
        %v1669 = vmul.f32 %v1663, %v423
        %v1670 = vpack.c.bf16 %v1667, %v1664
        %v1671 = vpack.c.bf16 %v1668, %v1665
        %v1672 = vpack.c.bf16 %v1669, %v1666
        %v1676 = vunpack.c.l.b16 %v1670
        %v1677 = vunpack.c.l.b16 %v1671
        %v1678 = vunpack.c.l.b16 %v1672
        %v1679 = vunpack.c.h.b16 %v1670
        %v1680 = vunpack.c.h.b16 %v1671
        %v1681 = vunpack.c.h.b16 %v1672
        %v1682 = vpack.c.b16 %v1677, %v1676
        %v1683 = vpack.c.b16 %v1678, %v1678
        %v1684 = vpack.c.b16 %v1680, %v1679
        %v1685 = vpack.c.b16 %v1681, %v1681
        %1686 = vrot.lane.b32.xlu0 %v1682, 17
        %v1687 = vpop.permute.xlu0 %1686
        %1688 = vrot.lane.b32.xlu0 %v1683, 17
        %v1689 = vpop.permute.xlu0 %1688
        %1690 = vrot.lane.b32.xlu0 %v1684, 17
        %v1691 = vpop.permute.xlu0 %1690
        %1692 = vrot.lane.b32.xlu0 %v1685, 17
        %v1693 = vpop.permute.xlu0 %1692
        %v1694 = vrot.slane %v1687, 4
        %v1695 = vrot.slane %v1689, 4
        %v1696 = vrot.slane %v1691, 4
        %v1697 = vrot.slane %v1693, 4
        %v1698 = vsel %vm463, %v1694, %v1695
        %v1699 = vsel %vm465, %v1687, %v1698
        %v1700 = vsel %vm463, %v1696, %v1697
        %v1701 = vsel %vm465, %v1691, %v1700
        %1704 = vst [vmem:[#allocation3] sm:$0xff] %v1699
        %1705 = vst [vmem:[#allocation3 + $0x8] sm:$0xff] %v1701
        %v1706 = vld [vmem:[#allocation2] sm:$0xff]
        %v1707 = vld [vmem:[#allocation2 + $0x8] sm:$0xff]
        %v1708 = vld [vmem:[#allocation2 + $0x10] sm:$0xff]
        %v1709 = vld [vmem:[#allocation2 + $0x20] sm:$0xff]
        %v1710 = vld [vmem:[#allocation2 + $0x28] sm:$0xff]
        %v1711 = vld [vmem:[#allocation2 + $0x30] sm:$0xff]
        %v1712 = vpack.c.bf16 %v1709, %v1706
        %v1713 = vpack.c.bf16 %v1710, %v1707
        %v1714 = vpack.c.bf16 %v1711, %v1708
        %v1718 = vunpack.c.l.b16 %v1712
        %v1719 = vunpack.c.l.b16 %v1713
        %v1720 = vunpack.c.l.b16 %v1714
        %v1721 = vunpack.c.h.b16 %v1712
        %v1722 = vunpack.c.h.b16 %v1713
        %v1723 = vunpack.c.h.b16 %v1714
        %v1724 = vpack.c.b16 %v1719, %v1718
        %v1725 = vpack.c.b16 %v1720, %v1720
        %v1726 = vpack.c.b16 %v1722, %v1721
        %v1727 = vpack.c.b16 %v1723, %v1723
        %1728 = vrot.lane.b32.xlu0 %v1724, 16
        %v1729 = vpop.permute.xlu0 %1728
        %1730 = vrot.lane.b32.xlu0 %v1725, 16
        %v1731 = vpop.permute.xlu0 %1730
        %1732 = vrot.lane.b32.xlu0 %v1726, 16
        %v1733 = vpop.permute.xlu0 %1732
        %1734 = vrot.lane.b32.xlu0 %v1727, 16
        %v1735 = vpop.permute.xlu0 %1734
        %v1736 = vrot.slane %v1729, 4
        %v1737 = vrot.slane %v1731, 4
        %v1738 = vrot.slane %v1733, 4
        %v1739 = vrot.slane %v1735, 4
        %v1740 = vsel %vm463, %v1736, %v1737
        %v1741 = vsel %vm508, %v1729, %v1740
        %v1742 = vsel %vm463, %v1738, %v1739
        %v1743 = vsel %vm508, %v1733, %v1742
        %1746 = vst [vmem:[#allocation3 + $0x10] sm:$0xff] %v1741
        %1747 = vst [vmem:[#allocation3 + $0x18] sm:$0xff] %v1743
        %v1748 = vld [vmem:[#allocation2] sm:$0xff]
        %v1749 = vld [vmem:[#allocation2 + $0x8] sm:$0xff]
        %v1750 = vld [vmem:[#allocation2 + $0x10] sm:$0xff]
        %v1751 = vld [vmem:[#allocation2 + $0x20] sm:$0xff]
        %v1752 = vld [vmem:[#allocation2 + $0x28] sm:$0xff]
        %v1753 = vld [vmem:[#allocation2 + $0x30] sm:$0xff]
        %v1754 = vmul.f32 %v1748, %v532
        %v1755 = vmul.f32 %v1749, %v536
        %v1756 = vmul.f32 %v1750, %v534
        %v1757 = vmul.f32 %v1751, %v532
        %v1758 = vmul.f32 %v1752, %v536
        %v1759 = vmul.f32 %v1753, %v534
        %v1760 = vpack.c.bf16 %v1757, %v1754
        %v1761 = vpack.c.bf16 %v1758, %v1755
        %v1762 = vpack.c.bf16 %v1759, %v1756
        %v1766 = vunpack.c.l.b16 %v1760
        %v1767 = vunpack.c.l.b16 %v1761
        %v1768 = vunpack.c.l.b16 %v1762
        %v1769 = vunpack.c.h.b16 %v1760
        %v1770 = vunpack.c.h.b16 %v1761
        %v1771 = vunpack.c.h.b16 %v1762
        %v1772 = vpack.c.b16 %v1767, %v1766
        %v1773 = vpack.c.b16 %v1768, %v1768
        %v1774 = vpack.c.b16 %v1770, %v1769
        %v1775 = vpack.c.b16 %v1771, %v1771
        %1776 = vrot.lane.b32.xlu0 %v1772, 15
        %v1777 = vpop.permute.xlu0 %1776
        %1778 = vrot.lane.b32.xlu0 %v1773, 15
        %v1779 = vpop.permute.xlu0 %1778
        %1780 = vrot.lane.b32.xlu0 %v1774, 15
        %v1781 = vpop.permute.xlu0 %1780
        %1782 = vrot.lane.b32.xlu0 %v1775, 15
        %v1783 = vpop.permute.xlu0 %1782
        %v1784 = vrot.slane %v1777, 4
        %v1785 = vrot.slane %v1779, 4
        %v1786 = vrot.slane %v1781, 4
        %v1787 = vrot.slane %v1783, 4
        %v1788 = vsel %vm463, %v1784, %v1785
        %v1789 = vsel %vm575, %v1777, %v1788
        %v1790 = vsel %vm463, %v1786, %v1787
        %v1791 = vsel %vm575, %v1781, %v1790
        %1794 = vst [vmem:[#allocation3 + $0x20] sm:$0xff] %v1789
        %1795 = vst [vmem:[#allocation3 + $0x28] sm:$0xff] %v1791
        %v1796 = vld [vmem:[#allocation2] sm:$0xff]
        %v1797 = vld [vmem:[#allocation2 + $0x8] sm:$0xff]
        %v1798 = vld [vmem:[#allocation2 + $0x10] sm:$0xff]
        %v1799 = vld [vmem:[#allocation2 + $0x20] sm:$0xff]
        %v1800 = vld [vmem:[#allocation2 + $0x28] sm:$0xff]
        %v1801 = vld [vmem:[#allocation2 + $0x30] sm:$0xff]
        %v1802 = vmul.f32 %v1796, %v590
        %v1803 = vmul.f32 %v1797, %v594
        %v1804 = vmul.f32 %v1798, %v592
        %v1805 = vmul.f32 %v1799, %v590
        %v1806 = vmul.f32 %v1800, %v594
        %v1807 = vmul.f32 %v1801, %v592
        %v1808 = vpack.c.bf16 %v1805, %v1802
        %v1809 = vpack.c.bf16 %v1806, %v1803
        %v1810 = vpack.c.bf16 %v1807, %v1804
        %v1814 = vunpack.c.l.b16 %v1808
        %v1815 = vunpack.c.l.b16 %v1809
        %v1816 = vunpack.c.l.b16 %v1810
        %v1817 = vunpack.c.h.b16 %v1808
        %v1818 = vunpack.c.h.b16 %v1809
        %v1819 = vunpack.c.h.b16 %v1810
        %v1820 = vpack.c.b16 %v1815, %v1814
        %v1821 = vpack.c.b16 %v1816, %v1816
        %v1822 = vpack.c.b16 %v1818, %v1817
        %v1823 = vpack.c.b16 %v1819, %v1819
        %1824 = vrot.lane.b32.xlu0 %v1820, 1
        %v1825 = vpop.permute.xlu0 %1824
        %1826 = vrot.lane.b32.xlu0 %v1821, 1
        %v1827 = vpop.permute.xlu0 %1826
        %1828 = vrot.lane.b32.xlu0 %v1822, 1
        %v1829 = vpop.permute.xlu0 %1828
        %1830 = vrot.lane.b32.xlu0 %v1823, 1
        %v1831 = vpop.permute.xlu0 %1830
        %v1832 = vrot.slane %v1825, 4
        %v1833 = vrot.slane %v1827, 4
        %v1834 = vrot.slane %v1829, 4
        %v1835 = vrot.slane %v1831, 4
        %v1836 = vsel %vm463, %v1832, %v1833
        %v1837 = vsel %vm633, %v1825, %v1836
        %v1838 = vsel %vm463, %v1834, %v1835
        %v1839 = vsel %vm633, %v1829, %v1838
        %1842 = vst [vmem:[#allocation3 + $0x30] sm:$0xff] %v1837
        %1843 = vst [vmem:[#allocation3 + $0x38] sm:$0xff] %v1839
        %v1844 = vld [vmem:[#allocation2 + $0x8] sm:$0xff]
        %v1845 = vld [vmem:[#allocation2 + $0x10] sm:$0xff]
        %v1846 = vld [vmem:[#allocation2 + $0x28] sm:$0xff]
        %v1847 = vld [vmem:[#allocation2 + $0x30] sm:$0xff]
        %v1848 = vpack.c.bf16 %v1846, %v1844
        %v1849 = vpack.c.bf16 %v1847, %v1845
        %v1852 = vunpack.c.l.b16 %v1848
        %v1853 = vunpack.c.l.b16 %v1849
        %v1854 = vunpack.c.h.b16 %v1848
        %v1855 = vunpack.c.h.b16 %v1849
        %v1856 = vpack.c.b16 %v1853, %v1852
        %v1857 = vpack.c.b16 %v1855, %v1854
        %1860 = vst [vmem:[#allocation3 + $0x40] sm:$0xff] %v1856
        %1861 = vst [vmem:[#allocation3 + $0x48] sm:$0xff] %v1857
        %v1862 = vld [vmem:[#allocation2 + $0x8] sm:$0xff]
        %v1863 = vld [vmem:[#allocation2 + $0x10] sm:$0xff]
        %v1864 = vld [vmem:[#allocation2 + $0x18] sm:$0xff]
        %v1865 = vld [vmem:[#allocation2 + $0x28] sm:$0xff]
        %v1866 = vld [vmem:[#allocation2 + $0x30] sm:$0xff]
        %v1867 = vld [vmem:[#allocation2 + $0x38] sm:$0xff]
        %v1868 = vmul.f32 %v1862, %v666
        %v1869 = vmul.f32 %v1863, %v670
        %v1870 = vmul.f32 %v1864, %v668
        %v1871 = vmul.f32 %v1865, %v666
        %v1872 = vmul.f32 %v1866, %v670
        %v1873 = vmul.f32 %v1867, %v668
        %v1874 = vpack.c.bf16 %v1871, %v1868
        %v1875 = vpack.c.bf16 %v1872, %v1869
        %v1876 = vpack.c.bf16 %v1873, %v1870
        %v1880 = vunpack.c.l.b16 %v1874
        %v1881 = vunpack.c.l.b16 %v1875
        %v1882 = vunpack.c.l.b16 %v1876
        %v1883 = vunpack.c.h.b16 %v1874
        %v1884 = vunpack.c.h.b16 %v1875
        %v1885 = vunpack.c.h.b16 %v1876
        %v1886 = vpack.c.b16 %v1881, %v1880
        %v1887 = vpack.c.b16 %v1882, %v1882
        %v1888 = vpack.c.b16 %v1884, %v1883
        %v1889 = vpack.c.b16 %v1885, %v1885
        %1890 = vrot.lane.b32.xlu0 %v1886, 127
        %v1891 = vpop.permute.xlu0 %1890
        %1892 = vrot.lane.b32.xlu0 %v1887, 127
        %v1893 = vpop.permute.xlu0 %1892
        %1894 = vrot.lane.b32.xlu0 %v1888, 127
        %v1895 = vpop.permute.xlu0 %1894
        %1896 = vrot.lane.b32.xlu0 %v1889, 127
        %v1897 = vpop.permute.xlu0 %1896
        %v1898 = vrot.slane %v1891, 4
        %v1899 = vrot.slane %v1893, 4
        %v1900 = vrot.slane %v1895, 4
        %v1901 = vrot.slane %v1897, 4
        %v1902 = vsel %vm463, %v1898, %v1899
        %v1903 = vsel %vm709, %v1891, %v1902
        %v1904 = vsel %vm463, %v1900, %v1901
        %v1905 = vsel %vm709, %v1895, %v1904
        %1908 = vst [vmem:[#allocation3 + $0x50] sm:$0xff] %v1903
        %1909 = vst [vmem:[#allocation3 + $0x58] sm:$0xff] %v1905
        %v1910 = vld [vmem:[#allocation2 + $0x8] sm:$0xff]
        %v1911 = vld [vmem:[#allocation2 + $0x10] sm:$0xff]
        %v1912 = vld [vmem:[#allocation2 + $0x18] sm:$0xff]
        %v1913 = vld [vmem:[#allocation2 + $0x28] sm:$0xff]
        %v1914 = vld [vmem:[#allocation2 + $0x30] sm:$0xff]
        %v1915 = vld [vmem:[#allocation2 + $0x38] sm:$0xff]
        %v1916 = vmul.f32 %v1910, %v724
        %v1917 = vmul.f32 %v1911, %v728
        %v1918 = vmul.f32 %v1912, %v726
        %v1919 = vmul.f32 %v1913, %v724
        %v1920 = vmul.f32 %v1914, %v728
        %v1921 = vmul.f32 %v1915, %v726
        %v1922 = vpack.c.bf16 %v1919, %v1916
        %v1923 = vpack.c.bf16 %v1920, %v1917
        %v1924 = vpack.c.bf16 %v1921, %v1918
        %v1928 = vunpack.c.l.b16 %v1922
        %v1929 = vunpack.c.l.b16 %v1923
        %v1930 = vunpack.c.l.b16 %v1924
        %v1931 = vunpack.c.h.b16 %v1922
        %v1932 = vunpack.c.h.b16 %v1923
        %v1933 = vunpack.c.h.b16 %v1924
        %v1934 = vpack.c.b16 %v1929, %v1928
        %v1935 = vpack.c.b16 %v1930, %v1930
        %v1936 = vpack.c.b16 %v1932, %v1931
        %v1937 = vpack.c.b16 %v1933, %v1933
        %1938 = vrot.lane.b32.xlu0 %v1934, 113
        %v1939 = vpop.permute.xlu0 %1938
        %1940 = vrot.lane.b32.xlu0 %v1935, 113
        %v1941 = vpop.permute.xlu0 %1940
        %1942 = vrot.lane.b32.xlu0 %v1936, 113
        %v1943 = vpop.permute.xlu0 %1942
        %1944 = vrot.lane.b32.xlu0 %v1937, 113
        %v1945 = vpop.permute.xlu0 %1944
        %v1946 = vrot.slane %v1939, 4
        %v1947 = vrot.slane %v1941, 4
        %v1948 = vrot.slane %v1943, 4
        %v1949 = vrot.slane %v1945, 4
        %v1950 = vsel %vm463, %v1946, %v1947
        %v1951 = vsel %vm767, %v1939, %v1950
        %v1952 = vsel %vm463, %v1948, %v1949
        %v1953 = vsel %vm767, %v1943, %v1952
        %1956 = vst [vmem:[#allocation3 + $0x60] sm:$0xff] %v1951
        %1957 = vst [vmem:[#allocation3 + $0x68] sm:$0xff] %v1953
        %v1958 = vld [vmem:[#allocation2 + $0x8] sm:$0xff]
        %v1959 = vld [vmem:[#allocation2 + $0x10] sm:$0xff]
        %v1960 = vld [vmem:[#allocation2 + $0x18] sm:$0xff]
        %v1961 = vld [vmem:[#allocation2 + $0x28] sm:$0xff]
        %v1962 = vld [vmem:[#allocation2 + $0x30] sm:$0xff]
        %v1963 = vld [vmem:[#allocation2 + $0x38] sm:$0xff]
        %v1964 = vpack.c.bf16 %v1961, %v1958
        %v1965 = vpack.c.bf16 %v1962, %v1959
        %v1966 = vpack.c.bf16 %v1963, %v1960
        %v1970 = vunpack.c.l.b16 %v1964
        %v1971 = vunpack.c.l.b16 %v1965
        %v1972 = vunpack.c.l.b16 %v1966
        %v1973 = vunpack.c.h.b16 %v1964
        %v1974 = vunpack.c.h.b16 %v1965
        %v1975 = vunpack.c.h.b16 %v1966
        %v1976 = vpack.c.b16 %v1971, %v1970
        %v1977 = vpack.c.b16 %v1972, %v1972
        %v1978 = vpack.c.b16 %v1974, %v1973
        %v1979 = vpack.c.b16 %v1975, %v1975
        %1980 = vrot.lane.b32.xlu0 %v1976, 112
        %v1981 = vpop.permute.xlu0 %1980
        %1982 = vrot.lane.b32.xlu0 %v1977, 112
        %v1983 = vpop.permute.xlu0 %1982
        %1984 = vrot.lane.b32.xlu0 %v1978, 112
        %v1985 = vpop.permute.xlu0 %1984
        %1986 = vrot.lane.b32.xlu0 %v1979, 112
        %v1987 = vpop.permute.xlu0 %1986
        %v1988 = vrot.slane %v1981, 4
        %v1989 = vrot.slane %v1983, 4
        %v1990 = vrot.slane %v1985, 4
        %v1991 = vrot.slane %v1987, 4
        %v1992 = vsel %vm463, %v1988, %v1989
        %v1993 = vsel %vm810, %v1981, %v1992
        %v1994 = vsel %vm463, %v1990, %v1991
        %v1995 = vsel %vm810, %v1985, %v1994
        %1998 = vst [vmem:[#allocation3 + $0x70] sm:$0xff] %v1993
        %1999 = vst [vmem:[#allocation3 + $0x78] sm:$0xff] %v1995
        %v2000 = vld [vmem:[#allocation2 + $0x8] sm:$0xff]
        %v2001 = vld [vmem:[#allocation2 + $0x10] sm:$0xff]
        %v2002 = vld [vmem:[#allocation2 + $0x18] sm:$0xff]
        %v2003 = vld [vmem:[#allocation2 + $0x28] sm:$0xff]
        %v2004 = vld [vmem:[#allocation2 + $0x30] sm:$0xff]
        %v2005 = vld [vmem:[#allocation2 + $0x38] sm:$0xff]
        %v2006 = vmul.f32 %v2000, %v825
        %v2007 = vmul.f32 %v2001, %v829
        %v2008 = vmul.f32 %v2002, %v827
        %v2009 = vmul.f32 %v2003, %v825
        %v2010 = vmul.f32 %v2004, %v829
        %v2011 = vmul.f32 %v2005, %v827
        %v2012 = vpack.c.bf16 %v2009, %v2006
        %v2013 = vpack.c.bf16 %v2010, %v2007
        %v2014 = vpack.c.bf16 %v2011, %v2008
        %v2018 = vunpack.c.l.b16 %v2012
        %v2019 = vunpack.c.l.b16 %v2013
        %v2020 = vunpack.c.l.b16 %v2014
        %v2021 = vunpack.c.h.b16 %v2012
        %v2022 = vunpack.c.h.b16 %v2013
        %v2023 = vunpack.c.h.b16 %v2014
        %v2024 = vpack.c.b16 %v2019, %v2018
        %v2025 = vpack.c.b16 %v2020, %v2020
        %v2026 = vpack.c.b16 %v2022, %v2021
        %v2027 = vpack.c.b16 %v2023, %v2023
        %2028 = vrot.lane.b32.xlu0 %v2024, 111
        %v2029 = vpop.permute.xlu0 %2028
        %2030 = vrot.lane.b32.xlu0 %v2025, 111
        %v2031 = vpop.permute.xlu0 %2030
        %2032 = vrot.lane.b32.xlu0 %v2026, 111
        %v2033 = vpop.permute.xlu0 %2032
        %2034 = vrot.lane.b32.xlu0 %v2027, 111
        %v2035 = vpop.permute.xlu0 %2034
        %v2036 = vrot.slane %v2029, 4
        %v2037 = vrot.slane %v2031, 4
        %v2038 = vrot.slane %v2033, 4
        %v2039 = vrot.slane %v2035, 4
        %v2040 = vsel %vm463, %v2036, %v2037
        %v2041 = vsel %vm868, %v2029, %v2040
        %v2042 = vsel %vm463, %v2038, %v2039
        %v2043 = vsel %vm868, %v2033, %v2042
        %2046 = vst [vmem:[#allocation3 + $0x80] sm:$0xff] %v2041
        %2047 = vst [vmem:[#allocation3 + $0x88] sm:$0xff] %v2043
        %s2048 = scalar_lea.vmem %s361, 32
        %v2049 = vld [vmem:[%s2048] sm:$0xff]
        %v2050 = vld [vmem:[%s2048 + $0x8] sm:$0xff]
        %v2051 = vld [vmem:[#allocation3] sm:$0xff]
        %v2052 = vld [vmem:[#allocation3 + $0x8] sm:$0xff]
        %v2053 = vld [vmem:[#allocation3 + $0x10] sm:$0xff]
        %v2054 = vld [vmem:[#allocation3 + $0x18] sm:$0xff]
        %v2055 = vld [vmem:[#allocation3 + $0x20] sm:$0xff]
        %v2056 = vld [vmem:[#allocation3 + $0x28] sm:$0xff]
        %v2057 = vld [vmem:[#allocation3 + $0x30] sm:$0xff]
        %v2058 = vld [vmem:[#allocation3 + $0x38] sm:$0xff]
        %v2059 = vld [vmem:[#allocation3 + $0x40] sm:$0xff]
        %v2060 = vld [vmem:[#allocation3 + $0x48] sm:$0xff]
        %v2061 = vld [vmem:[#allocation3 + $0x50] sm:$0xff]
        %v2062 = vld [vmem:[#allocation3 + $0x58] sm:$0xff]
        %v2063 = vld [vmem:[#allocation3 + $0x60] sm:$0xff]
        %v2064 = vld [vmem:[#allocation3 + $0x68] sm:$0xff]
        %v2065 = vld [vmem:[#allocation3 + $0x70] sm:$0xff]
        %v2066 = vld [vmem:[#allocation3 + $0x78] sm:$0xff]
        %v2067 = vld [vmem:[#allocation3 + $0x80] sm:$0xff]
        %v2068 = vld [vmem:[#allocation3 + $0x88] sm:$0xff]
        %s2069 = scalar_lea.vmem %s366, 32
        %v2070 = vld [vmem:[%s2069] sm:$0xff]
        %v2071 = vld [vmem:[%s2069 + $0x8] sm:$0xff]
        %2073 = vset.pattern.permute.xlu0 0
        %2074 = vperm.xlu0 %2073, %v2070
        %v2075 = vpop.permute.xlu0 %2074
        %2078 = vset.pattern.permute.xlu0 0
        %2079 = vperm.xlu0 %2078, %v2071
        %v2080 = vpop.permute.xlu0 %2079
        %v2084 = vunpack.c.l.b16 %v2049
        %v2085 = vunpack.c.h.b16 %v2049
        %v2086 = vunpack.c.l.b16 %v2050
        %v2087 = vunpack.c.h.b16 %v2050
        %v2088 = vpack.c.b16 %v2086, %v2084
        %v2089 = vpack.c.b16 %v2087, %v2085
        %v2109 = vunpack.c.l.b16 %v2051
        %v2110 = vunpack.c.h.b16 %v2051
        %v2111 = vunpack.c.l.b16 %v2052
        %v2112 = vunpack.c.h.b16 %v2052
        %v2113 = vunpack.c.l.b16 %v2053
        %v2114 = vunpack.c.h.b16 %v2053
        %v2115 = vunpack.c.l.b16 %v2054
        %v2116 = vunpack.c.h.b16 %v2054
        %v2117 = vunpack.c.l.b16 %v2055
        %v2118 = vunpack.c.h.b16 %v2055
        %v2119 = vunpack.c.l.b16 %v2056
        %v2120 = vunpack.c.h.b16 %v2056
        %v2121 = vunpack.c.l.b16 %v2057
        %v2122 = vunpack.c.h.b16 %v2057
        %v2123 = vunpack.c.l.b16 %v2058
        %v2124 = vunpack.c.h.b16 %v2058
        %v2125 = vunpack.c.l.b16 %v2059
        %v2126 = vunpack.c.h.b16 %v2059
        %v2127 = vunpack.c.l.b16 %v2060
        %v2128 = vunpack.c.h.b16 %v2060
        %v2129 = vunpack.c.l.b16 %v2061
        %v2130 = vunpack.c.h.b16 %v2061
        %v2131 = vunpack.c.l.b16 %v2062
        %v2132 = vunpack.c.h.b16 %v2062
        %v2133 = vunpack.c.l.b16 %v2063
        %v2134 = vunpack.c.h.b16 %v2063
        %v2135 = vunpack.c.l.b16 %v2064
        %v2136 = vunpack.c.h.b16 %v2064
        %v2137 = vunpack.c.l.b16 %v2065
        %v2138 = vunpack.c.h.b16 %v2065
        %v2139 = vunpack.c.l.b16 %v2066
        %v2140 = vunpack.c.h.b16 %v2066
        %v2141 = vunpack.c.l.b16 %v2067
        %v2142 = vunpack.c.h.b16 %v2067
        %v2143 = vunpack.c.l.b16 %v2068
        %v2144 = vunpack.c.h.b16 %v2068
        %v2145 = vpack.c.b16 %v2111, %v2109
        %v2146 = vpack.c.b16 %v2112, %v2110
        %v2147 = vpack.c.b16 %v2115, %v2113
        %v2148 = vpack.c.b16 %v2116, %v2114
        %v2149 = vpack.c.b16 %v2119, %v2117
        %v2150 = vpack.c.b16 %v2120, %v2118
        %v2151 = vpack.c.b16 %v2123, %v2121
        %v2152 = vpack.c.b16 %v2124, %v2122
        %v2153 = vpack.c.b16 %v2127, %v2125
        %v2154 = vpack.c.b16 %v2128, %v2126
        %v2155 = vpack.c.b16 %v2131, %v2129
        %v2156 = vpack.c.b16 %v2132, %v2130
        %v2157 = vpack.c.b16 %v2135, %v2133
        %v2158 = vpack.c.b16 %v2136, %v2134
        %v2159 = vpack.c.b16 %v2139, %v2137
        %v2160 = vpack.c.b16 %v2140, %v2138
        %v2161 = vpack.c.b16 %v2143, %v2141
        %v2162 = vpack.c.b16 %v2144, %v2142
        %v2182 = vsel %vm1007, %v2089, 0
        %2184 = vmatprep.subr.bf16.mxu0 %v2160
        %2185 = vmatpush1.bf16.msra.mxu0 %v2159
        %2186 = vmatprep.subr.bf16.mxu0 %v2158
        %2187 = vmatpush1.bf16.msra.mxu0 %v2157
        %2188 = vmatprep.subr.bf16.mxu0 %v2156
        %2189 = vmatpush1.bf16.msra.mxu0 %v2155
        %2190 = vmatprep.subr.bf16.mxu0 %v2154
        %2191 = vmatpush1.bf16.msra.mxu0 %v2153
        %2192 = vmatprep.subr.bf16.mxu0 %v2152
        %2193 = vmatpush1.bf16.msra.mxu0 %v2151
        %2194 = vmatprep.subr.bf16.mxu0 %v2150
        %2195 = vmatpush1.bf16.msra.mxu0 %v2149
        %2196 = vmatprep.subr.bf16.mxu0 %v2148
        %2197 = vmatpush1.bf16.msra.mxu0 %v2147
        %2198 = vmatprep.subr.bf16.mxu0 %v2146
        %2199 = vmatpush1.bf16.msra.mxu0 %v2145
        %2200 = vmatprep.subr.bf16.mxu0 0
        %2201 = vmatpush2.bf16.msra.mxu0 0
        %2202 = vmatprep.subr.bf16.mxu0 0
        %2203 = vmatpush2.bf16.msra.mxu0 0
        %2204 = vmatprep.subr.bf16.mxu0 0
        %2205 = vmatpush2.bf16.msra.mxu0 0
        %2206 = vmatprep.subr.bf16.mxu0 0
        %2207 = vmatpush2.bf16.msra.mxu0 0
        %2208 = vmatprep.subr.bf16.mxu0 0
        %2209 = vmatpush2.bf16.msra.mxu0 0
        %2210 = vmatprep.subr.bf16.mxu0 0
        %2211 = vmatpush2.bf16.msra.mxu0 0
        %2212 = vmatprep.subr.bf16.mxu0 0
        %2213 = vmatpush2.bf16.msra.mxu0 0
        %2214 = vmatprep.subr.bf16.mxu0 %v2162
        %2215 = vmatpush2.bf16.msra.mxu0 %v2161
        %2216 = vmatprep.mubr.bf16.mxu0 %v2182
        %2217 = vmatmul.mubr.bf16.gmra.mxu0 %v2088
        %v2218 = vpop.f32.mrf.mxu0
        %v2219 = vadd.f32 %v2075, %v2218
        %v2220 = vpop.f32.mrf.mxu0
        %v2221 = vadd.f32 %v2075, %v2220
        %v2222 = vpop.f32.mrf.mxu0
        %v2223 = vadd.f32 %v2080, %v2222
        %v2224 = vpop.f32.mrf.mxu0
        %v2225 = vadd.f32 %v2080, %v2224
        %2226 = vdwg.mxu0
        %v2227 = vmax.f32 %v2219, 0.0
        %v2228 = vmax.f32 %v2221, 0.0
        %v2229 = vmax.f32 %v2223, 0.0
        %v2230 = vmax.f32 %v2225, 0.0
        %v2231 = vmul.f32 %v2227, %v1062
        %v2232 = vmul.f32 %v2228, %v1066
        %v2233 = vmul.f32 %v2229, %v1062
        %v2234 = vmul.f32 %v2230, %v1066
        %2235 = vst [vmem:[#allocation2 + $0x8] sm:$0xff] %v2231
        %2236 = vst [vmem:[#allocation2 + $0x10] sm:$0xff] %v2232
        %2237 = vst [vmem:[#allocation2 + $0x28] sm:$0xff] %v2233
        %2238 = vst [vmem:[#allocation2 + $0x30] sm:$0xff] %v2234
        %v2239 = vld [vmem:[#allocation2] sm:$0xff]
        %v2240 = vld [vmem:[#allocation2 + $0x8] sm:$0xff]
        %v2241 = vld [vmem:[#allocation2 + $0x10] sm:$0xff]
        %v2242 = vld [vmem:[#allocation2 + $0x20] sm:$0xff]
        %v2243 = vld [vmem:[#allocation2 + $0x28] sm:$0xff]
        %v2244 = vld [vmem:[#allocation2 + $0x30] sm:$0xff]
        %v2245 = vmul.f32 %v2239, %v421
        %v2246 = vmul.f32 %v2240, %v425
        %v2247 = vmul.f32 %v2241, %v423
        %v2248 = vmul.f32 %v2242, %v421
        %v2249 = vmul.f32 %v2243, %v425
        %v2250 = vmul.f32 %v2244, %v423
        %v2251 = vpack.c.bf16 %v2248, %v2245
        %v2252 = vpack.c.bf16 %v2249, %v2246
        %v2253 = vpack.c.bf16 %v2250, %v2247
        %v2257 = vunpack.c.l.b16 %v2251
        %v2258 = vunpack.c.l.b16 %v2252
        %v2259 = vunpack.c.l.b16 %v2253
        %v2260 = vunpack.c.h.b16 %v2251
        %v2261 = vunpack.c.h.b16 %v2252
        %v2262 = vunpack.c.h.b16 %v2253
        %v2263 = vpack.c.b16 %v2258, %v2257
        %v2264 = vpack.c.b16 %v2259, %v2259
        %v2265 = vpack.c.b16 %v2261, %v2260
        %v2266 = vpack.c.b16 %v2262, %v2262
        %2267 = vrot.lane.b32.xlu0 %v2263, 17
        %v2268 = vpop.permute.xlu0 %2267
        %2269 = vrot.lane.b32.xlu0 %v2264, 17
        %v2270 = vpop.permute.xlu0 %2269
        %2271 = vrot.lane.b32.xlu0 %v2265, 17
        %v2272 = vpop.permute.xlu0 %2271
        %2273 = vrot.lane.b32.xlu0 %v2266, 17
        %v2274 = vpop.permute.xlu0 %2273
        %v2275 = vrot.slane %v2268, 4
        %v2276 = vrot.slane %v2270, 4
        %v2277 = vrot.slane %v2272, 4
        %v2278 = vrot.slane %v2274, 4
        %v2279 = vsel %vm463, %v2275, %v2276
        %v2280 = vsel %vm465, %v2268, %v2279
        %v2281 = vsel %vm463, %v2277, %v2278
        %v2282 = vsel %vm465, %v2272, %v2281
        %2285 = vst [vmem:[#allocation3] sm:$0xff] %v2280
        %2286 = vst [vmem:[#allocation3 + $0x8] sm:$0xff] %v2282
        %v2287 = vld [vmem:[#allocation2] sm:$0xff]
        %v2288 = vld [vmem:[#allocation2 + $0x8] sm:$0xff]
        %v2289 = vld [vmem:[#allocation2 + $0x10] sm:$0xff]
        %v2290 = vld [vmem:[#allocation2 + $0x20] sm:$0xff]
        %v2291 = vld [vmem:[#allocation2 + $0x28] sm:$0xff]
        %v2292 = vld [vmem:[#allocation2 + $0x30] sm:$0xff]
        %v2293 = vpack.c.bf16 %v2290, %v2287
        %v2294 = vpack.c.bf16 %v2291, %v2288
        %v2295 = vpack.c.bf16 %v2292, %v2289
        %v2299 = vunpack.c.l.b16 %v2293
        %v2300 = vunpack.c.l.b16 %v2294
        %v2301 = vunpack.c.l.b16 %v2295
        %v2302 = vunpack.c.h.b16 %v2293
        %v2303 = vunpack.c.h.b16 %v2294
        %v2304 = vunpack.c.h.b16 %v2295
        %v2305 = vpack.c.b16 %v2300, %v2299
        %v2306 = vpack.c.b16 %v2301, %v2301
        %v2307 = vpack.c.b16 %v2303, %v2302
        %v2308 = vpack.c.b16 %v2304, %v2304
        %2309 = vrot.lane.b32.xlu0 %v2305, 16
        %v2310 = vpop.permute.xlu0 %2309
        %2311 = vrot.lane.b32.xlu0 %v2306, 16
        %v2312 = vpop.permute.xlu0 %2311
        %2313 = vrot.lane.b32.xlu0 %v2307, 16
        %v2314 = vpop.permute.xlu0 %2313
        %2315 = vrot.lane.b32.xlu0 %v2308, 16
        %v2316 = vpop.permute.xlu0 %2315
        %v2317 = vrot.slane %v2310, 4
        %v2318 = vrot.slane %v2312, 4
        %v2319 = vrot.slane %v2314, 4
        %v2320 = vrot.slane %v2316, 4
        %v2321 = vsel %vm463, %v2317, %v2318
        %v2322 = vsel %vm508, %v2310, %v2321
        %v2323 = vsel %vm463, %v2319, %v2320
        %v2324 = vsel %vm508, %v2314, %v2323
        %2327 = vst [vmem:[#allocation3 + $0x10] sm:$0xff] %v2322
        %2328 = vst [vmem:[#allocation3 + $0x18] sm:$0xff] %v2324
        %v2329 = vld [vmem:[#allocation2] sm:$0xff]
        %v2330 = vld [vmem:[#allocation2 + $0x8] sm:$0xff]
        %v2331 = vld [vmem:[#allocation2 + $0x10] sm:$0xff]
        %v2332 = vld [vmem:[#allocation2 + $0x20] sm:$0xff]
        %v2333 = vld [vmem:[#allocation2 + $0x28] sm:$0xff]
        %v2334 = vld [vmem:[#allocation2 + $0x30] sm:$0xff]
        %v2335 = vmul.f32 %v2329, %v532
        %v2336 = vmul.f32 %v2330, %v536
        %v2337 = vmul.f32 %v2331, %v534
        %v2338 = vmul.f32 %v2332, %v532
        %v2339 = vmul.f32 %v2333, %v536
        %v2340 = vmul.f32 %v2334, %v534
        %v2341 = vpack.c.bf16 %v2338, %v2335
        %v2342 = vpack.c.bf16 %v2339, %v2336
        %v2343 = vpack.c.bf16 %v2340, %v2337
        %v2347 = vunpack.c.l.b16 %v2341
        %v2348 = vunpack.c.l.b16 %v2342
        %v2349 = vunpack.c.l.b16 %v2343
        %v2350 = vunpack.c.h.b16 %v2341
        %v2351 = vunpack.c.h.b16 %v2342
        %v2352 = vunpack.c.h.b16 %v2343
        %v2353 = vpack.c.b16 %v2348, %v2347
        %v2354 = vpack.c.b16 %v2349, %v2349
        %v2355 = vpack.c.b16 %v2351, %v2350
        %v2356 = vpack.c.b16 %v2352, %v2352
        %2357 = vrot.lane.b32.xlu0 %v2353, 15
        %v2358 = vpop.permute.xlu0 %2357
        %2359 = vrot.lane.b32.xlu0 %v2354, 15
        %v2360 = vpop.permute.xlu0 %2359
        %2361 = vrot.lane.b32.xlu0 %v2355, 15
        %v2362 = vpop.permute.xlu0 %2361
        %2363 = vrot.lane.b32.xlu0 %v2356, 15
        %v2364 = vpop.permute.xlu0 %2363
        %v2365 = vrot.slane %v2358, 4
        %v2366 = vrot.slane %v2360, 4
        %v2367 = vrot.slane %v2362, 4
        %v2368 = vrot.slane %v2364, 4
        %v2369 = vsel %vm463, %v2365, %v2366
        %v2370 = vsel %vm575, %v2358, %v2369
        %v2371 = vsel %vm463, %v2367, %v2368
        %v2372 = vsel %vm575, %v2362, %v2371
        %2375 = vst [vmem:[#allocation3 + $0x20] sm:$0xff] %v2370
        %2376 = vst [vmem:[#allocation3 + $0x28] sm:$0xff] %v2372
        %v2377 = vld [vmem:[#allocation2] sm:$0xff]
        %v2378 = vld [vmem:[#allocation2 + $0x8] sm:$0xff]
        %v2379 = vld [vmem:[#allocation2 + $0x10] sm:$0xff]
        %v2380 = vld [vmem:[#allocation2 + $0x20] sm:$0xff]
        %v2381 = vld [vmem:[#allocation2 + $0x28] sm:$0xff]
        %v2382 = vld [vmem:[#allocation2 + $0x30] sm:$0xff]
        %v2383 = vmul.f32 %v2377, %v590
        %v2384 = vmul.f32 %v2378, %v594
        %v2385 = vmul.f32 %v2379, %v592
        %v2386 = vmul.f32 %v2380, %v590
        %v2387 = vmul.f32 %v2381, %v594
        %v2388 = vmul.f32 %v2382, %v592
        %v2389 = vpack.c.bf16 %v2386, %v2383
        %v2390 = vpack.c.bf16 %v2387, %v2384
        %v2391 = vpack.c.bf16 %v2388, %v2385
        %v2395 = vunpack.c.l.b16 %v2389
        %v2396 = vunpack.c.l.b16 %v2390
        %v2397 = vunpack.c.l.b16 %v2391
        %v2398 = vunpack.c.h.b16 %v2389
        %v2399 = vunpack.c.h.b16 %v2390
        %v2400 = vunpack.c.h.b16 %v2391
        %v2401 = vpack.c.b16 %v2396, %v2395
        %v2402 = vpack.c.b16 %v2397, %v2397
        %v2403 = vpack.c.b16 %v2399, %v2398
        %v2404 = vpack.c.b16 %v2400, %v2400
        %2405 = vrot.lane.b32.xlu0 %v2401, 1
        %v2406 = vpop.permute.xlu0 %2405
        %2407 = vrot.lane.b32.xlu0 %v2402, 1
        %v2408 = vpop.permute.xlu0 %2407
        %2409 = vrot.lane.b32.xlu0 %v2403, 1
        %v2410 = vpop.permute.xlu0 %2409
        %2411 = vrot.lane.b32.xlu0 %v2404, 1
        %v2412 = vpop.permute.xlu0 %2411
        %v2413 = vrot.slane %v2406, 4
        %v2414 = vrot.slane %v2408, 4
        %v2415 = vrot.slane %v2410, 4
        %v2416 = vrot.slane %v2412, 4
        %v2417 = vsel %vm463, %v2413, %v2414
        %v2418 = vsel %vm633, %v2406, %v2417
        %v2419 = vsel %vm463, %v2415, %v2416
        %v2420 = vsel %vm633, %v2410, %v2419
        %2423 = vst [vmem:[#allocation3 + $0x30] sm:$0xff] %v2418
        %2424 = vst [vmem:[#allocation3 + $0x38] sm:$0xff] %v2420
        %v2425 = vld [vmem:[#allocation2 + $0x8] sm:$0xff]
        %v2426 = vld [vmem:[#allocation2 + $0x10] sm:$0xff]
        %v2427 = vld [vmem:[#allocation2 + $0x28] sm:$0xff]
        %v2428 = vld [vmem:[#allocation2 + $0x30] sm:$0xff]
        %v2429 = vpack.c.bf16 %v2427, %v2425
        %v2430 = vpack.c.bf16 %v2428, %v2426
        %v2433 = vunpack.c.l.b16 %v2429
        %v2434 = vunpack.c.l.b16 %v2430
        %v2435 = vunpack.c.h.b16 %v2429
        %v2436 = vunpack.c.h.b16 %v2430
        %v2437 = vpack.c.b16 %v2434, %v2433
        %v2438 = vpack.c.b16 %v2436, %v2435
        %2441 = vst [vmem:[#allocation3 + $0x40] sm:$0xff] %v2437
        %2442 = vst [vmem:[#allocation3 + $0x48] sm:$0xff] %v2438
        %v2443 = vld [vmem:[#allocation2 + $0x8] sm:$0xff]
        %v2444 = vld [vmem:[#allocation2 + $0x10] sm:$0xff]
        %v2445 = vld [vmem:[#allocation2 + $0x18] sm:$0xff]
        %v2446 = vld [vmem:[#allocation2 + $0x28] sm:$0xff]
        %v2447 = vld [vmem:[#allocation2 + $0x30] sm:$0xff]
        %v2448 = vld [vmem:[#allocation2 + $0x38] sm:$0xff]
        %v2449 = vmul.f32 %v2443, %v666
        %v2450 = vmul.f32 %v2444, %v670
        %v2451 = vmul.f32 %v2445, %v668
        %v2452 = vmul.f32 %v2446, %v666
        %v2453 = vmul.f32 %v2447, %v670
        %v2454 = vmul.f32 %v2448, %v668
        %v2455 = vpack.c.bf16 %v2452, %v2449
        %v2456 = vpack.c.bf16 %v2453, %v2450
        %v2457 = vpack.c.bf16 %v2454, %v2451
        %v2461 = vunpack.c.l.b16 %v2455
        %v2462 = vunpack.c.l.b16 %v2456
        %v2463 = vunpack.c.l.b16 %v2457
        %v2464 = vunpack.c.h.b16 %v2455
        %v2465 = vunpack.c.h.b16 %v2456
        %v2466 = vunpack.c.h.b16 %v2457
        %v2467 = vpack.c.b16 %v2462, %v2461
        %v2468 = vpack.c.b16 %v2463, %v2463
        %v2469 = vpack.c.b16 %v2465, %v2464
        %v2470 = vpack.c.b16 %v2466, %v2466
        %2471 = vrot.lane.b32.xlu0 %v2467, 127
        %v2472 = vpop.permute.xlu0 %2471
        %2473 = vrot.lane.b32.xlu0 %v2468, 127
        %v2474 = vpop.permute.xlu0 %2473
        %2475 = vrot.lane.b32.xlu0 %v2469, 127
        %v2476 = vpop.permute.xlu0 %2475
        %2477 = vrot.lane.b32.xlu0 %v2470, 127
        %v2478 = vpop.permute.xlu0 %2477
        %v2479 = vrot.slane %v2472, 4
        %v2480 = vrot.slane %v2474, 4
        %v2481 = vrot.slane %v2476, 4
        %v2482 = vrot.slane %v2478, 4
        %v2483 = vsel %vm463, %v2479, %v2480
        %v2484 = vsel %vm709, %v2472, %v2483
        %v2485 = vsel %vm463, %v2481, %v2482
        %v2486 = vsel %vm709, %v2476, %v2485
        %2489 = vst [vmem:[#allocation3 + $0x50] sm:$0xff] %v2484
        %2490 = vst [vmem:[#allocation3 + $0x58] sm:$0xff] %v2486
        %v2491 = vld [vmem:[#allocation2 + $0x8] sm:$0xff]
        %v2492 = vld [vmem:[#allocation2 + $0x10] sm:$0xff]
        %v2493 = vld [vmem:[#allocation2 + $0x18] sm:$0xff]
        %v2494 = vld [vmem:[#allocation2 + $0x28] sm:$0xff]
        %v2495 = vld [vmem:[#allocation2 + $0x30] sm:$0xff]
        %v2496 = vld [vmem:[#allocation2 + $0x38] sm:$0xff]
        %v2497 = vmul.f32 %v2491, %v724
        %v2498 = vmul.f32 %v2492, %v728
        %v2499 = vmul.f32 %v2493, %v726
        %v2500 = vmul.f32 %v2494, %v724
        %v2501 = vmul.f32 %v2495, %v728
        %v2502 = vmul.f32 %v2496, %v726
        %v2503 = vpack.c.bf16 %v2500, %v2497
        %v2504 = vpack.c.bf16 %v2501, %v2498
        %v2505 = vpack.c.bf16 %v2502, %v2499
        %v2509 = vunpack.c.l.b16 %v2503
        %v2510 = vunpack.c.l.b16 %v2504
        %v2511 = vunpack.c.l.b16 %v2505
        %v2512 = vunpack.c.h.b16 %v2503
        %v2513 = vunpack.c.h.b16 %v2504
        %v2514 = vunpack.c.h.b16 %v2505
        %v2515 = vpack.c.b16 %v2510, %v2509
        %v2516 = vpack.c.b16 %v2511, %v2511
        %v2517 = vpack.c.b16 %v2513, %v2512
        %v2518 = vpack.c.b16 %v2514, %v2514
        %2519 = vrot.lane.b32.xlu0 %v2515, 113
        %v2520 = vpop.permute.xlu0 %2519
        %2521 = vrot.lane.b32.xlu0 %v2516, 113
        %v2522 = vpop.permute.xlu0 %2521
        %2523 = vrot.lane.b32.xlu0 %v2517, 113
        %v2524 = vpop.permute.xlu0 %2523
        %2525 = vrot.lane.b32.xlu0 %v2518, 113
        %v2526 = vpop.permute.xlu0 %2525
        %v2527 = vrot.slane %v2520, 4
        %v2528 = vrot.slane %v2522, 4
        %v2529 = vrot.slane %v2524, 4
        %v2530 = vrot.slane %v2526, 4
        %v2531 = vsel %vm463, %v2527, %v2528
        %v2532 = vsel %vm767, %v2520, %v2531
        %v2533 = vsel %vm463, %v2529, %v2530
        %v2534 = vsel %vm767, %v2524, %v2533
        %2537 = vst [vmem:[#allocation3 + $0x60] sm:$0xff] %v2532
        %2538 = vst [vmem:[#allocation3 + $0x68] sm:$0xff] %v2534
        %v2539 = vld [vmem:[#allocation2 + $0x8] sm:$0xff]
        %v2540 = vld [vmem:[#allocation2 + $0x10] sm:$0xff]
        %v2541 = vld [vmem:[#allocation2 + $0x18] sm:$0xff]
        %v2542 = vld [vmem:[#allocation2 + $0x28] sm:$0xff]
        %v2543 = vld [vmem:[#allocation2 + $0x30] sm:$0xff]
        %v2544 = vld [vmem:[#allocation2 + $0x38] sm:$0xff]
        %v2545 = vpack.c.bf16 %v2542, %v2539
        %v2546 = vpack.c.bf16 %v2543, %v2540
        %v2547 = vpack.c.bf16 %v2544, %v2541
        %v2551 = vunpack.c.l.b16 %v2545
        %v2552 = vunpack.c.l.b16 %v2546
        %v2553 = vunpack.c.l.b16 %v2547
        %v2554 = vunpack.c.h.b16 %v2545
        %v2555 = vunpack.c.h.b16 %v2546
        %v2556 = vunpack.c.h.b16 %v2547
        %v2557 = vpack.c.b16 %v2552, %v2551
        %v2558 = vpack.c.b16 %v2553, %v2553
        %v2559 = vpack.c.b16 %v2555, %v2554
        %v2560 = vpack.c.b16 %v2556, %v2556
        %2561 = vrot.lane.b32.xlu0 %v2557, 112
        %v2562 = vpop.permute.xlu0 %2561
        %2563 = vrot.lane.b32.xlu0 %v2558, 112
        %v2564 = vpop.permute.xlu0 %2563
        %2565 = vrot.lane.b32.xlu0 %v2559, 112
        %v2566 = vpop.permute.xlu0 %2565
        %2567 = vrot.lane.b32.xlu0 %v2560, 112
        %v2568 = vpop.permute.xlu0 %2567
        %v2569 = vrot.slane %v2562, 4
        %v2570 = vrot.slane %v2564, 4
        %v2571 = vrot.slane %v2566, 4
        %v2572 = vrot.slane %v2568, 4
        %v2573 = vsel %vm463, %v2569, %v2570
        %v2574 = vsel %vm810, %v2562, %v2573
        %v2575 = vsel %vm463, %v2571, %v2572
        %v2576 = vsel %vm810, %v2566, %v2575
        %2579 = vst [vmem:[#allocation3 + $0x70] sm:$0xff] %v2574
        %2580 = vst [vmem:[#allocation3 + $0x78] sm:$0xff] %v2576
        %v2581 = vld [vmem:[#allocation2 + $0x8] sm:$0xff]
        %v2582 = vld [vmem:[#allocation2 + $0x10] sm:$0xff]
        %v2583 = vld [vmem:[#allocation2 + $0x18] sm:$0xff]
        %v2584 = vld [vmem:[#allocation2 + $0x28] sm:$0xff]
        %v2585 = vld [vmem:[#allocation2 + $0x30] sm:$0xff]
        %v2586 = vld [vmem:[#allocation2 + $0x38] sm:$0xff]
        %v2587 = vmul.f32 %v2581, %v825
        %v2588 = vmul.f32 %v2582, %v829
        %v2589 = vmul.f32 %v2583, %v827
        %v2590 = vmul.f32 %v2584, %v825
        %v2591 = vmul.f32 %v2585, %v829
        %v2592 = vmul.f32 %v2586, %v827
        %v2593 = vpack.c.bf16 %v2590, %v2587
        %v2594 = vpack.c.bf16 %v2591, %v2588
        %v2595 = vpack.c.bf16 %v2592, %v2589
        %v2599 = vunpack.c.l.b16 %v2593
        %v2600 = vunpack.c.l.b16 %v2594
        %v2601 = vunpack.c.l.b16 %v2595
        %v2602 = vunpack.c.h.b16 %v2593
        %v2603 = vunpack.c.h.b16 %v2594
        %v2604 = vunpack.c.h.b16 %v2595
        %v2605 = vpack.c.b16 %v2600, %v2599
        %v2606 = vpack.c.b16 %v2601, %v2601
        %v2607 = vpack.c.b16 %v2603, %v2602
        %v2608 = vpack.c.b16 %v2604, %v2604
        %2609 = vrot.lane.b32.xlu0 %v2605, 111
        %v2610 = vpop.permute.xlu0 %2609
        %2611 = vrot.lane.b32.xlu0 %v2606, 111
        %v2612 = vpop.permute.xlu0 %2611
        %2613 = vrot.lane.b32.xlu0 %v2607, 111
        %v2614 = vpop.permute.xlu0 %2613
        %2615 = vrot.lane.b32.xlu0 %v2608, 111
        %v2616 = vpop.permute.xlu0 %2615
        %v2617 = vrot.slane %v2610, 4
        %v2618 = vrot.slane %v2612, 4
        %v2619 = vrot.slane %v2614, 4
        %v2620 = vrot.slane %v2616, 4
        %v2621 = vsel %vm463, %v2617, %v2618
        %v2622 = vsel %vm868, %v2610, %v2621
        %v2623 = vsel %vm463, %v2619, %v2620
        %v2624 = vsel %vm868, %v2614, %v2623
        %2627 = vst [vmem:[#allocation3 + $0x80] sm:$0xff] %v2622
        %2628 = vst [vmem:[#allocation3 + $0x88] sm:$0xff] %v2624
        %s2629 = scalar_lea.vmem %s361, 48
        %v2630 = vld [vmem:[%s2629] sm:$0xff]
        %v2631 = vld [vmem:[%s2629 + $0x8] sm:$0xff]
        %v2632 = vld [vmem:[#allocation3] sm:$0xff]
        %v2633 = vld [vmem:[#allocation3 + $0x8] sm:$0xff]
        %v2634 = vld [vmem:[#allocation3 + $0x10] sm:$0xff]
        %v2635 = vld [vmem:[#allocation3 + $0x18] sm:$0xff]
        %v2636 = vld [vmem:[#allocation3 + $0x20] sm:$0xff]
        %v2637 = vld [vmem:[#allocation3 + $0x28] sm:$0xff]
        %v2638 = vld [vmem:[#allocation3 + $0x30] sm:$0xff]
        %v2639 = vld [vmem:[#allocation3 + $0x38] sm:$0xff]
        %v2640 = vld [vmem:[#allocation3 + $0x40] sm:$0xff]
        %v2641 = vld [vmem:[#allocation3 + $0x48] sm:$0xff]
        %v2642 = vld [vmem:[#allocation3 + $0x50] sm:$0xff]
        %v2643 = vld [vmem:[#allocation3 + $0x58] sm:$0xff]
        %v2644 = vld [vmem:[#allocation3 + $0x60] sm:$0xff]
        %v2645 = vld [vmem:[#allocation3 + $0x68] sm:$0xff]
        %v2646 = vld [vmem:[#allocation3 + $0x70] sm:$0xff]
        %v2647 = vld [vmem:[#allocation3 + $0x78] sm:$0xff]
        %v2648 = vld [vmem:[#allocation3 + $0x80] sm:$0xff]
        %v2649 = vld [vmem:[#allocation3 + $0x88] sm:$0xff]
        %s2650 = scalar_lea.vmem %s366, 48
        %v2651 = vld [vmem:[%s2650] sm:$0xff]
        %v2652 = vld [vmem:[%s2650 + $0x8] sm:$0xff]
        %2654 = vset.pattern.permute.xlu0 0
        %2655 = vperm.xlu0 %2654, %v2651
        %v2656 = vpop.permute.xlu0 %2655
        %2659 = vset.pattern.permute.xlu0 0
        %2660 = vperm.xlu0 %2659, %v2652
        %v2661 = vpop.permute.xlu0 %2660
        %v2664 = vunpack.c.l.b16 %v2630
        %v2665 = vunpack.c.h.b16 %v2630
        %v2666 = vunpack.c.l.b16 %v2631
        %v2667 = vunpack.c.h.b16 %v2631
        %v2668 = vpack.c.b16 %v2666, %v2664
        %v2669 = vpack.c.b16 %v2667, %v2665
        %v2689 = vunpack.c.l.b16 %v2632
        %v2690 = vunpack.c.h.b16 %v2632
        %v2691 = vunpack.c.l.b16 %v2633
        %v2692 = vunpack.c.h.b16 %v2633
        %v2693 = vunpack.c.l.b16 %v2634
        %v2694 = vunpack.c.h.b16 %v2634
        %v2695 = vunpack.c.l.b16 %v2635
        %v2696 = vunpack.c.h.b16 %v2635
        %v2697 = vunpack.c.l.b16 %v2636
        %v2698 = vunpack.c.h.b16 %v2636
        %v2699 = vunpack.c.l.b16 %v2637
        %v2700 = vunpack.c.h.b16 %v2637
        %v2701 = vunpack.c.l.b16 %v2638
        %v2702 = vunpack.c.h.b16 %v2638
        %v2703 = vunpack.c.l.b16 %v2639
        %v2704 = vunpack.c.h.b16 %v2639
        %v2705 = vunpack.c.l.b16 %v2640
        %v2706 = vunpack.c.h.b16 %v2640
        %v2707 = vunpack.c.l.b16 %v2641
        %v2708 = vunpack.c.h.b16 %v2641
        %v2709 = vunpack.c.l.b16 %v2642
        %v2710 = vunpack.c.h.b16 %v2642
        %v2711 = vunpack.c.l.b16 %v2643
        %v2712 = vunpack.c.h.b16 %v2643
        %v2713 = vunpack.c.l.b16 %v2644
        %v2714 = vunpack.c.h.b16 %v2644
        %v2715 = vunpack.c.l.b16 %v2645
        %v2716 = vunpack.c.h.b16 %v2645
        %v2717 = vunpack.c.l.b16 %v2646
        %v2718 = vunpack.c.h.b16 %v2646
        %v2719 = vunpack.c.l.b16 %v2647
        %v2720 = vunpack.c.h.b16 %v2647
        %v2721 = vunpack.c.l.b16 %v2648
        %v2722 = vunpack.c.h.b16 %v2648
        %v2723 = vunpack.c.l.b16 %v2649
        %v2724 = vunpack.c.h.b16 %v2649
        %v2725 = vpack.c.b16 %v2691, %v2689
        %v2726 = vpack.c.b16 %v2692, %v2690
        %v2727 = vpack.c.b16 %v2695, %v2693
        %v2728 = vpack.c.b16 %v2696, %v2694
        %v2729 = vpack.c.b16 %v2699, %v2697
        %v2730 = vpack.c.b16 %v2700, %v2698
        %v2731 = vpack.c.b16 %v2703, %v2701
        %v2732 = vpack.c.b16 %v2704, %v2702
        %v2733 = vpack.c.b16 %v2707, %v2705
        %v2734 = vpack.c.b16 %v2708, %v2706
        %v2735 = vpack.c.b16 %v2711, %v2709
        %v2736 = vpack.c.b16 %v2712, %v2710
        %v2737 = vpack.c.b16 %v2715, %v2713
        %v2738 = vpack.c.b16 %v2716, %v2714
        %v2739 = vpack.c.b16 %v2719, %v2717
        %v2740 = vpack.c.b16 %v2720, %v2718
        %v2741 = vpack.c.b16 %v2723, %v2721
        %v2742 = vpack.c.b16 %v2724, %v2722
        %v2762 = vsel %vm1007, %v2669, 0
        %2764 = vmatprep.subr.bf16.mxu0 %v2740
        %2765 = vmatpush1.bf16.msra.mxu0 %v2739
        %2766 = vmatprep.subr.bf16.mxu0 %v2738
        %2767 = vmatpush1.bf16.msra.mxu0 %v2737
        %2768 = vmatprep.subr.bf16.mxu0 %v2736
        %2769 = vmatpush1.bf16.msra.mxu0 %v2735
        %2770 = vmatprep.subr.bf16.mxu0 %v2734
        %2771 = vmatpush1.bf16.msra.mxu0 %v2733
        %2772 = vmatprep.subr.bf16.mxu0 %v2732
        %2773 = vmatpush1.bf16.msra.mxu0 %v2731
        %2774 = vmatprep.subr.bf16.mxu0 %v2730
        %2775 = vmatpush1.bf16.msra.mxu0 %v2729
        %2776 = vmatprep.subr.bf16.mxu0 %v2728
        %2777 = vmatpush1.bf16.msra.mxu0 %v2727
        %2778 = vmatprep.subr.bf16.mxu0 %v2726
        %2779 = vmatpush1.bf16.msra.mxu0 %v2725
        %2780 = vmatprep.subr.bf16.mxu0 0
        %2781 = vmatpush2.bf16.msra.mxu0 0
        %2782 = vmatprep.subr.bf16.mxu0 0
        %2783 = vmatpush2.bf16.msra.mxu0 0
        %2784 = vmatprep.subr.bf16.mxu0 0
        %2785 = vmatpush2.bf16.msra.mxu0 0
        %2786 = vmatprep.subr.bf16.mxu0 0
        %2787 = vmatpush2.bf16.msra.mxu0 0
        %2788 = vmatprep.subr.bf16.mxu0 0
        %2789 = vmatpush2.bf16.msra.mxu0 0
        %2790 = vmatprep.subr.bf16.mxu0 0
        %2791 = vmatpush2.bf16.msra.mxu0 0
        %2792 = vmatprep.subr.bf16.mxu0 0
        %2793 = vmatpush2.bf16.msra.mxu0 0
        %2794 = vmatprep.subr.bf16.mxu0 %v2742
        %2795 = vmatpush2.bf16.msra.mxu0 %v2741
        %2796 = vmatprep.mubr.bf16.mxu0 %v2762
        %2797 = vmatmul.mubr.bf16.gmra.mxu0 %v2668
        %v2798 = vpop.f32.mrf.mxu0
        %v2799 = vadd.f32 %v2656, %v2798
        %v2800 = vpop.f32.mrf.mxu0
        %v2801 = vadd.f32 %v2656, %v2800
        %v2802 = vpop.f32.mrf.mxu0
        %v2803 = vpop.f32.mrf.mxu0
        %2804 = vdwg.mxu0
        %v2805 = vmul.f32 %v2799, %v1062
        %v2806 = vmul.f32 %v2801, %v1066
        %v2807 = vld [vmem:[%s356] sm:$0xf]
        %v2808 = vstv %s377
        %v2809 = vmul.f32 %v2808, %v2805
        %v2810 = vmul.f32 %v2808, %v2806
        %v2813 = vcombine.low %v2809, %v2810
        %v2815 = vunpack.c.l.s4 1983009808
        %v2816 = vunpack.c.0.s8 %v2815
        %v2817 = vlaneseq
        %v2818 = vshrl.u32 %v2817, 7
        %v2819 = vsub.s32 %v2816, %v2818
        %v2820 = vrot.slane %v2813, %v2819
        %v2822 = vadd.f32 %v2807, %v2820
        %2823 = vst [vmem:[%s375] sm:$0xf] %v2822
        %p2824 = scmp.lt.s32.totalorder %s22, 1
        %s2825 = scalar_select %p2824, %s22, 1
        %p2826 = scmp.lt.s32.totalorder %s23, 1
        %s2827 = scalar_select %p2826, %s23, 1
        %s2828 = smul.addr %s2827, 2
        %s2829 = smul.addr %s2825, 4
        %s2830 = sadd.s32 %s2828, %s2829
        %s2831 = smul.addr %s2830, 2
        %s2832 = scalar_lea.vmem %s6, %s2831
        // Predicated region
        $region49: #{parallel_network_forward.2} parent=43 // pred_check
          %p2833 = pneg %p200
        $region50: #{parallel_network_forward.2} parent=43 // pred_check_branch
          %2835 = sbr.rel (%p2833) target = $region52
        $region51: #{parallel_network_forward.2} parent=43 // pred_region
          _
        $region52: #{parallel_network_forward.2} parent=43 // pred_fallthru
          _
      $region44: #{parallel_network_forward.2} parent=5 // pred_fallthru
        _
      %p2836 = scmp.le.s32.totalorder 2, %s13
      // Predicated region
      $region53: #{parallel_network_forward.2} parent=5 // pred_check
        %p2837 = pneg %p2836
      $region54: #{parallel_network_forward.2} parent=5 // pred_check_branch
        %2839 = sbr.rel (%p2837) target = $region56
      $region55: #{parallel_network_forward.2} parent=5 // pred_region
        %s2840 = ssub.s32 %s13, 2
        // Predicated region
        $region57: #{parallel_network_forward.2} parent=55 // pred_check
          %p2841 = pneg %p206
        $region58: #{parallel_network_forward.2} parent=55 // pred_check_branch
          %2843 = sbr.rel (%p2841) target = $region60
        $region59: #{parallel_network_forward.2} parent=55 // pred_region
          %p2844 = scmp.lt.s32.totalorder %s24, 1
          %s2845 = scalar_select %p2844, %s24, 1
          %p2846 = scmp.lt.s32.totalorder %s25, 1
          %s2847 = scalar_select %p2846, %s25, 1
          %s2848 = smul.addr %s2847, 2
          %s2849 = smul.addr %s2845, 4
          %s2850 = sadd.s32 %s2848, %s2849
          %s2851 = smul.addr %s2850, 2
          %s2852 = scalar_lea.vmem %s6, %s2851
        $region60: #{parallel_network_forward.2} parent=55 // pred_fallthru
          _
      $region56: #{parallel_network_forward.2} parent=5 // pred_fallthru
        _
    $region6: #{parallel_network_forward.2} parent=1 // loop_footer
      %s17 = sadd.s32 1, %s13
    $region7: #{parallel_network_forward.2} parent=1 // loop_footer_branch
      %12 = sbr.rel target = $region3
    $region8: #{parallel_network_forward.2} parent=1 // loop_exit
      _
    %2853 = vsyncpa [#allocation5], 1
    %s2854 = scalar_lea.sflag [#allocation5], 1
    %2855 = vsyncpa %s2854, 1

// kernel: closed_call.50
$region0: #{closed_call.50}
  #allocation0 [shape = 'u32[]', space=smem, size = 0x4, offset = 0x4, fixed_abs, tag = 'smem constant byte address 0x4 - core index']
  #allocation1 [shape = 'u32[144,128]{1,0:T(1,128)}', space=vmem, size = 0x12000, scoped, tag = 'internal scratch']
  #allocation2 [shape = 'f32[1,256]{1,0:T(1,128)}', space=vmem, size = 0x400, scoped, tag = 'scratch operand']
  #allocation3 [shape = 'f32[1,256]{1,0:T(1,128)}', space=vmem, size = 0x400, scoped, tag = 'scratch operand']
  %s0 = inlined_call_operand.vmem [shape: f32[4], index: 0, kind: input, shape index: {}]
  %s1 = inlined_call_operand.vmem [shape: f32[4], index: 1, kind: input, shape index: {}]
  %s2 = inlined_call_operand.vmem [shape: f32[4,4,1,256], index: 2, kind: input, shape index: {}]
  %s3 = inlined_call_operand.vmem [shape: f32[4,4,1,256], index: 3, kind: input, shape index: {}]
  %s4 = inlined_call_operand.vmem [shape: f32[4,4,1,256], index: 4, kind: input, shape index: {}]
  %s5 = inlined_call_operand.vmem [shape: f32[4,4,1,256], index: 5, kind: input, shape index: {}]
  %s6 = inlined_call_operand.vmem [shape: f32[4,1,256], index: 6, kind: input, shape index: {}]
  %s7 = inlined_call_operand.vmem [shape: f32[4,1,256], index: 7, kind: input, shape index: {}]
  %s8 = inlined_call_operand.vmem [shape: f32[4,1,256], index: 8, kind: input, shape index: {}]
  %s9 = inlined_call_operand.vmem [shape: f32[4,1,256], index: 9, kind: input, shape index: {}]
  %s10 = inlined_call_operand.vmem [shape: f32[4,1,256], index: 10, kind: input, shape index: {}]
  %s11 = inlined_call_operand.vmem [shape: f32[4,1,256], index: 11, kind: input, shape index: {}]
  %s12 = inlined_call_operand.vmem [shape: f32[4,1,256], index: 12, kind: output, shape index: {0}]
  %s13 = inlined_call_operand.vmem [shape: f32[4,1,256], index: 13, kind: output, shape index: {1}]
  %s14 = inlined_call_operand.vmem [shape: f32[4,1,256], index: 14, kind: output, shape index: {2}]
  %s15 = inlined_call_operand.vmem [shape: f32[4,1,256], index: 15, kind: output, shape index: {3}]
  %s16 = inlined_call_operand.vmem [shape: f32[4,1,256], index: 16, kind: output, shape index: {4}]
  %s17 = inlined_call_operand.vmem [shape: f32[4,1,256], index: 17, kind: output, shape index: {5}]
  %s18 = inlined_call_operand.vmem [shape: f32[4,1,128], index: 18, kind: output, shape index: {6}]
  %19 = xla_tuple %s12, %s13, %s14, %s15, %s16, %s17, %s18
  %s20 = sld [smem:[#allocation0]]
  $region145: #{closed_call.50} parent=0
    _
  %s22 = ssub.s32 1, %s20
  %s23 = scalar_select 0, %s22, %s20
  $region1: #{closed_call.50} parent=0
    #allocation4 [shape = 'u8[512]{0}', space=smem, size = 0x200, scoped, tag = 'input window, operand 0, single buffered']
    #allocation5 [shape = 's32[2]{0}', space=sflag, size = 0x8, scoped, tag = 'scoped memory for closed_call.50']
    #allocation6 [shape = 'u8[512]{0}', space=smem, size = 0x200, scoped, tag = 'input window, operand 1, single buffered']
    #allocation7 [shape = 's32[1]{0}', space=sflag, size = 0x4, scoped, tag = 'scoped memory for closed_call.50']
    %24 = vsyncpa [#allocation5], 0
    %25 = vsyncpa [#allocation7], 0
    loop: start=0, step=1, limit=18
    $region2: #{closed_call.50} parent=1 // loop_pre_header
      _
    $region3: #{closed_call.50} parent=1 // loop_header
      %s27 = sphi 0, %s31
      %p28 = scmp.ge.s32.totalorder %s27, 18
      %s34 = sphi 0, %s46
      %s35 = sphi 0, %s42
      %s36 = sphi 0, %s34
      %s37 = sphi 0, %s35
      %s38 = sphi 0, %s36
      %s39 = sphi 0, %s37
      %s47 = sphi 0, %s47
      %s49 = sphi 0, %s47
      %s50 = sphi 0, %s49
      %s64 = sphi 0, %s50
      %s68 = sphi 0, %s68
      %s70 = sphi 0, %s68
      %s71 = sphi 0, %s70
      %s85 = sphi 0, %s71
      %s93 = sphi 0, %s95
      %s96 = sphi 0, %s93
      %s97 = sphi 0, %s96
      %s113 = sphi 0, %s97
      %s121 = sphi 0, %s123
      %s124 = sphi 0, %s121
      %s125 = sphi 0, %s124
      %s141 = sphi 0, %s125
      %s149 = sphi 0, %s151
      %s152 = sphi 0, %s149
      %s153 = sphi 0, %s152
      %s169 = sphi 0, %s153
      %s177 = sphi 0, %s179
      %s180 = sphi 0, %s177
      %s181 = sphi 0, %s180
      %s197 = sphi 0, %s181
      %s203 = sphi 0, %s205
      %s206 = sphi 0, %s203
      %s207 = sphi 0, %s206
      %s223 = sphi 0, %s207
      %s229 = sphi 0, %s231
      %s232 = sphi 0, %s229
      %s233 = sphi 0, %s232
      %s249 = sphi 0, %s233
      %s255 = sphi 0, %s257
      %s258 = sphi 0, %s255
      %s259 = sphi 0, %s258
      %s275 = sphi 0, %s259
      %s281 = sphi 0, %s283
      %s284 = sphi 0, %s281
      %s285 = sphi 0, %s284
      %s301 = sphi 0, %s285
      %s307 = sphi 0, %s309
      %s310 = sphi 0, %s307
      %s311 = sphi 0, %s310
      %s327 = sphi 0, %s311
      %s333 = sphi 0, %s335
      %s336 = sphi 0, %s333
      %s337 = sphi 0, %s336
      %s353 = sphi 0, %s337
      %s359 = sphi 0, %s361
      %s362 = sphi 0, %s359
      %s363 = sphi 0, %s362
      %s379 = sphi 0, %s363
      %s385 = sphi 0, %s387
      %s388 = sphi 0, %s385
      %s389 = sphi 0, %s388
      %s405 = sphi 0, %s389
      %s411 = sphi 0, %s413
      %s414 = sphi 0, %s411
      %s415 = sphi 0, %s414
      %s431 = sphi 0, %s415
      %s437 = sphi 0, %s439
      %s440 = sphi 0, %s437
      %s441 = sphi 0, %s440
      %s457 = sphi 0, %s441
      %s463 = sphi 0, %s465
      %s466 = sphi 0, %s463
      %s467 = sphi 0, %s466
      %s483 = sphi 0, %s467
      %s489 = sphi 0, %s491
      %s492 = sphi 0, %s489
      %s493 = sphi 0, %s492
      %s509 = sphi 0, %s493
      %s515 = sphi 0, %s517
      %s518 = sphi 0, %s515
      %s519 = sphi 0, %s518
      %s535 = sphi 0, %s519
    $region4: #{closed_call.50} parent=1 // loop_header_branch
      %30 = sbr.rel (%p28) target = $region8
    $region5: #{closed_call.50} parent=1 // loop_body
      %s32 = ssub.s32 %s27, 1
      %s33 = ssub.s32 %s27, 2
      %s40 = sadd.s32 1, %s35
      %p41 = scmp.ge.s32.totalorder %s40, 4
      %s42 = scalar_select %p41, 0, %s40
      %s43 = sadd.s32 1, %s34
      %s44 = scalar_select %p41, %s43, %s34
      %p45 = scmp.ge.s32.totalorder %s44, 4
      %s46 = scalar_select %p45, 0, %s44
      %s48 = sadd.s32 %s47, 1
      %p51 = scmp.eq.s32.totalorder %s27, 15
      %p52 = scmp.ne.s32.totalorder %s47, %s49
      %p53 = scmp.eq.s32.totalorder %s27, 0
      %p54 = por %p52, %p53
      %p55 = scmp.ne.s32.totalorder %s47, %s49
      %p56 = scmp.eq.s32.totalorder %s32, 15
      %p57 = por %p55, %p56
      %p58 = scmp.ne.s32.totalorder %s49, %s50
      %p59 = scmp.eq.s32.totalorder %s32, 0
      %p60 = por %p58, %p59
      %p61 = scmp.ne.s32.totalorder %s49, %s50
      %p62 = scmp.eq.s32.totalorder %s33, 15
      %p63 = por %p61, %p62
      %p65 = scmp.ne.s32.totalorder %s50, %s64
      %p66 = scmp.eq.s32.totalorder %s33, 0
      %p67 = por %p65, %p66
      %s69 = sadd.s32 %s68, 1
      %p72 = scmp.eq.s32.totalorder %s27, 15
      %p73 = scmp.ne.s32.totalorder %s68, %s70
      %p74 = scmp.eq.s32.totalorder %s27, 0
      %p75 = por %p73, %p74
      %p76 = scmp.ne.s32.totalorder %s68, %s70
      %p77 = scmp.eq.s32.totalorder %s32, 15
      %p78 = por %p76, %p77
      %p79 = scmp.ne.s32.totalorder %s70, %s71
      %p80 = scmp.eq.s32.totalorder %s32, 0
      %p81 = por %p79, %p80
      %p82 = scmp.ne.s32.totalorder %s70, %s71
      %p83 = scmp.eq.s32.totalorder %s33, 15
      %p84 = por %p82, %p83
      %p86 = scmp.ne.s32.totalorder %s71, %s85
      %p87 = scmp.eq.s32.totalorder %s33, 0
      %p88 = por %p86, %p87
      %s89 = ssub.s32 %s34, %s46
      %s90 = ssub.s32 %s35, %s42
      %s91 = sor.u32 %s89, %s90
      %p92 = scmp.eq.s32.totalorder %s91, 0
      %s94 = sadd.s32 %s93, 1
      %s95 = scalar_select %p92, %s93, %s94
      %p98 = pneg %p92
      %p99 = scmp.eq.s32.totalorder %s27, 15
      %p100 = por %p98, %p99
      %p101 = scmp.ne.s32.totalorder %s93, %s96
      %p102 = scmp.eq.s32.totalorder %s27, 0
      %p103 = por %p101, %p102
      %p104 = scmp.ne.s32.totalorder %s93, %s96
      %p105 = scmp.eq.s32.totalorder %s32, 15
      %p106 = por %p104, %p105
      %p107 = scmp.ne.s32.totalorder %s96, %s97
      %p108 = scmp.eq.s32.totalorder %s32, 0
      %p109 = por %p107, %p108
      %p110 = scmp.ne.s32.totalorder %s96, %s97
      %p111 = scmp.eq.s32.totalorder %s33, 15
      %p112 = por %p110, %p111
      %p114 = scmp.ne.s32.totalorder %s97, %s113
      %p115 = scmp.eq.s32.totalorder %s33, 0
      %p116 = por %p114, %p115
      %s117 = ssub.s32 %s34, %s46
      %s118 = ssub.s32 %s35, %s42
      %s119 = sor.u32 %s117, %s118
      %p120 = scmp.eq.s32.totalorder %s119, 0
      %s122 = sadd.s32 %s121, 1
      %s123 = scalar_select %p120, %s121, %s122
      %p126 = pneg %p120
      %p127 = scmp.eq.s32.totalorder %s27, 15
      %p128 = por %p126, %p127
      %p129 = scmp.ne.s32.totalorder %s121, %s124
      %p130 = scmp.eq.s32.totalorder %s27, 0
      %p131 = por %p129, %p130
      %p132 = scmp.ne.s32.totalorder %s121, %s124
      %p133 = scmp.eq.s32.totalorder %s32, 15
      %p134 = por %p132, %p133
      %p135 = scmp.ne.s32.totalorder %s124, %s125
      %p136 = scmp.eq.s32.totalorder %s32, 0
      %p137 = por %p135, %p136
      %p138 = scmp.ne.s32.totalorder %s124, %s125
      %p139 = scmp.eq.s32.totalorder %s33, 15
      %p140 = por %p138, %p139
      %p142 = scmp.ne.s32.totalorder %s125, %s141
      %p143 = scmp.eq.s32.totalorder %s33, 0
      %p144 = por %p142, %p143
      %s145 = ssub.s32 %s34, %s46
      %s146 = ssub.s32 %s35, %s42
      %s147 = sor.u32 %s145, %s146
      %p148 = scmp.eq.s32.totalorder %s147, 0
      %s150 = sadd.s32 %s149, 1
      %s151 = scalar_select %p148, %s149, %s150
      %p154 = pneg %p148
      %p155 = scmp.eq.s32.totalorder %s27, 15
      %p156 = por %p154, %p155
      %p157 = scmp.ne.s32.totalorder %s149, %s152
      %p158 = scmp.eq.s32.totalorder %s27, 0
      %p159 = por %p157, %p158
      %p160 = scmp.ne.s32.totalorder %s149, %s152
      %p161 = scmp.eq.s32.totalorder %s32, 15
      %p162 = por %p160, %p161
      %p163 = scmp.ne.s32.totalorder %s152, %s153
      %p164 = scmp.eq.s32.totalorder %s32, 0
      %p165 = por %p163, %p164
      %p166 = scmp.ne.s32.totalorder %s152, %s153
      %p167 = scmp.eq.s32.totalorder %s33, 15
      %p168 = por %p166, %p167
      %p170 = scmp.ne.s32.totalorder %s153, %s169
      %p171 = scmp.eq.s32.totalorder %s33, 0
      %p172 = por %p170, %p171
      %s173 = ssub.s32 %s34, %s46
      %s174 = ssub.s32 %s35, %s42
      %s175 = sor.u32 %s173, %s174
      %p176 = scmp.eq.s32.totalorder %s175, 0
      %s178 = sadd.s32 %s177, 1
      %s179 = scalar_select %p176, %s177, %s178
      %p182 = pneg %p176
      %p183 = scmp.eq.s32.totalorder %s27, 15
      %p184 = por %p182, %p183
      %p185 = scmp.ne.s32.totalorder %s177, %s180
      %p186 = scmp.eq.s32.totalorder %s27, 0
      %p187 = por %p185, %p186
      %p188 = scmp.ne.s32.totalorder %s177, %s180
      %p189 = scmp.eq.s32.totalorder %s32, 15
      %p190 = por %p188, %p189
      %p191 = scmp.ne.s32.totalorder %s180, %s181
      %p192 = scmp.eq.s32.totalorder %s32, 0
      %p193 = por %p191, %p192
      %p194 = scmp.ne.s32.totalorder %s180, %s181
      %p195 = scmp.eq.s32.totalorder %s33, 15
      %p196 = por %p194, %p195
      %p198 = scmp.ne.s32.totalorder %s181, %s197
      %p199 = scmp.eq.s32.totalorder %s33, 0
      %p200 = por %p198, %p199
      %s201 = ssub.s32 %s34, %s46
      %p202 = scmp.eq.s32.totalorder %s201, 0
      %s204 = sadd.s32 %s203, 1
      %s205 = scalar_select %p202, %s203, %s204
      %p208 = pneg %p202
      %p209 = scmp.eq.s32.totalorder %s27, 15
      %p210 = por %p208, %p209
      %p211 = scmp.ne.s32.totalorder %s203, %s206
      %p212 = scmp.eq.s32.totalorder %s27, 0
      %p213 = por %p211, %p212
      %p214 = scmp.ne.s32.totalorder %s203, %s206
      %p215 = scmp.eq.s32.totalorder %s32, 15
      %p216 = por %p214, %p215
      %p217 = scmp.ne.s32.totalorder %s206, %s207
      %p218 = scmp.eq.s32.totalorder %s32, 0
      %p219 = por %p217, %p218
      %p220 = scmp.ne.s32.totalorder %s206, %s207
      %p221 = scmp.eq.s32.totalorder %s33, 15
      %p222 = por %p220, %p221
      %p224 = scmp.ne.s32.totalorder %s207, %s223
      %p225 = scmp.eq.s32.totalorder %s33, 0
      %p226 = por %p224, %p225
      %s227 = ssub.s32 %s34, %s46
      %p228 = scmp.eq.s32.totalorder %s227, 0
      %s230 = sadd.s32 %s229, 1
      %s231 = scalar_select %p228, %s229, %s230
      %p234 = pneg %p228
      %p235 = scmp.eq.s32.totalorder %s27, 15
      %p236 = por %p234, %p235
      %p237 = scmp.ne.s32.totalorder %s229, %s232
      %p238 = scmp.eq.s32.totalorder %s27, 0
      %p239 = por %p237, %p238
      %p240 = scmp.ne.s32.totalorder %s229, %s232
      %p241 = scmp.eq.s32.totalorder %s32, 15
      %p242 = por %p240, %p241
      %p243 = scmp.ne.s32.totalorder %s232, %s233
      %p244 = scmp.eq.s32.totalorder %s32, 0
      %p245 = por %p243, %p244
      %p246 = scmp.ne.s32.totalorder %s232, %s233
      %p247 = scmp.eq.s32.totalorder %s33, 15
      %p248 = por %p246, %p247
      %p250 = scmp.ne.s32.totalorder %s233, %s249
      %p251 = scmp.eq.s32.totalorder %s33, 0
      %p252 = por %p250, %p251
      %s253 = ssub.s32 %s34, %s46
      %p254 = scmp.eq.s32.totalorder %s253, 0
      %s256 = sadd.s32 %s255, 1
      %s257 = scalar_select %p254, %s255, %s256
      %p260 = pneg %p254
      %p261 = scmp.eq.s32.totalorder %s27, 15
      %p262 = por %p260, %p261
      %p263 = scmp.ne.s32.totalorder %s255, %s258
      %p264 = scmp.eq.s32.totalorder %s27, 0
      %p265 = por %p263, %p264
      %p266 = scmp.ne.s32.totalorder %s255, %s258
      %p267 = scmp.eq.s32.totalorder %s32, 15
      %p268 = por %p266, %p267
      %p269 = scmp.ne.s32.totalorder %s258, %s259
      %p270 = scmp.eq.s32.totalorder %s32, 0
      %p271 = por %p269, %p270
      %p272 = scmp.ne.s32.totalorder %s258, %s259
      %p273 = scmp.eq.s32.totalorder %s33, 15
      %p274 = por %p272, %p273
      %p276 = scmp.ne.s32.totalorder %s259, %s275
      %p277 = scmp.eq.s32.totalorder %s33, 0
      %p278 = por %p276, %p277
      %s279 = ssub.s32 %s34, %s46
      %p280 = scmp.eq.s32.totalorder %s279, 0
      %s282 = sadd.s32 %s281, 1
      %s283 = scalar_select %p280, %s281, %s282
      %p286 = pneg %p280
      %p287 = scmp.eq.s32.totalorder %s27, 15
      %p288 = por %p286, %p287
      %p289 = scmp.ne.s32.totalorder %s281, %s284
      %p290 = scmp.eq.s32.totalorder %s27, 0
      %p291 = por %p289, %p290
      %p292 = scmp.ne.s32.totalorder %s281, %s284
      %p293 = scmp.eq.s32.totalorder %s32, 15
      %p294 = por %p292, %p293
      %p295 = scmp.ne.s32.totalorder %s284, %s285
      %p296 = scmp.eq.s32.totalorder %s32, 0
      %p297 = por %p295, %p296
      %p298 = scmp.ne.s32.totalorder %s284, %s285
      %p299 = scmp.eq.s32.totalorder %s33, 15
      %p300 = por %p298, %p299
      %p302 = scmp.ne.s32.totalorder %s285, %s301
      %p303 = scmp.eq.s32.totalorder %s33, 0
      %p304 = por %p302, %p303
      %s305 = ssub.s32 %s34, %s46
      %p306 = scmp.eq.s32.totalorder %s305, 0
      %s308 = sadd.s32 %s307, 1
      %s309 = scalar_select %p306, %s307, %s308
      %p312 = pneg %p306
      %p313 = scmp.eq.s32.totalorder %s27, 15
      %p314 = por %p312, %p313
      %p315 = scmp.ne.s32.totalorder %s307, %s310
      %p316 = scmp.eq.s32.totalorder %s27, 0
      %p317 = por %p315, %p316
      %p318 = scmp.ne.s32.totalorder %s307, %s310
      %p319 = scmp.eq.s32.totalorder %s32, 15
      %p320 = por %p318, %p319
      %p321 = scmp.ne.s32.totalorder %s310, %s311
      %p322 = scmp.eq.s32.totalorder %s32, 0
      %p323 = por %p321, %p322
      %p324 = scmp.ne.s32.totalorder %s310, %s311
      %p325 = scmp.eq.s32.totalorder %s33, 15
      %p326 = por %p324, %p325
      %p328 = scmp.ne.s32.totalorder %s311, %s327
      %p329 = scmp.eq.s32.totalorder %s33, 0
      %p330 = por %p328, %p329
      %s331 = ssub.s32 %s34, %s46
      %p332 = scmp.eq.s32.totalorder %s331, 0
      %s334 = sadd.s32 %s333, 1
      %s335 = scalar_select %p332, %s333, %s334
      %p338 = pneg %p332
      %p339 = scmp.eq.s32.totalorder %s27, 15
      %p340 = por %p338, %p339
      %p341 = scmp.ne.s32.totalorder %s333, %s336
      %p342 = scmp.eq.s32.totalorder %s27, 0
      %p343 = por %p341, %p342
      %p344 = scmp.ne.s32.totalorder %s333, %s336
      %p345 = scmp.eq.s32.totalorder %s32, 15
      %p346 = por %p344, %p345
      %p347 = scmp.ne.s32.totalorder %s336, %s337
      %p348 = scmp.eq.s32.totalorder %s32, 0
      %p349 = por %p347, %p348
      %p350 = scmp.ne.s32.totalorder %s336, %s337
      %p351 = scmp.eq.s32.totalorder %s33, 15
      %p352 = por %p350, %p351
      %p354 = scmp.ne.s32.totalorder %s337, %s353
      %p355 = scmp.eq.s32.totalorder %s33, 0
      %p356 = por %p354, %p355
      %s357 = ssub.s32 %s34, %s46
      %p358 = scmp.eq.s32.totalorder %s357, 0
      %s360 = sadd.s32 %s359, 1
      %s361 = scalar_select %p358, %s359, %s360
      %p364 = pneg %p358
      %p365 = scmp.eq.s32.totalorder %s27, 15
      %p366 = por %p364, %p365
      %p367 = scmp.ne.s32.totalorder %s359, %s362
      %p368 = scmp.eq.s32.totalorder %s27, 0
      %p369 = por %p367, %p368
      %p370 = scmp.ne.s32.totalorder %s359, %s362
      %p371 = scmp.eq.s32.totalorder %s32, 15
      %p372 = por %p370, %p371
      %p373 = scmp.ne.s32.totalorder %s362, %s363
      %p374 = scmp.eq.s32.totalorder %s32, 0
      %p375 = por %p373, %p374
      %p376 = scmp.ne.s32.totalorder %s362, %s363
      %p377 = scmp.eq.s32.totalorder %s33, 15
      %p378 = por %p376, %p377
      %p380 = scmp.ne.s32.totalorder %s363, %s379
      %p381 = scmp.eq.s32.totalorder %s33, 0
      %p382 = por %p380, %p381
      %s383 = ssub.s32 %s34, %s46
      %p384 = scmp.eq.s32.totalorder %s383, 0
      %s386 = sadd.s32 %s385, 1
      %s387 = scalar_select %p384, %s385, %s386
      %p390 = pneg %p384
      %p391 = scmp.eq.s32.totalorder %s27, 15
      %p392 = por %p390, %p391
      %p393 = scmp.ne.s32.totalorder %s385, %s388
      %p394 = scmp.eq.s32.totalorder %s27, 0
      %p395 = por %p393, %p394
      %p396 = scmp.ne.s32.totalorder %s385, %s388
      %p397 = scmp.eq.s32.totalorder %s32, 15
      %p398 = por %p396, %p397
      %p399 = scmp.ne.s32.totalorder %s388, %s389
      %p400 = scmp.eq.s32.totalorder %s32, 0
      %p401 = por %p399, %p400
      %p402 = scmp.ne.s32.totalorder %s388, %s389
      %p403 = scmp.eq.s32.totalorder %s33, 15
      %p404 = por %p402, %p403
      %p406 = scmp.ne.s32.totalorder %s389, %s405
      %p407 = scmp.eq.s32.totalorder %s33, 0
      %p408 = por %p406, %p407
      %s409 = ssub.s32 %s34, %s46
      %p410 = scmp.eq.s32.totalorder %s409, 0
      %s412 = sadd.s32 %s411, 1
      %s413 = scalar_select %p410, %s411, %s412
      %p416 = pneg %p410
      %p417 = scmp.eq.s32.totalorder %s27, 15
      %p418 = por %p416, %p417
      %p419 = scmp.ne.s32.totalorder %s411, %s414
      %p420 = scmp.eq.s32.totalorder %s27, 0
      %p421 = por %p419, %p420
      %p422 = scmp.ne.s32.totalorder %s411, %s414
      %p423 = scmp.eq.s32.totalorder %s32, 15
      %p424 = por %p422, %p423
      %p425 = scmp.ne.s32.totalorder %s414, %s415
      %p426 = scmp.eq.s32.totalorder %s32, 0
      %p427 = por %p425, %p426
      %p428 = scmp.ne.s32.totalorder %s414, %s415
      %p429 = scmp.eq.s32.totalorder %s33, 15
      %p430 = por %p428, %p429
      %p432 = scmp.ne.s32.totalorder %s415, %s431
      %p433 = scmp.eq.s32.totalorder %s33, 0
      %p434 = por %p432, %p433
      %s435 = ssub.s32 %s34, %s46
      %p436 = scmp.eq.s32.totalorder %s435, 0
      %s438 = sadd.s32 %s437, 1
      %s439 = scalar_select %p436, %s437, %s438
      %p442 = pneg %p436
      %p443 = scmp.eq.s32.totalorder %s27, 15
      %p444 = por %p442, %p443
      %p445 = scmp.ne.s32.totalorder %s437, %s440
      %p446 = scmp.eq.s32.totalorder %s27, 0
      %p447 = por %p445, %p446
      %p448 = scmp.ne.s32.totalorder %s437, %s440
      %p449 = scmp.eq.s32.totalorder %s32, 15
      %p450 = por %p448, %p449
      %p451 = scmp.ne.s32.totalorder %s440, %s441
      %p452 = scmp.eq.s32.totalorder %s32, 0
      %p453 = por %p451, %p452
      %p454 = scmp.ne.s32.totalorder %s440, %s441
      %p455 = scmp.eq.s32.totalorder %s33, 15
      %p456 = por %p454, %p455
      %p458 = scmp.ne.s32.totalorder %s441, %s457
      %p459 = scmp.eq.s32.totalorder %s33, 0
      %p460 = por %p458, %p459
      %s461 = ssub.s32 %s34, %s46
      %p462 = scmp.eq.s32.totalorder %s461, 0
      %s464 = sadd.s32 %s463, 1
      %s465 = scalar_select %p462, %s463, %s464
      %p468 = pneg %p462
      %p469 = scmp.eq.s32.totalorder %s27, 15
      %p470 = por %p468, %p469
      %p471 = scmp.ne.s32.totalorder %s463, %s466
      %p472 = scmp.eq.s32.totalorder %s27, 0
      %p473 = por %p471, %p472
      %p474 = scmp.ne.s32.totalorder %s463, %s466
      %p475 = scmp.eq.s32.totalorder %s32, 15
      %p476 = por %p474, %p475
      %p477 = scmp.ne.s32.totalorder %s466, %s467
      %p478 = scmp.eq.s32.totalorder %s32, 0
      %p479 = por %p477, %p478
      %p480 = scmp.ne.s32.totalorder %s466, %s467
      %p481 = scmp.eq.s32.totalorder %s33, 15
      %p482 = por %p480, %p481
      %p484 = scmp.ne.s32.totalorder %s467, %s483
      %p485 = scmp.eq.s32.totalorder %s33, 0
      %p486 = por %p484, %p485
      %s487 = ssub.s32 %s34, %s46
      %p488 = scmp.eq.s32.totalorder %s487, 0
      %s490 = sadd.s32 %s489, 1
      %s491 = scalar_select %p488, %s489, %s490
      %p494 = pneg %p488
      %p495 = scmp.eq.s32.totalorder %s27, 15
      %p496 = por %p494, %p495
      %p497 = scmp.ne.s32.totalorder %s489, %s492
      %p498 = scmp.eq.s32.totalorder %s27, 0
      %p499 = por %p497, %p498
      %p500 = scmp.ne.s32.totalorder %s489, %s492
      %p501 = scmp.eq.s32.totalorder %s32, 15
      %p502 = por %p500, %p501
      %p503 = scmp.ne.s32.totalorder %s492, %s493
      %p504 = scmp.eq.s32.totalorder %s32, 0
      %p505 = por %p503, %p504
      %p506 = scmp.ne.s32.totalorder %s492, %s493
      %p507 = scmp.eq.s32.totalorder %s33, 15
      %p508 = por %p506, %p507
      %p510 = scmp.ne.s32.totalorder %s493, %s509
      %p511 = scmp.eq.s32.totalorder %s33, 0
      %p512 = por %p510, %p511
      %s513 = ssub.s32 %s34, %s46
      %p514 = scmp.eq.s32.totalorder %s513, 0
      %s516 = sadd.s32 %s515, 1
      %s517 = scalar_select %p514, %s515, %s516
      %p520 = pneg %p514
      %p521 = scmp.eq.s32.totalorder %s27, 15
      %p522 = por %p520, %p521
      %p523 = scmp.ne.s32.totalorder %s515, %s518
      %p524 = scmp.eq.s32.totalorder %s27, 0
      %p525 = por %p523, %p524
      %p526 = scmp.ne.s32.totalorder %s515, %s518
      %p527 = scmp.eq.s32.totalorder %s32, 15
      %p528 = por %p526, %p527
      %p529 = scmp.ne.s32.totalorder %s518, %s519
      %p530 = scmp.eq.s32.totalorder %s32, 0
      %p531 = por %p529, %p530
      %p532 = scmp.ne.s32.totalorder %s518, %s519
      %p533 = scmp.eq.s32.totalorder %s33, 15
      %p534 = por %p532, %p533
      %p536 = scmp.ne.s32.totalorder %s519, %s535
      %p537 = scmp.eq.s32.totalorder %s33, 0
      %p538 = por %p536, %p537
      %p539 = scmp.le.s32.totalorder 1, %s27
      %p540 = scmp.lt.s32.totalorder %s27, 17
      %p541 = pnand %p539, %p540
      %p542 = pneg %p541
      // Predicated region
      $region9: #{closed_call.50} parent=5 // pred_check
        _
      $region10: #{closed_call.50} parent=5 // pred_check_branch
        %544 = sbr.rel (%p541) target = $region12
      $region11: #{closed_call.50} parent=5 // pred_region
        %s545 = ssub.s32 %s27, 1
        // Predicated region
        $region13: #{closed_call.50} parent=11 // pred_check
          %p546 = pneg %p60
        $region14: #{closed_call.50} parent=11 // pred_check_branch
          %548 = sbr.rel (%p546) target = $region16
        $region15: #{closed_call.50} parent=11 // pred_region
          %s550 = ssub.s32 16, 16
          %551 = vsyncadd [#allocation5], %s550
          %s553 = sshll.u32 %s0, 4
          %s554 = int_to_ptr.vmem [resolvable:$true] %s553
          %556 = dma.vmem_to_smem %s554, 16, [#allocation4], [#allocation5]
        $region16: #{closed_call.50} parent=11 // pred_fallthru
          _
        // Predicated region
        $region17: #{closed_call.50} parent=11 // pred_check
          %p557 = pneg %p81
        $region18: #{closed_call.50} parent=11 // pred_check_branch
          %559 = sbr.rel (%p557) target = $region20
        $region19: #{closed_call.50} parent=11 // pred_region
          %s561 = ssub.s32 16, 16
          %562 = vsyncadd [#allocation7], %s561
          %s564 = sshll.u32 %s1, 4
          %s565 = int_to_ptr.vmem [resolvable:$true] %s564
          %567 = dma.vmem_to_smem %s565, 16, [#allocation6], [#allocation7]
        $region20: #{closed_call.50} parent=11 // pred_fallthru
          _
      $region12: #{closed_call.50} parent=5 // pred_fallthru
        _
      %p568 = scmp.lt.s32.totalorder %s27, 16
      // Predicated region
      $region21: #{closed_call.50} parent=5 // pred_check
        %p569 = pneg %p568
      $region22: #{closed_call.50} parent=5 // pred_check_branch
        %571 = sbr.rel (%p569) target = $region24
      $region23: #{closed_call.50} parent=5 // pred_region
        // Predicated region
        $region25: #{closed_call.50} parent=23 // pred_check
          %p572 = pneg %p103
        $region26: #{closed_call.50} parent=23 // pred_check_branch
          %574 = sbr.rel (%p572) target = $region28
        $region27: #{closed_call.50} parent=23 // pred_region
          %p575 = scmp.lt.s32.totalorder %s34, 3
          %s576 = scalar_select %p575, %s34, 3
          %p577 = scmp.lt.s32.totalorder %s35, 3
          %s578 = scalar_select %p577, %s35, 3
          %s579 = smul.addr %s578, 2
          %s580 = smul.addr %s576, 8
          %s581 = sadd.s32 %s579, %s580
          %s582 = scalar_lea.vmem %s2, %s581
        $region28: #{closed_call.50} parent=23 // pred_fallthru
          _
        // Predicated region
        $region29: #{closed_call.50} parent=23 // pred_check
          %p583 = pneg %p131
        $region30: #{closed_call.50} parent=23 // pred_check_branch
          %585 = sbr.rel (%p583) target = $region32
        $region31: #{closed_call.50} parent=23 // pred_region
          %p586 = scmp.lt.s32.totalorder %s34, 3
          %s587 = scalar_select %p586, %s34, 3
          %p588 = scmp.lt.s32.totalorder %s35, 3
          %s589 = scalar_select %p588, %s35, 3
          %s590 = smul.addr %s589, 2
          %s591 = smul.addr %s587, 8
          %s592 = sadd.s32 %s590, %s591
          %s593 = scalar_lea.vmem %s3, %s592
        $region32: #{closed_call.50} parent=23 // pred_fallthru
          _
        // Predicated region
        $region33: #{closed_call.50} parent=23 // pred_check
          %p594 = pneg %p159
        $region34: #{closed_call.50} parent=23 // pred_check_branch
          %596 = sbr.rel (%p594) target = $region36
        $region35: #{closed_call.50} parent=23 // pred_region
          %p597 = scmp.lt.s32.totalorder %s34, 3
          %s598 = scalar_select %p597, %s34, 3
          %p599 = scmp.lt.s32.totalorder %s35, 3
          %s600 = scalar_select %p599, %s35, 3
          %s601 = smul.addr %s600, 2
          %s602 = smul.addr %s598, 8
          %s603 = sadd.s32 %s601, %s602
          %s604 = scalar_lea.vmem %s4, %s603
        $region36: #{closed_call.50} parent=23 // pred_fallthru
          _
        // Predicated region
        $region37: #{closed_call.50} parent=23 // pred_check
          %p605 = pneg %p187
        $region38: #{closed_call.50} parent=23 // pred_check_branch
          %607 = sbr.rel (%p605) target = $region40
        $region39: #{closed_call.50} parent=23 // pred_region
          %p608 = scmp.lt.s32.totalorder %s34, 3
          %s609 = scalar_select %p608, %s34, 3
          %p610 = scmp.lt.s32.totalorder %s35, 3
          %s611 = scalar_select %p610, %s35, 3
          %s612 = smul.addr %s611, 2
          %s613 = smul.addr %s609, 8
          %s614 = sadd.s32 %s612, %s613
          %s615 = scalar_lea.vmem %s5, %s614
        $region40: #{closed_call.50} parent=23 // pred_fallthru
          _
        // Predicated region
        $region41: #{closed_call.50} parent=23 // pred_check
          %p616 = pneg %p213
        $region42: #{closed_call.50} parent=23 // pred_check_branch
          %618 = sbr.rel (%p616) target = $region44
        $region43: #{closed_call.50} parent=23 // pred_region
          %p619 = scmp.lt.s32.totalorder %s34, 3
          %s620 = scalar_select %p619, %s34, 3
          %s621 = smul.addr %s620, 2
          %s622 = scalar_lea.vmem %s6, %s621
        $region44: #{closed_call.50} parent=23 // pred_fallthru
          _
        // Predicated region
        $region45: #{closed_call.50} parent=23 // pred_check
          %p623 = pneg %p239
        $region46: #{closed_call.50} parent=23 // pred_check_branch
          %625 = sbr.rel (%p623) target = $region48
        $region47: #{closed_call.50} parent=23 // pred_region
          %p626 = scmp.lt.s32.totalorder %s34, 3
          %s627 = scalar_select %p626, %s34, 3
          %s628 = smul.addr %s627, 2
          %s629 = scalar_lea.vmem %s7, %s628
        $region48: #{closed_call.50} parent=23 // pred_fallthru
          _
        // Predicated region
        $region49: #{closed_call.50} parent=23 // pred_check
          %p630 = pneg %p265
        $region50: #{closed_call.50} parent=23 // pred_check_branch
          %632 = sbr.rel (%p630) target = $region52
        $region51: #{closed_call.50} parent=23 // pred_region
          %p633 = scmp.lt.s32.totalorder %s34, 3
          %s634 = scalar_select %p633, %s34, 3
          %s635 = smul.addr %s634, 2
          %s636 = scalar_lea.vmem %s8, %s635
        $region52: #{closed_call.50} parent=23 // pred_fallthru
          _
        // Predicated region
        $region53: #{closed_call.50} parent=23 // pred_check
          %p637 = pneg %p291
        $region54: #{closed_call.50} parent=23 // pred_check_branch
          %639 = sbr.rel (%p637) target = $region56
        $region55: #{closed_call.50} parent=23 // pred_region
          %p640 = scmp.lt.s32.totalorder %s34, 3
          %s641 = scalar_select %p640, %s34, 3
          %s642 = smul.addr %s641, 2
          %s643 = scalar_lea.vmem %s9, %s642
        $region56: #{closed_call.50} parent=23 // pred_fallthru
          _
        // Predicated region
        $region57: #{closed_call.50} parent=23 // pred_check
          %p644 = pneg %p317
        $region58: #{closed_call.50} parent=23 // pred_check_branch
          %646 = sbr.rel (%p644) target = $region60
        $region59: #{closed_call.50} parent=23 // pred_region
          %p647 = scmp.lt.s32.totalorder %s34, 3
          %s648 = scalar_select %p647, %s34, 3
          %s649 = smul.addr %s648, 2
          %s650 = scalar_lea.vmem %s10, %s649
        $region60: #{closed_call.50} parent=23 // pred_fallthru
          _
        // Predicated region
        $region61: #{closed_call.50} parent=23 // pred_check
          %p651 = pneg %p343
        $region62: #{closed_call.50} parent=23 // pred_check_branch
          %653 = sbr.rel (%p651) target = $region64
        $region63: #{closed_call.50} parent=23 // pred_region
          %p654 = scmp.lt.s32.totalorder %s34, 3
          %s655 = scalar_select %p654, %s34, 3
          %s656 = smul.addr %s655, 2
          %s657 = scalar_lea.vmem %s11, %s656
        $region64: #{closed_call.50} parent=23 // pred_fallthru
          _
      $region24: #{closed_call.50} parent=5 // pred_fallthru
        _
      %p658 = scmp.le.s32.totalorder 1, %s27
      %p659 = scmp.lt.s32.totalorder %s27, 17
      %p660 = pnand %p658, %p659
      %p661 = pneg %p660
      // Predicated region
      $region65: #{closed_call.50} parent=5 // pred_check
        _
      $region66: #{closed_call.50} parent=5 // pred_check_branch
        %663 = sbr.rel (%p660) target = $region68
      $region67: #{closed_call.50} parent=5 // pred_region
        %s664 = ssub.s32 %s27, 1
        // Predicated region
        $region69: #{closed_call.50} parent=67 // pred_check
          %p665 = pneg %p60
        $region70: #{closed_call.50} parent=67 // pred_check_branch
          %667 = sbr.rel (%p665) target = $region72
        $region71: #{closed_call.50} parent=67 // pred_region
          %668 = dma.done [#allocation5], 16
        $region72: #{closed_call.50} parent=67 // pred_fallthru
          _
        // Predicated region
        $region73: #{closed_call.50} parent=67 // pred_check
          %p669 = pneg %p81
        $region74: #{closed_call.50} parent=67 // pred_check_branch
          %671 = sbr.rel (%p669) target = $region76
        $region75: #{closed_call.50} parent=67 // pred_region
          %672 = dma.done [#allocation7], 16
        $region76: #{closed_call.50} parent=67 // pred_fallthru
          _
        %673 = sfence
        %p674 = pneg %p60
        %p675 = pneg %p57
        %p676 = pneg %p81
        %p677 = pneg %p78
        %p678 = scmp.lt.s32.totalorder %s36, 3
        %s679 = scalar_select %p678, %s36, 3
        %p680 = scmp.lt.s32.totalorder %s37, 3
        %s681 = scalar_select %p680, %s37, 3
        %s682 = smul.addr %s681, 2
        %s683 = smul.addr %s679, 8
        %s684 = sadd.s32 %s682, %s683
        %s685 = scalar_lea.vmem %s2, %s684
        %p686 = pneg %p109
        %p687 = pneg %p106
        %p688 = scmp.lt.s32.totalorder %s36, 3
        %s689 = scalar_select %p688, %s36, 3
        %p690 = scmp.lt.s32.totalorder %s37, 3
        %s691 = scalar_select %p690, %s37, 3
        %s692 = smul.addr %s691, 2
        %s693 = smul.addr %s689, 8
        %s694 = sadd.s32 %s692, %s693
        %s695 = scalar_lea.vmem %s3, %s694
        %p696 = pneg %p137
        %p697 = pneg %p134
        %p698 = scmp.lt.s32.totalorder %s36, 3
        %s699 = scalar_select %p698, %s36, 3
        %p700 = scmp.lt.s32.totalorder %s37, 3
        %s701 = scalar_select %p700, %s37, 3
        %s702 = smul.addr %s701, 2
        %s703 = smul.addr %s699, 8
        %s704 = sadd.s32 %s702, %s703
        %s705 = scalar_lea.vmem %s4, %s704
        %p706 = pneg %p165
        %p707 = pneg %p162
        %p708 = scmp.lt.s32.totalorder %s36, 3
        %s709 = scalar_select %p708, %s36, 3
        %p710 = scmp.lt.s32.totalorder %s37, 3
        %s711 = scalar_select %p710, %s37, 3
        %s712 = smul.addr %s711, 2
        %s713 = smul.addr %s709, 8
        %s714 = sadd.s32 %s712, %s713
        %s715 = scalar_lea.vmem %s5, %s714
        %p716 = pneg %p193
        %p717 = pneg %p190
        %p718 = scmp.lt.s32.totalorder %s36, 3
        %s719 = scalar_select %p718, %s36, 3
        %s720 = smul.addr %s719, 2
        %s721 = scalar_lea.vmem %s6, %s720
        %p722 = pneg %p219
        %p723 = pneg %p216
        %p724 = scmp.lt.s32.totalorder %s36, 3
        %s725 = scalar_select %p724, %s36, 3
        %s726 = smul.addr %s725, 2
        %s727 = scalar_lea.vmem %s7, %s726
        %p728 = pneg %p245
        %p729 = pneg %p242
        %p730 = scmp.lt.s32.totalorder %s36, 3
        %s731 = scalar_select %p730, %s36, 3
        %s732 = smul.addr %s731, 2
        %s733 = scalar_lea.vmem %s8, %s732
        %p734 = pneg %p271
        %p735 = pneg %p268
        %p736 = scmp.lt.s32.totalorder %s36, 3
        %s737 = scalar_select %p736, %s36, 3
        %s738 = smul.addr %s737, 2
        %s739 = scalar_lea.vmem %s9, %s738
        %p740 = pneg %p297
        %p741 = pneg %p294
        %p742 = scmp.lt.s32.totalorder %s36, 3
        %s743 = scalar_select %p742, %s36, 3
        %s744 = smul.addr %s743, 2
        %s745 = scalar_lea.vmem %s10, %s744
        %p746 = pneg %p323
        %p747 = pneg %p320
        %p748 = scmp.lt.s32.totalorder %s36, 3
        %s749 = scalar_select %p748, %s36, 3
        %s750 = smul.addr %s749, 2
        %s751 = scalar_lea.vmem %s11, %s750
        %p752 = pneg %p349
        %p753 = pneg %p346
        %p754 = pneg %p375
        %p755 = pneg %p372
        %p756 = scmp.lt.s32.totalorder %s36, 3
        %s757 = scalar_select %p756, %s36, 3
        %s758 = smul.addr %s757, 2
        %s759 = scalar_lea.vmem %s12, %s758
        %p760 = pneg %p401
        %p761 = pneg %p398
        %p762 = scmp.lt.s32.totalorder %s36, 3
        %s763 = scalar_select %p762, %s36, 3
        %s764 = smul.addr %s763, 2
        %s765 = scalar_lea.vmem %s13, %s764
        %p766 = pneg %p427
        %p767 = pneg %p424
        %p768 = scmp.lt.s32.totalorder %s36, 3
        %s769 = scalar_select %p768, %s36, 3
        %s770 = smul.addr %s769, 2
        %s771 = scalar_lea.vmem %s14, %s770
        %p772 = pneg %p453
        %p773 = pneg %p450
        %p774 = scmp.lt.s32.totalorder %s36, 3
        %s775 = scalar_select %p774, %s36, 3
        %s776 = smul.addr %s775, 2
        %s777 = scalar_lea.vmem %s15, %s776
        %p778 = pneg %p479
        %p779 = pneg %p476
        %p780 = scmp.lt.s32.totalorder %s36, 3
        %s781 = scalar_select %p780, %s36, 3
        %s782 = smul.addr %s781, 2
        %s783 = scalar_lea.vmem %s16, %s782
        %p784 = pneg %p505
        %p785 = pneg %p502
        %p786 = scmp.lt.s32.totalorder %s36, 3
        %s787 = scalar_select %p786, %s36, 3
        %s788 = smul.addr %s787, 2
        %s789 = scalar_lea.vmem %s17, %s788
        %p790 = pneg %p531
        %p791 = pneg %p528
        %p792 = scmp.lt.s32.totalorder %s36, 3
        %s793 = scalar_select %p792, %s36, 3
        %s794 = scalar_lea.vmem %s18, %s793
        %p795 = scmp.lt.s32.totalorder %s36, 3
        %s796 = scalar_select %p795, %s36, 3
        %p797 = scmp.lt.s32.totalorder %s37, 3
        %s798 = scalar_select %p797, %s37, 3
        %s799 = smul.addr %s798, 2
        %s800 = smul.addr %s796, 8
        %s801 = sadd.s32 %s799, %s800
        %s802 = scalar_lea.vmem %s2, %s801
        %p803 = scmp.lt.s32.totalorder %s36, 3
        %s804 = scalar_select %p803, %s36, 3
        %p805 = scmp.lt.s32.totalorder %s37, 3
        %s806 = scalar_select %p805, %s37, 3
        %s807 = smul.addr %s806, 2
        %s808 = smul.addr %s804, 8
        %s809 = sadd.s32 %s807, %s808
        %s810 = scalar_lea.vmem %s3, %s809
        %p811 = scmp.lt.s32.totalorder %s36, 3
        %s812 = scalar_select %p811, %s36, 3
        %p813 = scmp.lt.s32.totalorder %s37, 3
        %s814 = scalar_select %p813, %s37, 3
        %s815 = smul.addr %s814, 2
        %s816 = smul.addr %s812, 8
        %s817 = sadd.s32 %s815, %s816
        %s818 = scalar_lea.vmem %s4, %s817
        %p819 = scmp.lt.s32.totalorder %s36, 3
        %s820 = scalar_select %p819, %s36, 3
        %p821 = scmp.lt.s32.totalorder %s37, 3
        %s822 = scalar_select %p821, %s37, 3
        %s823 = smul.addr %s822, 2
        %s824 = smul.addr %s820, 8
        %s825 = sadd.s32 %s823, %s824
        %s826 = scalar_lea.vmem %s5, %s825
        %p827 = scmp.lt.s32.totalorder %s36, 3
        %s828 = scalar_select %p827, %s36, 3
        %s829 = smul.addr %s828, 2
        %s830 = scalar_lea.vmem %s6, %s829
        %p831 = scmp.lt.s32.totalorder %s36, 3
        %s832 = scalar_select %p831, %s36, 3
        %s833 = smul.addr %s832, 2
        %s834 = scalar_lea.vmem %s7, %s833
        %p835 = scmp.lt.s32.totalorder %s36, 3
        %s836 = scalar_select %p835, %s36, 3
        %s837 = smul.addr %s836, 2
        %s838 = scalar_lea.vmem %s8, %s837
        %p839 = scmp.lt.s32.totalorder %s36, 3
        %s840 = scalar_select %p839, %s36, 3
        %s841 = smul.addr %s840, 2
        %s842 = scalar_lea.vmem %s9, %s841
        %p843 = scmp.lt.s32.totalorder %s36, 3
        %s844 = scalar_select %p843, %s36, 3
        %s845 = smul.addr %s844, 2
        %s846 = scalar_lea.vmem %s10, %s845
        %p847 = scmp.lt.s32.totalorder %s36, 3
        %s848 = scalar_select %p847, %s36, 3
        %s849 = smul.addr %s848, 2
        %s850 = scalar_lea.vmem %s11, %s849
        %p851 = scmp.lt.s32.totalorder %s36, 3
        %s852 = scalar_select %p851, %s36, 3
        %s853 = smul.addr %s852, 2
        %s854 = scalar_lea.vmem %s12, %s853
        %p855 = scmp.lt.s32.totalorder %s36, 3
        %s856 = scalar_select %p855, %s36, 3
        %s857 = smul.addr %s856, 2
        %s858 = scalar_lea.vmem %s13, %s857
        %p859 = scmp.lt.s32.totalorder %s36, 3
        %s860 = scalar_select %p859, %s36, 3
        %s861 = smul.addr %s860, 2
        %s862 = scalar_lea.vmem %s14, %s861
        %p863 = scmp.lt.s32.totalorder %s36, 3
        %s864 = scalar_select %p863, %s36, 3
        %s865 = smul.addr %s864, 2
        %s866 = scalar_lea.vmem %s15, %s865
        %p867 = scmp.lt.s32.totalorder %s36, 3
        %s868 = scalar_select %p867, %s36, 3
        %s869 = smul.addr %s868, 2
        %s870 = scalar_lea.vmem %s16, %s869
        %p871 = scmp.lt.s32.totalorder %s36, 3
        %s872 = scalar_select %p871, %s36, 3
        %s873 = smul.addr %s872, 2
        %s874 = scalar_lea.vmem %s17, %s873
        %p875 = scmp.lt.s32.totalorder %s36, 3
        %s876 = scalar_select %p875, %s36, 3
        %s877 = scalar_lea.vmem %s18, %s876
        %v878 = vld [vmem:[%s802] sm:$0x3]
        %v879 = vld [vmem:[%s810] sm:$0x3]
        %v880 = vld [vmem:[%s818] sm:$0x3]
        %v881 = vld [vmem:[%s826] sm:$0x3]
        %v882 = vmul.f32 %v880, %v878
        %v883 = vmul.f32 %v881, %v879
        %v884 = vadd.f32 %v882, %v883
        %v885 = vmul.f32 %v880, %v879
        %v886 = vmul.f32 %v881, %v878
        %v887 = vsub.f32 %v885, %v886
        %p888 = scmp.eq.s32.totalorder %s37, 0
        // Predicated region
        $region77: #{closed_call.50} parent=67 // pred_check
          %p889 = pneg %p888
        $region78: #{closed_call.50} parent=67 // pred_check_branch
          %891 = sbr.rel (%p889) target = $region80
        $region79: #{closed_call.50} parent=67 // pred_region
          %v892 = vlaneseq
          %vm893 = vcmp.ge.s32.totalorder %v892, 0
          %vm894 = vcmp.lt.s32.totalorder %v892, 256
          %vm895 = vmand %vm893, %vm894
          %896 = vst.msk [vmem:[#allocation2] sm:$0x3] %vm895, 0.0
          %897 = vst.msk [vmem:[#allocation3] sm:$0x3] %vm895, 0.0
        $region80: #{closed_call.50} parent=67 // pred_fallthru
          _
        %v898 = vld [vmem:[#allocation2] sm:$0x3]
        %v899 = vadd.f32 %v898, %v884
        %v900 = vlaneseq
        %vm901 = vcmp.ge.s32.totalorder %v900, 0
        %vm902 = vcmp.lt.s32.totalorder %v900, 256
        %vm903 = vmand %vm901, %vm902
        %904 = vst.msk [vmem:[#allocation2] sm:$0x3] %vm903, %v899
        %v905 = vld [vmem:[#allocation3] sm:$0x3]
        %v906 = vadd.f32 %v905, %v887
        %907 = vst.msk [vmem:[#allocation3] sm:$0x3] %vm903, %v906
        %p908 = scmp.eq.s32.totalorder %s37, 3
        // Predicated region
        $region81: #{closed_call.50} parent=67 // pred_check
          %p909 = pneg %p908
        $region82: #{closed_call.50} parent=67 // pred_check_branch
          %911 = sbr.rel (%p909) target = $region84
        $region83: #{closed_call.50} parent=67 // pred_region
          %s912 = sld [smem:[#allocation4 + %s36]]
          %s913 = sld [smem:[#allocation6 + %s36]]
          %v914 = vstv %s913
          %v915 = vadd.f32 %v914, 0.0
          %v916 = vld [vmem:[%s830] sm:$0x3]
          %v917 = vld [vmem:[%s834] sm:$0x3]
          %v918 = vld [vmem:[#allocation2] sm:$0x3]
          %v919 = vstv %s912
          %v920 = vmul.f32 %v919, %v916
          %v921 = vadd.f32 %v918, %v920
          %v922 = vld [vmem:[#allocation3] sm:$0x3]
          %v923 = vmul.f32 %v919, %v917
          %v924 = vadd.f32 %v922, %v923
          %v925 = vmul.f32 %v916, %v921
          %v926 = vmul.f32 %v917, %v924
          %v927 = vadd.f32 %v925, %v926
          %v929 = vlaneseq
          %v930 = vshrl.u32 %v929, 7
          %v931 = vsub.s32 0, %v930
          %v932 = vrot.slane %v927, %v931
          %v933 = vlaneseq
          %v934 = vshrl.u32 %v933, 7
          %v935 = vsub.s32 1, %v934
          %v936 = vrot.slane %v927, %v935
          %vm939 = vcmask 1040384
          %v940 = vsel %vm939, %v932, 0.0
          %v941 = vsel %vm939, %v936, 0.0
          %v942 = vadd.f32 %v940, %v941
          %943 = vadd.xlane.f32.xlu0 %v942
          %v944 = vpop.xlane.xlu0 %943
          %v945 = vrot.slane %v944, 4
          %v946 = vadd.f32 %v944, %v945
          %v947 = vrot.slane %v946, 2
          %v948 = vadd.f32 %v946, %v947
          %v949 = vrot.slane %v948, 1
          %v950 = vadd.f32 %v948, %v949
          %s951 = vtos %v950
          %v952 = vstv %s951
          %vm953 = vcmp.eq.f32.partialorder %v952, 0.0
          %v954 = vsel %vm953, 1.0, %v952
          %v955 = vrcp.pop %v954
          %v956 = vmul.f32 %v915, %v955
          %v957 = vld [vmem:[%s846] sm:$0x3]
          %v958 = vmul.f32 %v956, %v921
          %v959 = vsub.f32 %v957, %v958
          %v960 = vld [vmem:[%s850] sm:$0x3]
          %v961 = vmul.f32 %v956, %v924
          %v962 = vsub.f32 %v960, %v961
          %v963 = vmul.f32 %v959, %v959
          %v964 = vmul.f32 %v962, %v962
          %v965 = vadd.f32 %v963, %v964
          %v967 = vlaneseq
          %v968 = vshrl.u32 %v967, 7
          %v969 = vsub.s32 0, %v968
          %v970 = vrot.slane %v965, %v969
          %v971 = vlaneseq
          %v972 = vshrl.u32 %v971, 7
          %v973 = vsub.s32 1, %v972
          %v974 = vrot.slane %v965, %v973
          %v977 = vsel %vm939, %v970, 0.0
          %v978 = vsel %vm939, %v974, 0.0
          %v979 = vadd.f32 %v977, %v978
          %980 = vadd.xlane.f32.xlu0 %v979
          %v981 = vpop.xlane.xlu0 %980
          %v982 = vrot.slane %v981, 4
          %v983 = vadd.f32 %v981, %v982
          %v984 = vrot.slane %v983, 2
          %v985 = vadd.f32 %v983, %v984
          %v986 = vrot.slane %v985, 1
          %v987 = vadd.f32 %v985, %v986
          %s988 = vtos %v987
          %v989 = vstv %s988
          %vm990 = vcmp.eq.f32.partialorder %v915, 0.0
          %v991 = vsel %vm990, 1.0, %v915
          %v992 = vrcp.pop %v991
          %v993 = vmul.f32 %v989, %v992
          %v994 = vld [vmem:[%s838] sm:$0x3]
          %v995 = vmul.f32 %v956, %v916
          %v996 = vadd.f32 %v994, %v995
          %997 = vst.msk [vmem:[%s854] sm:$0x3] %vm903, %v996
          %v998 = vld [vmem:[%s842] sm:$0x3]
          %v999 = vmul.f32 %v956, %v917
          %v1000 = vadd.f32 %v998, %v999
          %1001 = vst.msk [vmem:[%s858] sm:$0x3] %vm903, %v1000
          %1002 = vst.msk [vmem:[%s862] sm:$0x3] %vm903, %v959
          %1003 = vst.msk [vmem:[%s866] sm:$0x3] %vm903, %v962
          %v1004 = vmul.f32 %v993, %v916
          %v1005 = vadd.f32 %v959, %v1004
          %1006 = vst.msk [vmem:[%s870] sm:$0x3] %vm903, %v1005
          %v1007 = vmul.f32 %v993, %v917
          %v1008 = vadd.f32 %v962, %v1007
          %1009 = vst.msk [vmem:[%s874] sm:$0x3] %vm903, %v1008
          %v1010 = vadd.f32 %v989, 0.0
          %1011 = vst [vmem:[%s877] sm:$0x1] %v1010
        $region84: #{closed_call.50} parent=67 // pred_fallthru
          _
        %p1012 = scmp.lt.s32.totalorder %s36, 3
        %s1013 = scalar_select %p1012, %s36, 3
        %s1014 = smul.addr %s1013, 2
        %s1015 = scalar_lea.vmem %s12, %s1014
        %p1016 = scmp.lt.s32.totalorder %s36, 3
        %s1017 = scalar_select %p1016, %s36, 3
        %s1018 = smul.addr %s1017, 2
        %s1019 = scalar_lea.vmem %s13, %s1018
        %p1020 = scmp.lt.s32.totalorder %s36, 3
        %s1021 = scalar_select %p1020, %s36, 3
        %s1022 = smul.addr %s1021, 2
        %s1023 = scalar_lea.vmem %s14, %s1022
        %p1024 = scmp.lt.s32.totalorder %s36, 3
        %s1025 = scalar_select %p1024, %s36, 3
        %s1026 = smul.addr %s1025, 2
        %s1027 = scalar_lea.vmem %s15, %s1026
        %p1028 = scmp.lt.s32.totalorder %s36, 3
        %s1029 = scalar_select %p1028, %s36, 3
        %s1030 = smul.addr %s1029, 2
        %s1031 = scalar_lea.vmem %s16, %s1030
        %p1032 = scmp.lt.s32.totalorder %s36, 3
        %s1033 = scalar_select %p1032, %s36, 3
        %s1034 = smul.addr %s1033, 2
        %s1035 = scalar_lea.vmem %s17, %s1034
        %p1036 = scmp.lt.s32.totalorder %s36, 3
        %s1037 = scalar_select %p1036, %s36, 3
        %s1038 = scalar_lea.vmem %s18, %s1037
        // Predicated region
        $region85: #{closed_call.50} parent=67 // pred_check
          %p1039 = pneg %p372
        $region86: #{closed_call.50} parent=67 // pred_check_branch
          %1041 = sbr.rel (%p1039) target = $region88
        $region87: #{closed_call.50} parent=67 // pred_region
          _
        $region88: #{closed_call.50} parent=67 // pred_fallthru
          _
        // Predicated region
        $region89: #{closed_call.50} parent=67 // pred_check
          %p1042 = pneg %p398
        $region90: #{closed_call.50} parent=67 // pred_check_branch
          %1044 = sbr.rel (%p1042) target = $region92
        $region91: #{closed_call.50} parent=67 // pred_region
          _
        $region92: #{closed_call.50} parent=67 // pred_fallthru
          _
        // Predicated region
        $region93: #{closed_call.50} parent=67 // pred_check
          %p1045 = pneg %p424
        $region94: #{closed_call.50} parent=67 // pred_check_branch
          %1047 = sbr.rel (%p1045) target = $region96
        $region95: #{closed_call.50} parent=67 // pred_region
          _
        $region96: #{closed_call.50} parent=67 // pred_fallthru
          _
        // Predicated region
        $region97: #{closed_call.50} parent=67 // pred_check
          %p1048 = pneg %p450
        $region98: #{closed_call.50} parent=67 // pred_check_branch
          %1050 = sbr.rel (%p1048) target = $region100
        $region99: #{closed_call.50} parent=67 // pred_region
          _
        $region100: #{closed_call.50} parent=67 // pred_fallthru
          _
        // Predicated region
        $region101: #{closed_call.50} parent=67 // pred_check
          %p1051 = pneg %p476
        $region102: #{closed_call.50} parent=67 // pred_check_branch
          %1053 = sbr.rel (%p1051) target = $region104
        $region103: #{closed_call.50} parent=67 // pred_region
          _
        $region104: #{closed_call.50} parent=67 // pred_fallthru
          _
        // Predicated region
        $region105: #{closed_call.50} parent=67 // pred_check
          %p1054 = pneg %p502
        $region106: #{closed_call.50} parent=67 // pred_check_branch
          %1056 = sbr.rel (%p1054) target = $region108
        $region107: #{closed_call.50} parent=67 // pred_region
          _
        $region108: #{closed_call.50} parent=67 // pred_fallthru
          _
        // Predicated region
        $region109: #{closed_call.50} parent=67 // pred_check
          %p1057 = pneg %p528
        $region110: #{closed_call.50} parent=67 // pred_check_branch
          %1059 = sbr.rel (%p1057) target = $region112
        $region111: #{closed_call.50} parent=67 // pred_region
          _
        $region112: #{closed_call.50} parent=67 // pred_fallthru
          _
      $region68: #{closed_call.50} parent=5 // pred_fallthru
        _
      %p1060 = scmp.le.s32.totalorder 2, %s27
      // Predicated region
      $region113: #{closed_call.50} parent=5 // pred_check
        %p1061 = pneg %p1060
      $region114: #{closed_call.50} parent=5 // pred_check_branch
        %1063 = sbr.rel (%p1061) target = $region116
      $region115: #{closed_call.50} parent=5 // pred_region
        %s1064 = ssub.s32 %s27, 2
        // Predicated region
        $region117: #{closed_call.50} parent=115 // pred_check
          %p1065 = pneg %p378
        $region118: #{closed_call.50} parent=115 // pred_check_branch
          %1067 = sbr.rel (%p1065) target = $region120
        $region119: #{closed_call.50} parent=115 // pred_region
          %p1068 = scmp.lt.s32.totalorder %s38, 3
          %s1069 = scalar_select %p1068, %s38, 3
          %s1070 = smul.addr %s1069, 2
          %s1071 = scalar_lea.vmem %s12, %s1070
        $region120: #{closed_call.50} parent=115 // pred_fallthru
          _
        // Predicated region
        $region121: #{closed_call.50} parent=115 // pred_check
          %p1072 = pneg %p404
        $region122: #{closed_call.50} parent=115 // pred_check_branch
          %1074 = sbr.rel (%p1072) target = $region124
        $region123: #{closed_call.50} parent=115 // pred_region
          %p1075 = scmp.lt.s32.totalorder %s38, 3
          %s1076 = scalar_select %p1075, %s38, 3
          %s1077 = smul.addr %s1076, 2
          %s1078 = scalar_lea.vmem %s13, %s1077
        $region124: #{closed_call.50} parent=115 // pred_fallthru
          _
        // Predicated region
        $region125: #{closed_call.50} parent=115 // pred_check
          %p1079 = pneg %p430
        $region126: #{closed_call.50} parent=115 // pred_check_branch
          %1081 = sbr.rel (%p1079) target = $region128
        $region127: #{closed_call.50} parent=115 // pred_region
          %p1082 = scmp.lt.s32.totalorder %s38, 3
          %s1083 = scalar_select %p1082, %s38, 3
          %s1084 = smul.addr %s1083, 2
          %s1085 = scalar_lea.vmem %s14, %s1084
        $region128: #{closed_call.50} parent=115 // pred_fallthru
          _
        // Predicated region
        $region129: #{closed_call.50} parent=115 // pred_check
          %p1086 = pneg %p456
        $region130: #{closed_call.50} parent=115 // pred_check_branch
          %1088 = sbr.rel (%p1086) target = $region132
        $region131: #{closed_call.50} parent=115 // pred_region
          %p1089 = scmp.lt.s32.totalorder %s38, 3
          %s1090 = scalar_select %p1089, %s38, 3
          %s1091 = smul.addr %s1090, 2
          %s1092 = scalar_lea.vmem %s15, %s1091
        $region132: #{closed_call.50} parent=115 // pred_fallthru
          _
        // Predicated region
        $region133: #{closed_call.50} parent=115 // pred_check
          %p1093 = pneg %p482
        $region134: #{closed_call.50} parent=115 // pred_check_branch
          %1095 = sbr.rel (%p1093) target = $region136
        $region135: #{closed_call.50} parent=115 // pred_region
          %p1096 = scmp.lt.s32.totalorder %s38, 3
          %s1097 = scalar_select %p1096, %s38, 3
          %s1098 = smul.addr %s1097, 2
          %s1099 = scalar_lea.vmem %s16, %s1098
        $region136: #{closed_call.50} parent=115 // pred_fallthru
          _
        // Predicated region
        $region137: #{closed_call.50} parent=115 // pred_check
          %p1100 = pneg %p508
        $region138: #{closed_call.50} parent=115 // pred_check_branch
          %1102 = sbr.rel (%p1100) target = $region140
        $region139: #{closed_call.50} parent=115 // pred_region
          %p1103 = scmp.lt.s32.totalorder %s38, 3
          %s1104 = scalar_select %p1103, %s38, 3
          %s1105 = smul.addr %s1104, 2
          %s1106 = scalar_lea.vmem %s17, %s1105
        $region140: #{closed_call.50} parent=115 // pred_fallthru
          _
        // Predicated region
        $region141: #{closed_call.50} parent=115 // pred_check
          %p1107 = pneg %p534
        $region142: #{closed_call.50} parent=115 // pred_check_branch
          %1109 = sbr.rel (%p1107) target = $region144
        $region143: #{closed_call.50} parent=115 // pred_region
          %p1110 = scmp.lt.s32.totalorder %s38, 3
          %s1111 = scalar_select %p1110, %s38, 3
          %s1112 = scalar_lea.vmem %s18, %s1111
        $region144: #{closed_call.50} parent=115 // pred_fallthru
          _
      $region116: #{closed_call.50} parent=5 // pred_fallthru
        _
    $region6: #{closed_call.50} parent=1 // loop_footer
      %s31 = sadd.s32 1, %s27
    $region7: #{closed_call.50} parent=1 // loop_footer_branch
      %26 = sbr.rel target = $region3
    $region8: #{closed_call.50} parent=1 // loop_exit
      _
    %1113 = vsyncpa [#allocation5], 1
    %s1114 = scalar_lea.sflag [#allocation5], 1
    %1115 = vsyncpa %s1114, 1
    %1116 = vsyncpa [#allocation7], 1

</llo_original>
